<compile_context>
chip_gen: v7x
topology: tpu7x:2x2x1
jax: 0.10.0
libtpu: 0.0.40
codegen_flags: <defaults>
</compile_context>

<pallas_src>
import functools
import math
import types

import jax
import jax.numpy as jnp
from jax.experimental import pallas as pl
from jax.experimental.pallas import tpu as pltpu

_VMEM_LIMIT_BYTES = 32 * 1024 * 1024  # safe default on v5e/v6e (128 MiB) and v7x (64 MiB)


def _pad_up(n, m):
    return n + (-n) % m


# ----------------------------------------------------------------------------
# Kernel 1: single-K-step linear  (y = x @ w + b), bf16 inputs, f32 output.
# No accumulator scratch / pl.when epilogue and no K grid axis: every K here
# fits one step after padding (<= 1536), per the perf review.
# ----------------------------------------------------------------------------
def _linear_kernel(x_ref, w_ref, b_ref, o_ref):
    o_ref[...] = (
        jnp.dot(x_ref[...], w_ref[...], preferred_element_type=jnp.float32)
        + b_ref[...]
    )


def pallas_linear(x, w, b, tm_default=256):
    M, K = x.shape
    K2, N = w.shape
    assert K == K2
    Kp = _pad_up(K, 128)          # lane-align the contraction dim (1500 -> 1536)
    Mp16 = _pad_up(M, 16)         # bf16 packs 16 sublanes per vreg
    tm = min(tm_default, Mp16)
    Mp = _pad_up(M, tm)

    xp = jnp.pad(x.astype(jnp.bfloat16), ((0, Mp - M), (0, Kp - K)))
    wp = jnp.pad(w.astype(jnp.bfloat16), ((0, Kp - K), (0, 0)))
    bias = b.astype(jnp.float32).reshape(1, N)

    out = pl.pallas_call(
        _linear_kernel,
        out_shape=jax.ShapeDtypeStruct((Mp, N), jnp.float32),
        grid=(Mp // tm,),
        in_specs=[
            pl.BlockSpec((tm, Kp), lambda i: (i, 0)),
            pl.BlockSpec((Kp, N), lambda i: (0, 0)),
            pl.BlockSpec((1, N), lambda i: (0, 0)),
        ],
        out_specs=pl.BlockSpec((tm, N), lambda i: (i, 0)),
        compiler_params=pltpu.CompilerParams(
            dimension_semantics=("parallel",),
            vmem_limit_bytes=_VMEM_LIMIT_BYTES,
        ),
    )(xp, wp, bias)
    return out[:M]


# ----------------------------------------------------------------------------
# Kernel 2: fused graph propagation.
#   (1) wide modality propagation:  u_wide = ui @ [img|txt|title|genre|ent]
#                                   i_wide = iu @ u_wide          (160 lanes)
#   (2) profile propagation:        item_prof = iu @ user_feats
#                                   user_prof = ui @ item_prof
#   (3) ID-embedding ping-pong (n_ui_layers, softmax on last layer) + mean,
#       fully VMEM-resident.
# One launch replaces ~14 small matmul launches of the previous version.
# ----------------------------------------------------------------------------
def _fused_prop_kernel(ui_ref, iu_ref, fwide_ref, ufeat_ref, u0_ref, i0_ref,
                       u_wide_ref, i_wide_ref, uprof_ref, iprof_ref,
                       umean_ref, imean_ref, *, n_ui_layers):
    f32, bf16 = jnp.float32, jnp.bfloat16
    ui = ui_ref[...]          # (Up, Ip) bf16
    iu = iu_ref[...]          # (Ip, Up) bf16

    # (1) one wide MXU pass per direction (lane-dense 160-wide output)
    u_wide = jnp.dot(ui, fwide_ref[...], preferred_element_type=f32)
    i_wide = jnp.dot(iu, u_wide.astype(bf16), preferred_element_type=f32)
    u_wide_ref[...] = u_wide
    i_wide_ref[...] = i_wide

    # (2) user/item profile propagation (iu first, then ui)
    item_prof = jnp.dot(iu, ufeat_ref[...], preferred_element_type=f32)
    user_prof = jnp.dot(ui, item_prof.astype(bf16), preferred_element_type=f32)
    iprof_ref[...] = item_prof
    uprof_ref[...] = user_prof

    # (3) ID-embedding ping-pong; exact-division softmax for parity.
    def _softmax(v):
        m = jnp.max(v, axis=-1, keepdims=True)
        e = jnp.exp(v - m)
        return e / jnp.sum(e, axis=-1, keepdims=True)

    u_sum = u0_ref[...]
    i_sum = i0_ref[...]
    i_g = i_sum
    for layer in range(n_ui_layers):           # static unroll (n_ui_layers == 2)
        last = layer == n_ui_layers - 1
        u_g = jnp.dot(ui, i_g.astype(bf16), preferred_element_type=f32)
        if last:
            u_g = _softmax(u_g)
        i_g = jnp.dot(iu, u_g.astype(bf16), preferred_element_type=f32)
        if last:
            i_g = _softmax(i_g)
        u_sum = u_sum + u_g
        i_sum = i_sum + i_g
    inv = 1.0 / float(n_ui_layers + 1)
    umean_ref[...] = u_sum * inv
    imean_ref[...] = i_sum * inv


def fused_graph_propagation(ui_b, iu_b, f_wide_b, ufeat_b, u0, i0, *, n_ui_layers):
    Up, Ip = ui_b.shape
    W = f_wide_b.shape[1]
    E = u0.shape[1]

    def full(shape):
        return pl.BlockSpec(shape, lambda i: (0,) * len(shape))

    out_shape = (
        jax.ShapeDtypeStruct((Up, W), jnp.float32),   # u_wide
        jax.ShapeDtypeStruct((Ip, W), jnp.float32),   # i_wide
        jax.ShapeDtypeStruct((Up, E), jnp.float32),   # user_prof
        jax.ShapeDtypeStruct((Ip, E), jnp.float32),   # item_prof
        jax.ShapeDtypeStruct((Up, E), jnp.float32),   # u mean (id layers)
        jax.ShapeDtypeStruct((Ip, E), jnp.float32),   # i mean (id layers)
    )
    # TODO(synk): single-program kernel (whole problem fits VMEM at these sizes);
    # production-size n_users/n_items would need a row-tiled grid (>=2 programs
    # on a "parallel" axis so v7x's second TensorCore is used).
    return pl.pallas_call(
        functools.partial(_fused_prop_kernel, n_ui_layers=n_ui_layers),
        out_shape=out_shape,
        grid=(1,),
        in_specs=[
            full((Up, Ip)), full((Ip, Up)), full((Ip, W)),
            full((Up, E)), full((Up, E)), full((Ip, E)),
        ],
        out_specs=(
            full((Up, W)), full((Ip, W)), full((Up, E)),
            full((Ip, E)), full((Up, E)), full((Ip, E)),
        ),
        compiler_params=pltpu.CompilerParams(
            dimension_semantics=("arbitrary",),
            vmem_limit_bytes=_VMEM_LIMIT_BYTES,
        ),
    )(ui_b, iu_b, f_wide_b, ufeat_b, u0, i0)


# ----------------------------------------------------------------------------
# Kernel 3: merged normalized-feature aggregation
#   out = base + sum_k rates[k] * L2_normalize_rows(feats[k])
# (user and item rows are concatenated before the call: one launch, not two.)
# ----------------------------------------------------------------------------
def _make_norm_add_kernel(rates):
    def kernel(base_ref, feats_ref, o_ref):
        acc = base_ref[...]
        for kk, r in enumerate(rates):
            f = feats_ref[kk]
            # 1/max(||f||, 1e-12) == rsqrt(max(sum(f^2), 1e-24))
            inv = jax.lax.rsqrt(
                jnp.maximum(jnp.sum(f * f, axis=-1, keepdims=True), 1e-24)
            )
            acc = acc + r * (f * inv)
        o_ref[...] = acc

    return kernel


def pallas_norm_add(base, feats_stack, rates, tm_default=256):
    M, D = base.shape
    Kf = feats_stack.shape[0]
    Mp8 = _pad_up(M, 8)
    tm = min(tm_default, Mp8)
    Mp = _pad_up(M, tm)

    bp = jnp.pad(base.astype(jnp.float32), ((0, Mp - M), (0, 0)))
    fp = jnp.pad(feats_stack.astype(jnp.float32), ((0, 0), (0, Mp - M), (0, 0)))

    out = pl.pallas_call(
        _make_norm_add_kernel(tuple(float(r) for r in rates)),
        out_shape=jax.ShapeDtypeStruct((Mp, D), jnp.float32),
        grid=(Mp // tm,),
        in_specs=[
            pl.BlockSpec((tm, D), lambda i: (i, 0)),
            pl.BlockSpec((Kf, tm, D), lambda i: (0, i, 0)),
        ],
        out_specs=pl.BlockSpec((tm, D), lambda i: (i, 0)),
        compiler_params=pltpu.CompilerParams(
            dimension_semantics=("parallel",),
            vmem_limit_bytes=_VMEM_LIMIT_BYTES,
        ),
    )(bp, fp)
    return out[:M]


# ----------------------------------------------------------------------------
# Deterministic parameter init (mirrors __init__ shapes)
# ----------------------------------------------------------------------------
def _xavier(key, in_dim, out_dim):
    limit = math.sqrt(6.0 / (in_dim + out_dim))
    return jax.random.uniform(key, (in_dim, out_dim), jnp.float32, -limit, limit)


def _bias(key, in_dim, out_dim):
    bound = 1.0 / math.sqrt(in_dim)
    return jax.random.uniform(key, (out_dim,), jnp.float32, -bound, bound)


def init_params(key, cfg, dims):
    ks = jax.random.split(key, 12)
    e = cfg.embed_size
    return {
        "image_trans_w": _xavier(ks[0], dims["image"], e),
        "image_trans_b": _bias(ks[1], dims["image"], e),
        "text_trans_w": _xavier(ks[2], dims["text"], e),
        "text_trans_b": _bias(ks[3], dims["text"], e),
        "user_trans_w": _xavier(ks[4], dims["user"], e),
        "user_trans_b": _bias(ks[5], dims["user"], e),
        "item_trans_w": _xavier(ks[6], dims["title"], e),
        "item_trans_b": _bias(ks[7], dims["title"], e),
        "movie_entity_trans_w": _xavier(ks[8], dims["entity"], e),
        "movie_entity_trans_b": _bias(ks[9], dims["entity"], e),
        "user_id_emb": _xavier(ks[10], dims["n_users"], cfg.embedding_dim),
        "item_id_emb": _xavier(ks[11], dims["n_items"], cfg.embedding_dim),
    }


# ----------------------------------------------------------------------------
# MM_Model.forward
# ----------------------------------------------------------------------------
def mm_model_forward(params, feats, ui_graph, iu_graph, mask_key, cfg):
    E = cfg.embed_size
    n_users = feats["user"].shape[0]
    n_items = feats["image"].shape[0]
    item_keys = list(feats["item_attrs"].keys()) + ["entity"]  # entity last, like PyTorch

    # ---- user-feature masking (torch.randperm -> deterministic permutation)
    perm = jax.random.permutation(mask_key, n_users)
    num_mask = int(cfg.mask_rate * n_users)
    u_mask_nodes = perm[:num_mask]
    user_feats_raw = feats["user"]
    user_feats_raw = user_feats_raw.at[u_mask_nodes].set(user_feats_raw.mean(0))
    i_mask_nodes = None  # args.mask == False: item masking branch skipped

    # ---- feature transforms (single-K-step linears; dropout == identity)
    # TODO(synk): training-mode nn.Dropout not reproduced (inference identity).
    image_feats = pallas_linear(feats["image"], params["image_trans_w"],
                                params["image_trans_b"])
    text_feats = pallas_linear(feats["text"], params["text_trans_w"],
                               params["text_trans_b"])
    user_feats = pallas_linear(user_feats_raw, params["user_trans_w"],
                               params["user_trans_b"])
    ent_trans = pallas_linear(feats["entities"], params["movie_entity_trans_w"],
                              params["movie_entity_trans_b"])

    # Shared-weight item transform: title / genre / entity concatenated along M.
    item_attr_mats = [feats["item_attrs"][k] for k in item_keys[:-1]] + [ent_trans]
    item_all = pallas_linear(jnp.concatenate(item_attr_mats, axis=0),
                             params["item_trans_w"], params["item_trans_b"])
    item_feats_t = {k: item_all[j * n_items:(j + 1) * n_items]
                    for j, k in enumerate(item_keys)}

    # ---- one fused launch: wide modality propagation + profile propagation +
    #      ID-embedding ping-pong (mean + last-layer softmax).
    # (The PyTorch args.layers loop never feeds results back -> computed once.)
    Up = _pad_up(n_users, 16)
    Ip = _pad_up(n_items, 16)
    ui_b = jnp.pad(ui_graph.astype(jnp.bfloat16),
                   ((0, Up - n_users), (0, Ip - n_items)))
    iu_b = jnp.pad(iu_graph.astype(jnp.bfloat16),
                   ((0, Ip - n_items), (0, Up - n_users)))
    f_wide = jnp.concatenate([image_feats, text_feats]
                             + [item_feats_t[k] for k in item_keys], axis=1)
    f_wide_b = jnp.pad(f_wide.astype(jnp.bfloat16), ((0, Ip - n_items), (0, 0)))
    ufeat_b = jnp.pad(user_feats.astype(jnp.bfloat16), ((0, Up - n_users), (0, 0)))
    u0 = jnp.pad(params["user_id_emb"].astype(jnp.float32),
                 ((0, Up - n_users), (0, 0)))
    i0 = jnp.pad(params["item_id_emb"].astype(jnp.float32),
                 ((0, Ip - n_items), (0, 0)))

    (u_wide, i_wide, user_prof_p, item_prof_p, u_mean_p, i_mean_p) = (
        fused_graph_propagation(ui_b, iu_b, f_wide_b, ufeat_b, u0, i0,
                                n_ui_layers=len(cfg.weight_size)))

    u_wide = u_wide[:n_users]
    i_wide = i_wide[:n_items]
    user_prof_feat = user_prof_p[:n_users]
    item_prof_feat = item_prof_p[:n_items]
    u_g = u_mean_p[:n_users]
    i_g = i_mean_p[:n_items]

    image_user_feats = u_wide[:, 0:E]
    text_user_feats = u_wide[:, E:2 * E]
    user_feat_from_item = {k: u_wide[:, (2 + j) * E:(3 + j) * E]
                           for j, k in enumerate(item_keys)}
    image_item_feats = i_wide[:, 0:E]
    text_item_feats = i_wide[:, E:2 * E]
    item_feats = {k: i_wide[:, (2 + j) * E:(3 + j) * E]
                  for j, k in enumerate(item_keys)}

    # ---- merged normalized-feature aggregation (user & item rows concatenated)
    base = jnp.concatenate([u_g, i_g], axis=0)
    u_stack = jnp.stack([image_user_feats, text_user_feats, user_prof_feat]
                        + [user_feat_from_item[k] for k in item_keys])
    i_stack = jnp.stack([image_item_feats, text_item_feats, item_prof_feat]
                        + [item_feats[k] for k in item_keys])
    rates = ([cfg.model_cat_rate, cfg.model_cat_rate, cfg.user_cat_rate]
             + [cfg.item_cat_rate] * len(item_keys))
    emb = pallas_norm_add(base, jnp.concatenate([u_stack, i_stack], axis=1), rates)
    u_g_embeddings = emb[:n_users]
    i_g_embeddings = emb[n_users:]

    return (
        u_g_embeddings, i_g_embeddings,
        image_item_feats, text_item_feats,
        image_user_feats, text_user_feats,
        user_feats, item_feats,
        user_prof_feat, item_prof_feat,
        user_feat_from_item, item_feats,
        i_mask_nodes, u_mask_nodes,
    )


# ----------------------------------------------------------------------------
# Main
# ----------------------------------------------------------------------------
if __name__ == "__main__":
    cfg = types.SimpleNamespace(
        embed_size=32,
        embedding_dim=32,
        weight_size=[32, 32],
        layers=1,
        drop_rate=0.1,
        mask=False,
        mask_rate=0.1,
        sparse=False,
        model_cat_rate=0.02,
        user_cat_rate=0.02,
        item_cat_rate=0.005,
    )

    n_users, n_items = 24, 16
    dims = {
        "image": 64, "text": 48, "user": 40,
        "title": cfg.embed_size,  # item_trans is re-applied to 'entity' -> must equal embed_size
        "entity": 1500,           # 1500-dim entity vectors; exercises single-step K=1536
        "n_users": n_users, "n_items": n_items,
    }

    root = jax.random.PRNGKey(0)
    ks = jax.random.split(root, 10)

    feats = {
        "image": jax.random.normal(ks[0], (n_items, dims["image"]), jnp.float32),
        "text": jax.random.normal(ks[1], (n_items, dims["text"]), jnp.float32),
        "user": jax.random.normal(ks[2], (n_users, dims["user"]), jnp.float32),
        "item_attrs": {
            "title": jax.random.normal(ks[3], (n_items, dims["title"]), jnp.float32),
            "genre": jax.random.normal(ks[4], (n_items, dims["title"]), jnp.float32),
        },
        "entities": jax.random.normal(ks[5], (n_items, dims["entity"]), jnp.float32),
    }

    ui_graph = jax.random.uniform(ks[6], (n_users, n_items), jnp.float32)
    ui_graph = ui_graph / (ui_graph.sum(axis=1, keepdims=True) + 1e-8)
    iu_graph = ui_graph.T

    params = init_params(ks[7], cfg, dims)

    # One jitted executable: padding/cast glue and the 7 pallas_call launches
    # (5 linears + fused propagation + merged norm_add) fuse into one program.
    forward = jax.jit(functools.partial(mm_model_forward, cfg=cfg))
    outputs = forward(params, feats, ui_graph, iu_graph, ks[8])

    jax.block_until_ready(outputs[0])
    jax.block_until_ready(outputs[1])
    assert outputs[0].shape == (n_users, cfg.embed_size)
    assert outputs[1].shape == (n_items, cfg.embed_size)
    assert outputs[2].shape == (n_items, cfg.embed_size)
    assert outputs[4].shape == (n_users, cfg.embed_size)
    print("KERNEL_OK")
</pallas_src>

<mosaic_0001>
module attributes {stable_mosaic.version = 11 : i64} {
  func.func @_linear_kernel(%arg0: i32, %arg1: memref<32x128xbf16, #tpu.memory_space<vmem>>, %arg2: memref<128x32xbf16, #tpu.memory_space<vmem>>, %arg3: memref<1x32xf32, #tpu.memory_space<vmem>>, %arg4: memref<32x32xf32, #tpu.memory_space<vmem>>) attributes {dimension_semantics = [#tpu.dimension_semantics<parallel>], iteration_bounds = array<i64: 1>, scalar_prefetch = 0 : i64, scratch_operands = 0 : i64, tpu.core_type = #tpu.core_type<tc>, window_params = [{transform_indices = @transform_0, window_bounds = array<i64: 32, 128>}, {pipeline_mode = #tpu.pipeline_mode<synchronous>, transform_indices = @transform_1, window_bounds = array<i64: 128, 32>}, {pipeline_mode = #tpu.pipeline_mode<synchronous>, transform_indices = @transform_2, window_bounds = array<i64: 1, 32>}, {transform_indices = @transform_3, window_bounds = array<i64: 32, 32>}]} {
    %c0 = arith.constant 0 : index
    %c0_0 = arith.constant 0 : index
    %0 = vector.load %arg1[%c0, %c0_0] : memref<32x128xbf16, #tpu.memory_space<vmem>>, vector<32x128xbf16>
    %c0_1 = arith.constant 0 : index
    %c0_2 = arith.constant 0 : index
    %1 = vector.load %arg2[%c0_1, %c0_2] : memref<128x32xbf16, #tpu.memory_space<vmem>>, vector<128x32xbf16>
    %cst = arith.constant dense<0.000000e+00> : vector<32x32xf32>
    %2 = tpu.matmul %0, %1, %cst {dimension_numbers = #tpu.dot_dimension_numbers<[1], [0], [0], [1], [0, 0, 1, 1], [], []>} : vector<32x128xbf16>, vector<128x32xbf16>, vector<32x32xf32> -> vector<32x32xf32>
    %c0_3 = arith.constant 0 : index
    %c0_4 = arith.constant 0 : index
    %3 = vector.load %arg3[%c0_3, %c0_4] : memref<1x32xf32, #tpu.memory_space<vmem>>, vector<1x32xf32>
    %4 = vector.broadcast %3 : vector<1x32xf32> to vector<32x32xf32>
    %5 = arith.addf %2, %4 : vector<32x32xf32>
    %c0_5 = arith.constant 0 : index
    %c0_6 = arith.constant 0 : index
    %6 = vector.load %arg4[%c0_5, %c0_6] : memref<32x32xf32, #tpu.memory_space<vmem>>, vector<32x32xf32>
    tpu.vector_store %arg4[%c0_5, %c0_6], %5 {strides = array<i32>} : memref<32x32xf32, #tpu.memory_space<vmem>>, vector<32x32xf32>,
    return
  }
  func.func @transform_0(%arg0: i32) -> (i32, i32) {
    %c0_i32 = arith.constant 0 : i32
    %c0_i32_0 = arith.constant 0 : i32
    return %arg0, %c0_i32 : i32, i32
  }
  func.func @transform_1(%arg0: i32) -> (i32, i32) {
    %c0_i32 = arith.constant 0 : i32
    %c0_i32_0 = arith.constant 0 : i32
    %c0_i32_1 = arith.constant 0 : i32
    return %c0_i32, %c0_i32_0 : i32, i32
  }
  func.func @transform_2(%arg0: i32) -> (i32, i32) {
    %c0_i32 = arith.constant 0 : i32
    %c0_i32_0 = arith.constant 0 : i32
    %c0_i32_1 = arith.constant 0 : i32
    return %c0_i32, %c0_i32_0 : i32, i32
  }
  func.func @transform_3(%arg0: i32) -> (i32, i32) {
    %c0_i32 = arith.constant 0 : i32
    %c0_i32_0 = arith.constant 0 : i32
    return %arg0, %c0_i32 : i32, i32
  }
}

module attributes {stable_mosaic.version = 11 : i64} {
  func.func @_linear_kernel(%arg0: i32, %arg1: memref<16x1536xbf16, #tpu.memory_space<vmem>>, %arg2: memref<1536x32xbf16, #tpu.memory_space<vmem>>, %arg3: memref<1x32xf32, #tpu.memory_space<vmem>>, %arg4: memref<16x32xf32, #tpu.memory_space<vmem>>) attributes {dimension_semantics = [#tpu.dimension_semantics<parallel>], iteration_bounds = array<i64: 1>, scalar_prefetch = 0 : i64, scratch_operands = 0 : i64, tpu.core_type = #tpu.core_type<tc>, window_params = [{transform_indices = @transform_0, window_bounds = array<i64: 16, 1536>}, {pipeline_mode = #tpu.pipeline_mode<synchronous>, transform_indices = @transform_1, window_bounds = array<i64: 1536, 32>}, {pipeline_mode = #tpu.pipeline_mode<synchronous>, transform_indices = @transform_2, window_bounds = array<i64: 1, 32>}, {transform_indices = @transform_3, window_bounds = array<i64: 16, 32>}]} {
    %c0 = arith.constant 0 : index
    %c0_0 = arith.constant 0 : index
    %0 = vector.load %arg1[%c0, %c0_0] : memref<16x1536xbf16, #tpu.memory_space<vmem>>, vector<16x1536xbf16>
    %c0_1 = arith.constant 0 : index
    %c0_2 = arith.constant 0 : index
    %1 = vector.load %arg2[%c0_1, %c0_2] : memref<1536x32xbf16, #tpu.memory_space<vmem>>, vector<1536x32xbf16>
    %cst = arith.constant dense<0.000000e+00> : vector<16x32xf32>
    %2 = tpu.matmul %0, %1, %cst {dimension_numbers = #tpu.dot_dimension_numbers<[1], [0], [0], [1], [0, 0, 1, 1], [], []>} : vector<16x1536xbf16>, vector<1536x32xbf16>, vector<16x32xf32> -> vector<16x32xf32>
    %c0_3 = arith.constant 0 : index
    %c0_4 = arith.constant 0 : index
    %3 = vector.load %arg3[%c0_3, %c0_4] : memref<1x32xf32, #tpu.memory_space<vmem>>, vector<1x32xf32>
    %4 = vector.broadcast %3 : vector<1x32xf32> to vector<16x32xf32>
    %5 = arith.addf %2, %4 : vector<16x32xf32>
    %c0_5 = arith.constant 0 : index
    %c0_6 = arith.constant 0 : index
    %6 = vector.load %arg4[%c0_5, %c0_6] : memref<16x32xf32, #tpu.memory_space<vmem>>, vector<16x32xf32>
    tpu.vector_store %arg4[%c0_5, %c0_6], %5 {strides = array<i32>} : memref<16x32xf32, #tpu.memory_space<vmem>>, vector<16x32xf32>,
    return
  }
  func.func @transform_0(%arg0: i32) -> (i32, i32) {
    %c0_i32 = arith.constant 0 : i32
    %c0_i32_0 = arith.constant 0 : i32
    return %arg0, %c0_i32 : i32, i32
  }
  func.func @transform_1(%arg0: i32) -> (i32, i32) {
    %c0_i32 = arith.constant 0 : i32
    %c0_i32_0 = arith.constant 0 : i32
    %c0_i32_1 = arith.constant 0 : i32
    return %c0_i32, %c0_i32_0 : i32, i32
  }
  func.func @transform_2(%arg0: i32) -> (i32, i32) {
    %c0_i32 = arith.constant 0 : i32
    %c0_i32_0 = arith.constant 0 : i32
    %c0_i32_1 = arith.constant 0 : i32
    return %c0_i32, %c0_i32_0 : i32, i32
  }
  func.func @transform_3(%arg0: i32) -> (i32, i32) {
    %c0_i32 = arith.constant 0 : i32
    %c0_i32_0 = arith.constant 0 : i32
    return %arg0, %c0_i32 : i32, i32
  }
}

module attributes {stable_mosaic.version = 11 : i64} {
  func.func @_linear_kernel(%arg0: i32, %arg1: memref<48x128xbf16, #tpu.memory_space<vmem>>, %arg2: memref<128x32xbf16, #tpu.memory_space<vmem>>, %arg3: memref<1x32xf32, #tpu.memory_space<vmem>>, %arg4: memref<48x32xf32, #tpu.memory_space<vmem>>) attributes {dimension_semantics = [#tpu.dimension_semantics<parallel>], iteration_bounds = array<i64: 1>, scalar_prefetch = 0 : i64, scratch_operands = 0 : i64, tpu.core_type = #tpu.core_type<tc>, window_params = [{transform_indices = @transform_0, window_bounds = array<i64: 48, 128>}, {pipeline_mode = #tpu.pipeline_mode<synchronous>, transform_indices = @transform_1, window_bounds = array<i64: 128, 32>}, {pipeline_mode = #tpu.pipeline_mode<synchronous>, transform_indices = @transform_2, window_bounds = array<i64: 1, 32>}, {transform_indices = @transform_3, window_bounds = array<i64: 48, 32>}]} {
    %c0 = arith.constant 0 : index
    %c0_0 = arith.constant 0 : index
    %0 = vector.load %arg1[%c0, %c0_0] : memref<48x128xbf16, #tpu.memory_space<vmem>>, vector<48x128xbf16>
    %c0_1 = arith.constant 0 : index
    %c0_2 = arith.constant 0 : index
    %1 = vector.load %arg2[%c0_1, %c0_2] : memref<128x32xbf16, #tpu.memory_space<vmem>>, vector<128x32xbf16>
    %cst = arith.constant dense<0.000000e+00> : vector<48x32xf32>
    %2 = tpu.matmul %0, %1, %cst {dimension_numbers = #tpu.dot_dimension_numbers<[1], [0], [0], [1], [0, 0, 1, 1], [], []>} : vector<48x128xbf16>, vector<128x32xbf16>, vector<48x32xf32> -> vector<48x32xf32>
    %c0_3 = arith.constant 0 : index
    %c0_4 = arith.constant 0 : index
    %3 = vector.load %arg3[%c0_3, %c0_4] : memref<1x32xf32, #tpu.memory_space<vmem>>, vector<1x32xf32>
    %4 = vector.broadcast %3 : vector<1x32xf32> to vector<48x32xf32>
    %5 = arith.addf %2, %4 : vector<48x32xf32>
    %c0_5 = arith.constant 0 : index
    %c0_6 = arith.constant 0 : index
    %6 = vector.load %arg4[%c0_5, %c0_6] : memref<48x32xf32, #tpu.memory_space<vmem>>, vector<48x32xf32>
    tpu.vector_store %arg4[%c0_5, %c0_6], %5 {strides = array<i32>} : memref<48x32xf32, #tpu.memory_space<vmem>>, vector<48x32xf32>,
    return
  }
  func.func @transform_0(%arg0: i32) -> (i32, i32) {
    %c0_i32 = arith.constant 0 : i32
    %c0_i32_0 = arith.constant 0 : i32
    return %arg0, %c0_i32 : i32, i32
  }
  func.func @transform_1(%arg0: i32) -> (i32, i32) {
    %c0_i32 = arith.constant 0 : i32
    %c0_i32_0 = arith.constant 0 : i32
    %c0_i32_1 = arith.constant 0 : i32
    return %c0_i32, %c0_i32_0 : i32, i32
  }
  func.func @transform_2(%arg0: i32) -> (i32, i32) {
    %c0_i32 = arith.constant 0 : i32
    %c0_i32_0 = arith.constant 0 : i32
    %c0_i32_1 = arith.constant 0 : i32
    return %c0_i32, %c0_i32_0 : i32, i32
  }
  func.func @transform_3(%arg0: i32) -> (i32, i32) {
    %c0_i32 = arith.constant 0 : i32
    %c0_i32_0 = arith.constant 0 : i32
    return %arg0, %c0_i32 : i32, i32
  }
}

module attributes {stable_mosaic.version = 11 : i64} {
  func.func @_linear_kernel(%arg0: i32, %arg1: memref<16x128xbf16, #tpu.memory_space<vmem>>, %arg2: memref<128x32xbf16, #tpu.memory_space<vmem>>, %arg3: memref<1x32xf32, #tpu.memory_space<vmem>>, %arg4: memref<16x32xf32, #tpu.memory_space<vmem>>) attributes {dimension_semantics = [#tpu.dimension_semantics<parallel>], iteration_bounds = array<i64: 1>, scalar_prefetch = 0 : i64, scratch_operands = 0 : i64, tpu.core_type = #tpu.core_type<tc>, window_params = [{transform_indices = @transform_0, window_bounds = array<i64: 16, 128>}, {pipeline_mode = #tpu.pipeline_mode<synchronous>, transform_indices = @transform_1, window_bounds = array<i64: 128, 32>}, {pipeline_mode = #tpu.pipeline_mode<synchronous>, transform_indices = @transform_2, window_bounds = array<i64: 1, 32>}, {transform_indices = @transform_3, window_bounds = array<i64: 16, 32>}]} {
    %c0 = arith.constant 0 : index
    %c0_0 = arith.constant 0 : index
    %0 = vector.load %arg1[%c0, %c0_0] : memref<16x128xbf16, #tpu.memory_space<vmem>>, vector<16x128xbf16>
    %c0_1 = arith.constant 0 : index
    %c0_2 = arith.constant 0 : index
    %1 = vector.load %arg2[%c0_1, %c0_2] : memref<128x32xbf16, #tpu.memory_space<vmem>>, vector<128x32xbf16>
    %cst = arith.constant dense<0.000000e+00> : vector<16x32xf32>
    %2 = tpu.matmul %0, %1, %cst {dimension_numbers = #tpu.dot_dimension_numbers<[1], [0], [0], [1], [0, 0, 1, 1], [], []>} : vector<16x128xbf16>, vector<128x32xbf16>, vector<16x32xf32> -> vector<16x32xf32>
    %c0_3 = arith.constant 0 : index
    %c0_4 = arith.constant 0 : index
    %3 = vector.load %arg3[%c0_3, %c0_4] : memref<1x32xf32, #tpu.memory_space<vmem>>, vector<1x32xf32>
    %4 = vector.broadcast %3 : vector<1x32xf32> to vector<16x32xf32>
    %5 = arith.addf %2, %4 : vector<16x32xf32>
    %c0_5 = arith.constant 0 : index
    %c0_6 = arith.constant 0 : index
    %6 = vector.load %arg4[%c0_5, %c0_6] : memref<16x32xf32, #tpu.memory_space<vmem>>, vector<16x32xf32>
    tpu.vector_store %arg4[%c0_5, %c0_6], %5 {strides = array<i32>} : memref<16x32xf32, #tpu.memory_space<vmem>>, vector<16x32xf32>,
    return
  }
  func.func @transform_0(%arg0: i32) -> (i32, i32) {
    %c0_i32 = arith.constant 0 : i32
    %c0_i32_0 = arith.constant 0 : i32
    return %arg0, %c0_i32 : i32, i32
  }
  func.func @transform_1(%arg0: i32) -> (i32, i32) {
    %c0_i32 = arith.constant 0 : i32
    %c0_i32_0 = arith.constant 0 : i32
    %c0_i32_1 = arith.constant 0 : i32
    return %c0_i32, %c0_i32_0 : i32, i32
  }
  func.func @transform_2(%arg0: i32) -> (i32, i32) {
    %c0_i32 = arith.constant 0 : i32
    %c0_i32_0 = arith.constant 0 : i32
    %c0_i32_1 = arith.constant 0 : i32
    return %c0_i32, %c0_i32_0 : i32, i32
  }
  func.func @transform_3(%arg0: i32) -> (i32, i32) {
    %c0_i32 = arith.constant 0 : i32
    %c0_i32_0 = arith.constant 0 : i32
    return %arg0, %c0_i32 : i32, i32
  }
}

module attributes {stable_mosaic.version = 11 : i64} {
  func.func @_fused_prop_kernel(%arg0: i32, %arg1: memref<32x16xbf16, #tpu.memory_space<vmem>>, %arg2: memref<16x32xbf16, #tpu.memory_space<vmem>>, %arg3: memref<16x160xbf16, #tpu.memory_space<vmem>>, %arg4: memref<32x32xbf16, #tpu.memory_space<vmem>>, %arg5: memref<32x32xf32, #tpu.memory_space<vmem>>, %arg6: memref<16x32xf32, #tpu.memory_space<vmem>>, %arg7: memref<32x160xf32, #tpu.memory_space<vmem>>, %arg8: memref<16x160xf32, #tpu.memory_space<vmem>>, %arg9: memref<32x32xf32, #tpu.memory_space<vmem>>, %arg10: memref<16x32xf32, #tpu.memory_space<vmem>>, %arg11: memref<32x32xf32, #tpu.memory_space<vmem>>, %arg12: memref<16x32xf32, #tpu.memory_space<vmem>>) attributes {dimension_semantics = [#tpu.dimension_semantics<arbitrary>], iteration_bounds = array<i64: 1>, scalar_prefetch = 0 : i64, scratch_operands = 0 : i64, tpu.core_type = #tpu.core_type<tc>, window_params = [{pipeline_mode = #tpu.pipeline_mode<synchronous>, transform_indices = @transform_0, window_bounds = array<i64: 32, 16>}, {pipeline_mode = #tpu.pipeline_mode<synchronous>, transform_indices = @transform_1, window_bounds = array<i64: 16, 32>}, {pipeline_mode = #tpu.pipeline_mode<synchronous>, transform_indices = @transform_2, window_bounds = array<i64: 16, 160>}, {pipeline_mode = #tpu.pipeline_mode<synchronous>, transform_indices = @transform_3, window_bounds = array<i64: 32, 32>}, {pipeline_mode = #tpu.pipeline_mode<synchronous>, transform_indices = @transform_4, window_bounds = array<i64: 32, 32>}, {pipeline_mode = #tpu.pipeline_mode<synchronous>, transform_indices = @transform_5, window_bounds = array<i64: 16, 32>}, {pipeline_mode = #tpu.pipeline_mode<synchronous>, transform_indices = @transform_6, window_bounds = array<i64: 32, 160>}, {pipeline_mode = #tpu.pipeline_mode<synchronous>, transform_indices = @transform_7, window_bounds = array<i64: 16, 160>}, {pipeline_mode = #tpu.pipeline_mode<synchronous>, transform_indices = @transform_8, window_bounds = array<i64: 32, 32>}, {pipeline_mode = #tpu.pipeline_mode<synchronous>, transform_indices = @transform_9, window_bounds = array<i64: 16, 32>}, {pipeline_mode = #tpu.pipeline_mode<synchronous>, transform_indices = @transform_10, window_bounds = array<i64: 32, 32>}, {pipeline_mode = #tpu.pipeline_mode<synchronous>, transform_indices = @transform_11, window_bounds = array<i64: 16, 32>}]} {
    %c0 = arith.constant 0 : index
    %c0_0 = arith.constant 0 : index
    %0 = vector.load %arg1[%c0, %c0_0] : memref<32x16xbf16, #tpu.memory_space<vmem>>, vector<32x16xbf16>
    %c0_1 = arith.constant 0 : index
    %c0_2 = arith.constant 0 : index
    %1 = vector.load %arg2[%c0_1, %c0_2] : memref<16x32xbf16, #tpu.memory_space<vmem>>, vector<16x32xbf16>
    %c0_3 = arith.constant 0 : index
    %c0_4 = arith.constant 0 : index
    %2 = vector.load %arg3[%c0_3, %c0_4] : memref<16x160xbf16, #tpu.memory_space<vmem>>, vector<16x160xbf16>
    %cst = arith.constant dense<0.000000e+00> : vector<32x160xf32>
    %3 = tpu.matmul %0, %2, %cst {dimension_numbers = #tpu.dot_dimension_numbers<[1], [0], [0], [1], [0, 0, 1, 1], [], []>} : vector<32x16xbf16>, vector<16x160xbf16>, vector<32x160xf32> -> vector<32x160xf32>
    %4 = arith.truncf %3 : vector<32x160xf32> to vector<32x160xbf16>
    %cst_5 = arith.constant dense<0.000000e+00> : vector<16x160xf32>
    %5 = tpu.matmul %1, %4, %cst_5 {dimension_numbers = #tpu.dot_dimension_numbers<[1], [0], [0], [1], [0, 0, 1, 1], [], []>} : vector<16x32xbf16>, vector<32x160xbf16>, vector<16x160xf32> -> vector<16x160xf32>
    %c0_6 = arith.constant 0 : index
    %c0_7 = arith.constant 0 : index
    %6 = vector.load %arg7[%c0_6, %c0_7] : memref<32x160xf32, #tpu.memory_space<vmem>>, vector<32x160xf32>
    tpu.vector_store %arg7[%c0_6, %c0_7], %3 {strides = array<i32>} : memref<32x160xf32, #tpu.memory_space<vmem>>, vector<32x160xf32>,
    %c0_8 = arith.constant 0 : index
    %c0_9 = arith.constant 0 : index
    %7 = vector.load %arg8[%c0_8, %c0_9] : memref<16x160xf32, #tpu.memory_space<vmem>>, vector<16x160xf32>
    tpu.vector_store %arg8[%c0_8, %c0_9], %5 {strides = array<i32>} : memref<16x160xf32, #tpu.memory_space<vmem>>, vector<16x160xf32>,
    %c0_10 = arith.constant 0 : index
    %c0_11 = arith.constant 0 : index
    %8 = vector.load %arg4[%c0_10, %c0_11] : memref<32x32xbf16, #tpu.memory_space<vmem>>, vector<32x32xbf16>
    %cst_12 = arith.constant dense<0.000000e+00> : vector<16x32xf32>
    %9 = tpu.matmul %1, %8, %cst_12 {dimension_numbers = #tpu.dot_dimension_numbers<[1], [0], [0], [1], [0, 0, 1, 1], [], []>} : vector<16x32xbf16>, vector<32x32xbf16>, vector<16x32xf32> -> vector<16x32xf32>
    %10 = arith.truncf %9 : vector<16x32xf32> to vector<16x32xbf16>
    %cst_13 = arith.constant dense<0.000000e+00> : vector<32x32xf32>
    %11 = tpu.matmul %0, %10, %cst_13 {dimension_numbers = #tpu.dot_dimension_numbers<[1], [0], [0], [1], [0, 0, 1, 1], [], []>} : vector<32x16xbf16>, vector<16x32xbf16>, vector<32x32xf32> -> vector<32x32xf32>
    %c0_14 = arith.constant 0 : index
    %c0_15 = arith.constant 0 : index
    %12 = vector.load %arg10[%c0_14, %c0_15] : memref<16x32xf32, #tpu.memory_space<vmem>>, vector<16x32xf32>
    tpu.vector_store %arg10[%c0_14, %c0_15], %9 {strides = array<i32>} : memref<16x32xf32, #tpu.memory_space<vmem>>, vector<16x32xf32>,
    %c0_16 = arith.constant 0 : index
    %c0_17 = arith.constant 0 : index
    %13 = vector.load %arg9[%c0_16, %c0_17] : memref<32x32xf32, #tpu.memory_space<vmem>>, vector<32x32xf32>
    tpu.vector_store %arg9[%c0_16, %c0_17], %11 {strides = array<i32>} : memref<32x32xf32, #tpu.memory_space<vmem>>, vector<32x32xf32>,
    %c0_18 = arith.constant 0 : index
    %c0_19 = arith.constant 0 : index
    %14 = vector.load %arg5[%c0_18, %c0_19] : memref<32x32xf32, #tpu.memory_space<vmem>>, vector<32x32xf32>
    %c0_20 = arith.constant 0 : index
    %c0_21 = arith.constant 0 : index
    %15 = vector.load %arg6[%c0_20, %c0_21] : memref<16x32xf32, #tpu.memory_space<vmem>>, vector<16x32xf32>
    %16 = arith.truncf %15 : vector<16x32xf32> to vector<16x32xbf16>
    %cst_22 = arith.constant dense<0.000000e+00> : vector<32x32xf32>
    %17 = tpu.matmul %0, %16, %cst_22 {dimension_numbers = #tpu.dot_dimension_numbers<[1], [0], [0], [1], [0, 0, 1, 1], [], []>} : vector<32x16xbf16>, vector<16x32xbf16>, vector<32x32xf32> -> vector<32x32xf32>
    %18 = arith.truncf %17 : vector<32x32xf32> to vector<32x32xbf16>
    %cst_23 = arith.constant dense<0.000000e+00> : vector<16x32xf32>
    %19 = tpu.matmul %1, %18, %cst_23 {dimension_numbers = #tpu.dot_dimension_numbers<[1], [0], [0], [1], [0, 0, 1, 1], [], []>} : vector<16x32xbf16>, vector<32x32xbf16>, vector<16x32xf32> -> vector<16x32xf32>
    %20 = arith.addf %14, %17 : vector<32x32xf32>
    %21 = arith.addf %15, %19 : vector<16x32xf32>
    %22 = arith.truncf %19 : vector<16x32xf32> to vector<16x32xbf16>
    %cst_24 = arith.constant dense<0.000000e+00> : vector<32x32xf32>
    %23 = tpu.matmul %0, %22, %cst_24 {dimension_numbers = #tpu.dot_dimension_numbers<[1], [0], [0], [1], [0, 0, 1, 1], [], []>} : vector<32x16xbf16>, vector<16x32xbf16>, vector<32x32xf32> -> vector<32x32xf32>
    %cst_25 = arith.constant dense<0xFF800000> : vector<32xf32>
    %24 = vector.multi_reduction <maximumf>, %23, %cst_25 [1] : vector<32x32xf32> to vector<32xf32>
    %25 = vector.shape_cast %24 : vector<32xf32> to vector<32x1xf32>
    %26 = vector.broadcast %25 : vector<32x1xf32> to vector<32x32xf32>
    %27 = arith.subf %23, %26 : vector<32x32xf32>
    %28 = math.exp %27 : vector<32x32xf32>
    %cst_26 = arith.constant dense<0.000000e+00> : vector<32xf32>
    %29 = vector.multi_reduction <add>, %28, %cst_26 [1] : vector<32x32xf32> to vector<32xf32>
    %30 = vector.shape_cast %29 : vector<32xf32> to vector<32x1xf32>
    %31 = vector.broadcast %30 : vector<32x1xf32> to vector<32x32xf32>
    %32 = arith.divf %28, %31 : vector<32x32xf32>
    %33 = arith.truncf %32 : vector<32x32xf32> to vector<32x32xbf16>
    %cst_27 = arith.constant dense<0.000000e+00> : vector<16x32xf32>
    %34 = tpu.matmul %1, %33, %cst_27 {dimension_numbers = #tpu.dot_dimension_numbers<[1], [0], [0], [1], [0, 0, 1, 1], [], []>} : vector<16x32xbf16>, vector<32x32xbf16>, vector<16x32xf32> -> vector<16x32xf32>
    %cst_28 = arith.constant dense<0xFF800000> : vector<16xf32>
    %35 = vector.multi_reduction <maximumf>, %34, %cst_28 [1] : vector<16x32xf32> to vector<16xf32>
    %36 = vector.shape_cast %35 : vector<16xf32> to vector<16x1xf32>
    %37 = vector.broadcast %36 : vector<16x1xf32> to vector<16x32xf32>
    %38 = arith.subf %34, %37 : vector<16x32xf32>
    %39 = math.exp %38 : vector<16x32xf32>
    %cst_29 = arith.constant dense<0.000000e+00> : vector<16xf32>
    %40 = vector.multi_reduction <add>, %39, %cst_29 [1] : vector<16x32xf32> to vector<16xf32>
    %41 = vector.shape_cast %40 : vector<16xf32> to vector<16x1xf32>
    %42 = vector.broadcast %41 : vector<16x1xf32> to vector<16x32xf32>
    %43 = arith.divf %39, %42 : vector<16x32xf32>
    %44 = arith.addf %20, %32 : vector<32x32xf32>
    %45 = arith.addf %21, %43 : vector<16x32xf32>
    %cst_30 = arith.constant 0.333333343 : f32
    %46 = vector.broadcast %cst_30 : f32 to vector<32x32xf32>
    %47 = arith.mulf %44, %46 : vector<32x32xf32>
    %c0_31 = arith.constant 0 : index
    %c0_32 = arith.constant 0 : index
    %48 = vector.load %arg11[%c0_31, %c0_32] : memref<32x32xf32, #tpu.memory_space<vmem>>, vector<32x32xf32>
    tpu.vector_store %arg11[%c0_31, %c0_32], %47 {strides = array<i32>} : memref<32x32xf32, #tpu.memory_space<vmem>>, vector<32x32xf32>,
    %cst_33 = arith.constant 0.333333343 : f32
    %49 = vector.broadcast %cst_33 : f32 to vector<16x32xf32>
    %50 = arith.mulf %45, %49 : vector<16x32xf32>
    %c0_34 = arith.constant 0 : index
    %c0_35 = arith.constant 0 : index
    %51 = vector.load %arg12[%c0_34, %c0_35] : memref<16x32xf32, #tpu.memory_space<vmem>>, vector<16x32xf32>
    tpu.vector_store %arg12[%c0_34, %c0_35], %50 {strides = array<i32>} : memref<16x32xf32, #tpu.memory_space<vmem>>, vector<16x32xf32>,
    return
  }
  func.func @transform_0(%arg0: i32) -> (i32, i32) {
    %c0_i32 = arith.constant 0 : i32
    %c0_i32_0 = arith.constant 0 : i32
    %c0_i32_1 = arith.constant 0 : i32
    return %c0_i32, %c0_i32_0 : i32, i32
  }
  func.func @transform_1(%arg0: i32) -> (i32, i32) {
    %c0_i32 = arith.constant 0 : i32
    %c0_i32_0 = arith.constant 0 : i32
    %c0_i32_1 = arith.constant 0 : i32
    return %c0_i32, %c0_i32_0 : i32, i32
  }
  func.func @transform_2(%arg0: i32) -> (i32, i32) {
    %c0_i32 = arith.constant 0 : i32
    %c0_i32_0 = arith.constant 0 : i32
    %c0_i32_1 = arith.constant 0 : i32
    return %c0_i32, %c0_i32_0 : i32, i32
  }
  func.func @transform_3(%arg0: i32) -> (i32, i32) {
    %c0_i32 = arith.constant 0 : i32
    %c0_i32_0 = arith.constant 0 : i32
    %c0_i32_1 = arith.constant 0 : i32
    return %c0_i32, %c0_i32_0 : i32, i32
  }
  func.func @transform_4(%arg0: i32) -> (i32, i32) {
    %c0_i32 = arith.constant 0 : i32
    %c0_i32_0 = arith.constant 0 : i32
    %c0_i32_1 = arith.constant 0 : i32
    return %c0_i32, %c0_i32_0 : i32, i32
  }
  func.func @transform_5(%arg0: i32) -> (i32, i32) {
    %c0_i32 = arith.constant 0 : i32
    %c0_i32_0 = arith.constant 0 : i32
    %c0_i32_1 = arith.constant 0 : i32
    return %c0_i32, %c0_i32_0 : i32, i32
  }
  func.func @transform_6(%arg0: i32) -> (i32, i32) {
    %c0_i32 = arith.constant 0 : i32
    %c0_i32_0 = arith.constant 0 : i32
    %c0_i32_1 = arith.constant 0 : i32
    return %c0_i32, %c0_i32_0 : i32, i32
  }
  func.func @transform_7(%arg0: i32) -> (i32, i32) {
    %c0_i32 = arith.constant 0 : i32
    %c0_i32_0 = arith.constant 0 : i32
    %c0_i32_1 = arith.constant 0 : i32
    return %c0_i32, %c0_i32_0 : i32, i32
  }
  func.func @transform_8(%arg0: i32) -> (i32, i32) {
    %c0_i32 = arith.constant 0 : i32
    %c0_i32_0 = arith.constant 0 : i32
    %c0_i32_1 = arith.constant 0 : i32
    return %c0_i32, %c0_i32_0 : i32, i32
  }
  func.func @transform_9(%arg0: i32) -> (i32, i32) {
    %c0_i32 = arith.constant 0 : i32
    %c0_i32_0 = arith.constant 0 : i32
    %c0_i32_1 = arith.constant 0 : i32
    return %c0_i32, %c0_i32_0 : i32, i32
  }
  func.func @transform_10(%arg0: i32) -> (i32, i32) {
    %c0_i32 = arith.constant 0 : i32
    %c0_i32_0 = arith.constant 0 : i32
    %c0_i32_1 = arith.constant 0 : i32
    return %c0_i32, %c0_i32_0 : i32, i32
  }
  func.func @transform_11(%arg0: i32) -> (i32, i32) {
    %c0_i32 = arith.constant 0 : i32
    %c0_i32_0 = arith.constant 0 : i32
    %c0_i32_1 = arith.constant 0 : i32
    return %c0_i32, %c0_i32_0 : i32, i32
  }
}

module attributes {stable_mosaic.version = 11 : i64} {
  func.func @kernel(%arg0: i32, %arg1: memref<40x32xf32, #tpu.memory_space<vmem>>, %arg2: memref<6x40x32xf32, #tpu.memory_space<vmem>>, %arg3: memref<40x32xf32, #tpu.memory_space<vmem>>) attributes {dimension_semantics = [#tpu.dimension_semantics<parallel>], iteration_bounds = array<i64: 1>, scalar_prefetch = 0 : i64, scratch_operands = 0 : i64, tpu.core_type = #tpu.core_type<tc>, window_params = [{transform_indices = @transform_0, window_bounds = array<i64: 40, 32>}, {transform_indices = @transform_1, window_bounds = array<i64: 6, 40, 32>}, {transform_indices = @transform_2, window_bounds = array<i64: 40, 32>}]} {
    %c0 = arith.constant 0 : index
    %c0_0 = arith.constant 0 : index
    %0 = vector.load %arg1[%c0, %c0_0] : memref<40x32xf32, #tpu.memory_space<vmem>>, vector<40x32xf32>
    %c0_1 = arith.constant 0 : index
    %c0_2 = arith.constant 0 : index
    %c0_3 = arith.constant 0 : index
    %1 = vector.load %arg2[%c0_1, %c0_2, %c0_3] : memref<6x40x32xf32, #tpu.memory_space<vmem>>, vector<1x40x32xf32>
    %2 = vector.shape_cast %1 : vector<1x40x32xf32> to vector<40x32xf32>
    %3 = arith.mulf %2, %2 : vector<40x32xf32>
    %cst = arith.constant dense<0.000000e+00> : vector<40xf32>
    %4 = vector.multi_reduction <add>, %3, %cst [1] : vector<40x32xf32> to vector<40xf32>
    %5 = vector.shape_cast %4 : vector<40xf32> to vector<40x1xf32>
    %cst_4 = arith.constant 1.000000e-24 : f32
    %6 = vector.broadcast %cst_4 : f32 to vector<40x1xf32>
    %7 = arith.maximumf %5, %6 : vector<40x1xf32>
    %8 = math.rsqrt %7 : vector<40x1xf32>
    %9 = vector.broadcast %8 : vector<40x1xf32> to vector<40x32xf32>
    %10 = arith.mulf %2, %9 : vector<40x32xf32>
    %cst_5 = arith.constant 2.000000e-02 : f32
    %11 = vector.broadcast %cst_5 : f32 to vector<40x32xf32>
    %12 = arith.mulf %11, %10 : vector<40x32xf32>
    %13 = arith.addf %0, %12 : vector<40x32xf32>
    %c1 = arith.constant 1 : index
    %c0_6 = arith.constant 0 : index
    %c0_7 = arith.constant 0 : index
    %14 = vector.load %arg2[%c1, %c0_6, %c0_7] : memref<6x40x32xf32, #tpu.memory_space<vmem>>, vector<1x40x32xf32>
    %15 = vector.shape_cast %14 : vector<1x40x32xf32> to vector<40x32xf32>
    %16 = arith.mulf %15, %15 : vector<40x32xf32>
    %cst_8 = arith.constant dense<0.000000e+00> : vector<40xf32>
    %17 = vector.multi_reduction <add>, %16, %cst_8 [1] : vector<40x32xf32> to vector<40xf32>
    %18 = vector.shape_cast %17 : vector<40xf32> to vector<40x1xf32>
    %cst_9 = arith.constant 1.000000e-24 : f32
    %19 = vector.broadcast %cst_9 : f32 to vector<40x1xf32>
    %20 = arith.maximumf %18, %19 : vector<40x1xf32>
    %21 = math.rsqrt %20 : vector<40x1xf32>
    %22 = vector.broadcast %21 : vector<40x1xf32> to vector<40x32xf32>
    %23 = arith.mulf %15, %22 : vector<40x32xf32>
    %cst_10 = arith.constant 2.000000e-02 : f32
    %24 = vector.broadcast %cst_10 : f32 to vector<40x32xf32>
    %25 = arith.mulf %24, %23 : vector<40x32xf32>
    %26 = arith.addf %13, %25 : vector<40x32xf32>
    %c2 = arith.constant 2 : index
    %c0_11 = arith.constant 0 : index
    %c0_12 = arith.constant 0 : index
    %27 = vector.load %arg2[%c2, %c0_11, %c0_12] : memref<6x40x32xf32, #tpu.memory_space<vmem>>, vector<1x40x32xf32>
    %28 = vector.shape_cast %27 : vector<1x40x32xf32> to vector<40x32xf32>
    %29 = arith.mulf %28, %28 : vector<40x32xf32>
    %cst_13 = arith.constant dense<0.000000e+00> : vector<40xf32>
    %30 = vector.multi_reduction <add>, %29, %cst_13 [1] : vector<40x32xf32> to vector<40xf32>
    %31 = vector.shape_cast %30 : vector<40xf32> to vector<40x1xf32>
    %cst_14 = arith.constant 1.000000e-24 : f32
    %32 = vector.broadcast %cst_14 : f32 to vector<40x1xf32>
    %33 = arith.maximumf %31, %32 : vector<40x1xf32>
    %34 = math.rsqrt %33 : vector<40x1xf32>
    %35 = vector.broadcast %34 : vector<40x1xf32> to vector<40x32xf32>
    %36 = arith.mulf %28, %35 : vector<40x32xf32>
    %cst_15 = arith.constant 2.000000e-02 : f32
    %37 = vector.broadcast %cst_15 : f32 to vector<40x32xf32>
    %38 = arith.mulf %37, %36 : vector<40x32xf32>
    %39 = arith.addf %26, %38 : vector<40x32xf32>
    %c3 = arith.constant 3 : index
    %c0_16 = arith.constant 0 : index
    %c0_17 = arith.constant 0 : index
    %40 = vector.load %arg2[%c3, %c0_16, %c0_17] : memref<6x40x32xf32, #tpu.memory_space<vmem>>, vector<1x40x32xf32>
    %41 = vector.shape_cast %40 : vector<1x40x32xf32> to vector<40x32xf32>
    %42 = arith.mulf %41, %41 : vector<40x32xf32>
    %cst_18 = arith.constant dense<0.000000e+00> : vector<40xf32>
    %43 = vector.multi_reduction <add>, %42, %cst_18 [1] : vector<40x32xf32> to vector<40xf32>
    %44 = vector.shape_cast %43 : vector<40xf32> to vector<40x1xf32>
    %cst_19 = arith.constant 1.000000e-24 : f32
    %45 = vector.broadcast %cst_19 : f32 to vector<40x1xf32>
    %46 = arith.maximumf %44, %45 : vector<40x1xf32>
    %47 = math.rsqrt %46 : vector<40x1xf32>
    %48 = vector.broadcast %47 : vector<40x1xf32> to vector<40x32xf32>
    %49 = arith.mulf %41, %48 : vector<40x32xf32>
    %cst_20 = arith.constant 5.000000e-03 : f32
    %50 = vector.broadcast %cst_20 : f32 to vector<40x32xf32>
    %51 = arith.mulf %50, %49 : vector<40x32xf32>
    %52 = arith.addf %39, %51 : vector<40x32xf32>
    %c4 = arith.constant 4 : index
    %c0_21 = arith.constant 0 : index
    %c0_22 = arith.constant 0 : index
    %53 = vector.load %arg2[%c4, %c0_21, %c0_22] : memref<6x40x32xf32, #tpu.memory_space<vmem>>, vector<1x40x32xf32>
    %54 = vector.shape_cast %53 : vector<1x40x32xf32> to vector<40x32xf32>
    %55 = arith.mulf %54, %54 : vector<40x32xf32>
    %cst_23 = arith.constant dense<0.000000e+00> : vector<40xf32>
    %56 = vector.multi_reduction <add>, %55, %cst_23 [1] : vector<40x32xf32> to vector<40xf32>
    %57 = vector.shape_cast %56 : vector<40xf32> to vector<40x1xf32>
    %cst_24 = arith.constant 1.000000e-24 : f32
    %58 = vector.broadcast %cst_24 : f32 to vector<40x1xf32>
    %59 = arith.maximumf %57, %58 : vector<40x1xf32>
    %60 = math.rsqrt %59 : vector<40x1xf32>
    %61 = vector.broadcast %60 : vector<40x1xf32> to vector<40x32xf32>
    %62 = arith.mulf %54, %61 : vector<40x32xf32>
    %cst_25 = arith.constant 5.000000e-03 : f32
    %63 = vector.broadcast %cst_25 : f32 to vector<40x32xf32>
    %64 = arith.mulf %63, %62 : vector<40x32xf32>
    %65 = arith.addf %52, %64 : vector<40x32xf32>
    %c5 = arith.constant 5 : index
    %c0_26 = arith.constant 0 : index
    %c0_27 = arith.constant 0 : index
    %66 = vector.load %arg2[%c5, %c0_26, %c0_27] : memref<6x40x32xf32, #tpu.memory_space<vmem>>, vector<1x40x32xf32>
    %67 = vector.shape_cast %66 : vector<1x40x32xf32> to vector<40x32xf32>
    %68 = arith.mulf %67, %67 : vector<40x32xf32>
    %cst_28 = arith.constant dense<0.000000e+00> : vector<40xf32>
    %69 = vector.multi_reduction <add>, %68, %cst_28 [1] : vector<40x32xf32> to vector<40xf32>
    %70 = vector.shape_cast %69 : vector<40xf32> to vector<40x1xf32>
    %cst_29 = arith.constant 1.000000e-24 : f32
    %71 = vector.broadcast %cst_29 : f32 to vector<40x1xf32>
    %72 = arith.maximumf %70, %71 : vector<40x1xf32>
    %73 = math.rsqrt %72 : vector<40x1xf32>
    %74 = vector.broadcast %73 : vector<40x1xf32> to vector<40x32xf32>
    %75 = arith.mulf %67, %74 : vector<40x32xf32>
    %cst_30 = arith.constant 5.000000e-03 : f32
    %76 = vector.broadcast %cst_30 : f32 to vector<40x32xf32>
    %77 = arith.mulf %76, %75 : vector<40x32xf32>
    %78 = arith.addf %65, %77 : vector<40x32xf32>
    %c0_31 = arith.constant 0 : index
    %c0_32 = arith.constant 0 : index
    %79 = vector.load %arg3[%c0_31, %c0_32] : memref<40x32xf32, #tpu.memory_space<vmem>>, vector<40x32xf32>
    tpu.vector_store %arg3[%c0_31, %c0_32], %78 {strides = array<i32>} : memref<40x32xf32, #tpu.memory_space<vmem>>, vector<40x32xf32>,
    return
  }
  func.func @transform_0(%arg0: i32) -> (i32, i32) {
    %c0_i32 = arith.constant 0 : i32
    %c0_i32_0 = arith.constant 0 : i32
    return %arg0, %c0_i32 : i32, i32
  }
  func.func @transform_1(%arg0: i32) -> (i32, i32, i32) {
    %c0_i32 = arith.constant 0 : i32
    %c0_i32_0 = arith.constant 0 : i32
    %c0_i32_1 = arith.constant 0 : i32
    return %c0_i32, %arg0, %c0_i32_0 : i32, i32, i32
  }
  func.func @transform_2(%arg0: i32) -> (i32, i32) {
    %c0_i32 = arith.constant 0 : i32
    %c0_i32_0 = arith.constant 0 : i32
    return %arg0, %c0_i32 : i32, i32
  }
}

</mosaic_0001>

<llo_original>
// kernel: mm_model_forward.11
$region0: #{mm_model_forward.11}
  #allocation0 [shape = 'u32[]', space=smem, size = 0x4, offset = 0x4, fixed_abs, tag = 'smem constant byte address 0x4 - core index']
  #allocation1 [shape = 'u32[144,128]{1,0:T(1,128)}', space=vmem, size = 0x12000, scoped, tag = 'internal scratch']
  %s0 = inlined_call_operand.vmem [shape: bf16[32,128], index: 0, kind: input, shape index: {}]
  %s1 = inlined_call_operand.vmem [shape: bf16[128,32], index: 1, kind: input, shape index: {}]
  %s2 = inlined_call_operand.vmem [shape: f32[1,32], index: 2, kind: input, shape index: {}]
  %s3 = inlined_call_operand.vmem [shape: f32[32,32], index: 3, kind: output, shape index: {}]
  %s4 = sld [smem:[#allocation0]]
  $region22: #{mm_model_forward.11} parent=0
    _
  %s6 = ssub.s32 1, %s4
  %s7 = scalar_select 0, %s6, %s4
  // Predicated region
  $region2: #{mm_model_forward.11} parent=0 // pred_check
    _
  $region3: #{mm_model_forward.11} parent=0 // pred_check_branch
    %9 = sbr.rel (0) target = $region5
  $region4: #{mm_model_forward.11} parent=0 // pred_region
    _
  $region5: #{mm_model_forward.11} parent=0 // pred_fallthru
    _
  // Predicated region
  $region6: #{mm_model_forward.11} parent=0 // pred_check
    _
  $region7: #{mm_model_forward.11} parent=0 // pred_check_branch
    %11 = sbr.rel (0) target = $region9
  $region8: #{mm_model_forward.11} parent=0 // pred_region
    _
  $region9: #{mm_model_forward.11} parent=0 // pred_fallthru
    _
  // Predicated region
  $region10: #{mm_model_forward.11} parent=0 // pred_check
    _
  $region11: #{mm_model_forward.11} parent=0 // pred_check_branch
    %13 = sbr.rel (0) target = $region13
  $region12: #{mm_model_forward.11} parent=0 // pred_region
    _
  $region13: #{mm_model_forward.11} parent=0 // pred_fallthru
    _
  %v15 = vld [vmem:[%s0] sm:$0xf]
  %v16 = vld [vmem:[%s0 + $0x4] sm:$0xf]
  %v17 = vld [vmem:[%s0 + $0x8] sm:$0xf]
  %v18 = vld [vmem:[%s0 + $0xc] sm:$0xf]
  %v19 = vld [vmem:[%s1] sm:$0xf]
  %v20 = vld [vmem:[%s1 + $0x4] sm:$0xf]
  %v21 = vld [vmem:[%s1 + $0x8] sm:$0xf]
  %v22 = vld [vmem:[%s1 + $0xc] sm:$0xf]
  %v23 = vld [vmem:[%s1 + $0x10] sm:$0xf]
  %v24 = vld [vmem:[%s1 + $0x14] sm:$0xf]
  %v25 = vld [vmem:[%s1 + $0x18] sm:$0xf]
  %v26 = vld [vmem:[%s1 + $0x1c] sm:$0xf]
  %v27 = vld [vmem:[%s1 + $0x20] sm:$0xf]
  %v28 = vld [vmem:[%s1 + $0x24] sm:$0xf]
  %v29 = vld [vmem:[%s1 + $0x28] sm:$0xf]
  %v30 = vld [vmem:[%s1 + $0x2c] sm:$0xf]
  %v31 = vld [vmem:[%s1 + $0x30] sm:$0xf]
  %v32 = vld [vmem:[%s1 + $0x34] sm:$0xf]
  %v33 = vld [vmem:[%s1 + $0x38] sm:$0xf]
  %v34 = vld [vmem:[%s1 + $0x3c] sm:$0xf]
  %v35 = vld [vmem:[%s2] sm:$0x1]
  %v37 = vlaneseq
  %v38 = vshrl.u32 %v37, 7
  %v39 = vsub.s32 0, %v38
  %v40 = vrot.slane %v35, %v39
  %v46 = vunpack.c.l.b16 %v15
  %v47 = vunpack.c.l.b16 %v16
  %v48 = vunpack.c.l.b16 %v17
  %v49 = vunpack.c.l.b16 %v18
  %v50 = vpack.c.b16 %v47, %v46
  %v51 = vpack.c.b16 %v49, %v48
  %v70 = vunpack.c.l.b16 %v19
  %v71 = vunpack.c.l.b16 %v20
  %v72 = vunpack.c.l.b16 %v21
  %v73 = vunpack.c.l.b16 %v22
  %v74 = vunpack.c.l.b16 %v23
  %v75 = vunpack.c.l.b16 %v24
  %v76 = vunpack.c.l.b16 %v25
  %v77 = vunpack.c.l.b16 %v26
  %v78 = vunpack.c.l.b16 %v27
  %v79 = vunpack.c.l.b16 %v28
  %v80 = vunpack.c.l.b16 %v29
  %v81 = vunpack.c.l.b16 %v30
  %v82 = vunpack.c.l.b16 %v31
  %v83 = vunpack.c.l.b16 %v32
  %v84 = vunpack.c.l.b16 %v33
  %v85 = vunpack.c.l.b16 %v34
  %v86 = vpack.c.b16 %v71, %v70
  %v87 = vpack.c.b16 %v73, %v72
  %v88 = vpack.c.b16 %v75, %v74
  %v89 = vpack.c.b16 %v77, %v76
  %v90 = vpack.c.b16 %v79, %v78
  %v91 = vpack.c.b16 %v81, %v80
  %v92 = vpack.c.b16 %v83, %v82
  %v93 = vpack.c.b16 %v85, %v84
  %102 = vmatprep.subr.bf16.mxu0 0
  %103 = vmatpush1.bf16.msra.mxu0 %v86
  %104 = vmatprep.subr.bf16.mxu0 0
  %105 = vmatpush1.bf16.msra.mxu0 %v87
  %106 = vmatprep.subr.bf16.mxu0 0
  %107 = vmatpush1.bf16.msra.mxu0 %v88
  %108 = vmatprep.subr.bf16.mxu0 0
  %109 = vmatpush1.bf16.msra.mxu0 %v89
  %110 = vmatprep.subr.bf16.mxu0 0
  %111 = vmatpush1.bf16.msra.mxu0 %v90
  %112 = vmatprep.subr.bf16.mxu0 0
  %113 = vmatpush1.bf16.msra.mxu0 %v91
  %114 = vmatprep.subr.bf16.mxu0 0
  %115 = vmatpush1.bf16.msra.mxu0 %v92
  %116 = vmatprep.subr.bf16.mxu0 0
  %117 = vmatpush1.bf16.msra.mxu0 %v93
  %118 = vmatprep.subr.bf16.mxu0 0
  %119 = vmatpush1.bf16.msra.mxu0 0
  %120 = vmatprep.subr.bf16.mxu0 0
  %121 = vmatpush1.bf16.msra.mxu0 0
  %122 = vmatprep.subr.bf16.mxu0 0
  %123 = vmatpush1.bf16.msra.mxu0 0
  %124 = vmatprep.subr.bf16.mxu0 0
  %125 = vmatpush1.bf16.msra.mxu0 0
  %126 = vmatprep.subr.bf16.mxu0 0
  %127 = vmatpush1.bf16.msra.mxu0 0
  %128 = vmatprep.subr.bf16.mxu0 0
  %129 = vmatpush1.bf16.msra.mxu0 0
  %130 = vmatprep.subr.bf16.mxu0 0
  %131 = vmatpush1.bf16.msra.mxu0 0
  %132 = vmatprep.subr.bf16.mxu0 0
  %133 = vmatpush1.bf16.msra.mxu0 0
  %134 = vmatprep.mubr.bf16.mxu0 0
  %135 = vmatmul.mubr.bf16.gmra.mrb[0].mxu0 %v50
  %v136 = vpop.f32.mrb[0].mxu0
  %v137 = vadd.f32 %v40, %v136
  %v138 = vpop.f32.mrb[0].mxu0
  %v139 = vpop.f32.mrb[0].mxu0
  %v140 = vadd.f32 %v40, %v139
  %v141 = vpop.f32.mrb[0].mxu0
  %142 = vmatprep.mubr.bf16.mxu0 0
  %143 = vmatmul.mubr.bf16.gmra.mrb[0].mxu0 %v51
  %v144 = vpop.f32.mrb[0].mxu0
  %v145 = vadd.f32 %v40, %v144
  %v146 = vpop.f32.mrb[0].mxu0
  %v147 = vpop.f32.mrb[0].mxu0
  %v148 = vadd.f32 %v40, %v147
  %v149 = vpop.f32.mrb[0].mxu0
  %150 = vdwg.mxu0
  %vm151 = vcmask 261120
  %152 = vst.msk [vmem:[%s3] sm:$0xff] %vm151, %v137
  %153 = vst.msk [vmem:[%s3 + $0x8] sm:$0xff] %vm151, %v140
  %154 = vst.msk [vmem:[%s3 + $0x10] sm:$0xff] %vm151, %v145
  %155 = vst.msk [vmem:[%s3 + $0x18] sm:$0xff] %vm151, %v148
  // Predicated region
  $region14: #{mm_model_forward.11} parent=0 // pred_check
    _
  $region15: #{mm_model_forward.11} parent=0 // pred_check_branch
    %157 = sbr.rel (0) target = $region17
  $region16: #{mm_model_forward.11} parent=0 // pred_region
    _
  $region17: #{mm_model_forward.11} parent=0 // pred_fallthru
    _
  // Predicated region
  $region18: #{mm_model_forward.11} parent=0 // pred_check
    _
  $region19: #{mm_model_forward.11} parent=0 // pred_check_branch
    %159 = sbr.rel (0) target = $region21
  $region20: #{mm_model_forward.11} parent=0 // pred_region
    _
  $region21: #{mm_model_forward.11} parent=0 // pred_fallthru
    _

// kernel: mm_model_forward.10
$region0: #{mm_model_forward.10}
  #allocation0 [shape = 'u32[]', space=smem, size = 0x4, offset = 0x4, fixed_abs, tag = 'smem constant byte address 0x4 - core index']
  #allocation1 [shape = 'u32[144,128]{1,0:T(1,128)}', space=vmem, size = 0x12000, scoped, tag = 'internal scratch']
  %s0 = inlined_call_operand.vmem [shape: bf16[48,128], index: 0, kind: input, shape index: {}]
  %s1 = inlined_call_operand.vmem [shape: bf16[128,32], index: 1, kind: input, shape index: {}]
  %s2 = inlined_call_operand.vmem [shape: f32[1,32], index: 2, kind: input, shape index: {}]
  %s3 = inlined_call_operand.vmem [shape: f32[48,32], index: 3, kind: output, shape index: {}]
  %s4 = sld [smem:[#allocation0]]
  $region22: #{mm_model_forward.10} parent=0
    _
  %s6 = ssub.s32 1, %s4
  %s7 = scalar_select 0, %s6, %s4
  // Predicated region
  $region2: #{mm_model_forward.10} parent=0 // pred_check
    _
  $region3: #{mm_model_forward.10} parent=0 // pred_check_branch
    %9 = sbr.rel (0) target = $region5
  $region4: #{mm_model_forward.10} parent=0 // pred_region
    _
  $region5: #{mm_model_forward.10} parent=0 // pred_fallthru
    _
  // Predicated region
  $region6: #{mm_model_forward.10} parent=0 // pred_check
    _
  $region7: #{mm_model_forward.10} parent=0 // pred_check_branch
    %11 = sbr.rel (0) target = $region9
  $region8: #{mm_model_forward.10} parent=0 // pred_region
    _
  $region9: #{mm_model_forward.10} parent=0 // pred_fallthru
    _
  // Predicated region
  $region10: #{mm_model_forward.10} parent=0 // pred_check
    _
  $region11: #{mm_model_forward.10} parent=0 // pred_check_branch
    %13 = sbr.rel (0) target = $region13
  $region12: #{mm_model_forward.10} parent=0 // pred_region
    _
  $region13: #{mm_model_forward.10} parent=0 // pred_fallthru
    _
  %v15 = vld [vmem:[%s0] sm:$0xf]
  %v16 = vld [vmem:[%s0 + $0x4] sm:$0xf]
  %v17 = vld [vmem:[%s0 + $0x8] sm:$0xf]
  %v18 = vld [vmem:[%s0 + $0xc] sm:$0xf]
  %v19 = vld [vmem:[%s0 + $0x10] sm:$0xf]
  %v20 = vld [vmem:[%s0 + $0x14] sm:$0xf]
  %v21 = vld [vmem:[%s1] sm:$0xf]
  %v22 = vld [vmem:[%s1 + $0x4] sm:$0xf]
  %v23 = vld [vmem:[%s1 + $0x8] sm:$0xf]
  %v24 = vld [vmem:[%s1 + $0xc] sm:$0xf]
  %v25 = vld [vmem:[%s1 + $0x10] sm:$0xf]
  %v26 = vld [vmem:[%s1 + $0x14] sm:$0xf]
  %v27 = vld [vmem:[%s1 + $0x18] sm:$0xf]
  %v28 = vld [vmem:[%s1 + $0x1c] sm:$0xf]
  %v29 = vld [vmem:[%s1 + $0x20] sm:$0xf]
  %v30 = vld [vmem:[%s1 + $0x24] sm:$0xf]
  %v31 = vld [vmem:[%s1 + $0x28] sm:$0xf]
  %v32 = vld [vmem:[%s1 + $0x2c] sm:$0xf]
  %v33 = vld [vmem:[%s1 + $0x30] sm:$0xf]
  %v34 = vld [vmem:[%s1 + $0x34] sm:$0xf]
  %v35 = vld [vmem:[%s1 + $0x38] sm:$0xf]
  %v36 = vld [vmem:[%s1 + $0x3c] sm:$0xf]
  %v37 = vld [vmem:[%s2] sm:$0x1]
  %v39 = vlaneseq
  %v40 = vshrl.u32 %v39, 7
  %v41 = vsub.s32 0, %v40
  %v42 = vrot.slane %v37, %v41
  %v50 = vunpack.c.l.b16 %v15
  %v51 = vunpack.c.l.b16 %v16
  %v52 = vunpack.c.l.b16 %v17
  %v53 = vunpack.c.l.b16 %v18
  %v54 = vunpack.c.l.b16 %v19
  %v55 = vunpack.c.l.b16 %v20
  %v56 = vpack.c.b16 %v51, %v50
  %v57 = vpack.c.b16 %v53, %v52
  %v58 = vpack.c.b16 %v55, %v54
  %v78 = vunpack.c.l.b16 %v21
  %v79 = vunpack.c.l.b16 %v22
  %v80 = vunpack.c.l.b16 %v23
  %v81 = vunpack.c.l.b16 %v24
  %v82 = vunpack.c.l.b16 %v25
  %v83 = vunpack.c.l.b16 %v26
  %v84 = vunpack.c.l.b16 %v27
  %v85 = vunpack.c.l.b16 %v28
  %v86 = vunpack.c.l.b16 %v29
  %v87 = vunpack.c.l.b16 %v30
  %v88 = vunpack.c.l.b16 %v31
  %v89 = vunpack.c.l.b16 %v32
  %v90 = vunpack.c.l.b16 %v33
  %v91 = vunpack.c.l.b16 %v34
  %v92 = vunpack.c.l.b16 %v35
  %v93 = vunpack.c.l.b16 %v36
  %v94 = vpack.c.b16 %v79, %v78
  %v95 = vpack.c.b16 %v81, %v80
  %v96 = vpack.c.b16 %v83, %v82
  %v97 = vpack.c.b16 %v85, %v84
  %v98 = vpack.c.b16 %v87, %v86
  %v99 = vpack.c.b16 %v89, %v88
  %v100 = vpack.c.b16 %v91, %v90
  %v101 = vpack.c.b16 %v93, %v92
  %110 = vmatprep.subr.bf16.mxu0 0
  %111 = vmatpush1.bf16.msra.mxu0 %v94
  %112 = vmatprep.subr.bf16.mxu0 0
  %113 = vmatpush1.bf16.msra.mxu0 %v95
  %114 = vmatprep.subr.bf16.mxu0 0
  %115 = vmatpush1.bf16.msra.mxu0 %v96
  %116 = vmatprep.subr.bf16.mxu0 0
  %117 = vmatpush1.bf16.msra.mxu0 %v97
  %118 = vmatprep.subr.bf16.mxu0 0
  %119 = vmatpush1.bf16.msra.mxu0 %v98
  %120 = vmatprep.subr.bf16.mxu0 0
  %121 = vmatpush1.bf16.msra.mxu0 %v99
  %122 = vmatprep.subr.bf16.mxu0 0
  %123 = vmatpush1.bf16.msra.mxu0 %v100
  %124 = vmatprep.subr.bf16.mxu0 0
  %125 = vmatpush1.bf16.msra.mxu0 %v101
  %126 = vmatprep.subr.bf16.mxu0 0
  %127 = vmatpush1.bf16.msra.mxu0 0
  %128 = vmatprep.subr.bf16.mxu0 0
  %129 = vmatpush1.bf16.msra.mxu0 0
  %130 = vmatprep.subr.bf16.mxu0 0
  %131 = vmatpush1.bf16.msra.mxu0 0
  %132 = vmatprep.subr.bf16.mxu0 0
  %133 = vmatpush1.bf16.msra.mxu0 0
  %134 = vmatprep.subr.bf16.mxu0 0
  %135 = vmatpush1.bf16.msra.mxu0 0
  %136 = vmatprep.subr.bf16.mxu0 0
  %137 = vmatpush1.bf16.msra.mxu0 0
  %138 = vmatprep.subr.bf16.mxu0 0
  %139 = vmatpush1.bf16.msra.mxu0 0
  %140 = vmatprep.subr.bf16.mxu0 0
  %141 = vmatpush1.bf16.msra.mxu0 0
  %142 = vmatprep.mubr.bf16.mxu0 0
  %143 = vmatmul.mubr.bf16.gmra.mrb[0].mxu0 %v56
  %v144 = vpop.f32.mrb[0].mxu0
  %v145 = vadd.f32 %v42, %v144
  %v146 = vpop.f32.mrb[0].mxu0
  %v147 = vpop.f32.mrb[0].mxu0
  %v148 = vadd.f32 %v42, %v147
  %v149 = vpop.f32.mrb[0].mxu0
  %150 = vmatprep.mubr.bf16.mxu0 0
  %151 = vmatmul.mubr.bf16.gmra.mrb[0].mxu0 %v57
  %v152 = vpop.f32.mrb[0].mxu0
  %v153 = vadd.f32 %v42, %v152
  %v154 = vpop.f32.mrb[0].mxu0
  %v155 = vpop.f32.mrb[0].mxu0
  %v156 = vadd.f32 %v42, %v155
  %v157 = vpop.f32.mrb[0].mxu0
  %158 = vmatprep.mubr.bf16.mxu0 0
  %159 = vmatmul.mubr.bf16.gmra.mrb[0].mxu0 %v58
  %v160 = vpop.f32.mrb[0].mxu0
  %v161 = vadd.f32 %v42, %v160
  %v162 = vpop.f32.mrb[0].mxu0
  %v163 = vpop.f32.mrb[0].mxu0
  %v164 = vadd.f32 %v42, %v163
  %v165 = vpop.f32.mrb[0].mxu0
  %166 = vdwg.mxu0
  %vm167 = vcmask 261120
  %168 = vst.msk [vmem:[%s3] sm:$0xff] %vm167, %v145
  %169 = vst.msk [vmem:[%s3 + $0x8] sm:$0xff] %vm167, %v148
  %170 = vst.msk [vmem:[%s3 + $0x10] sm:$0xff] %vm167, %v153
  %171 = vst.msk [vmem:[%s3 + $0x18] sm:$0xff] %vm167, %v156
  %172 = vst.msk [vmem:[%s3 + $0x20] sm:$0xff] %vm167, %v161
  %173 = vst.msk [vmem:[%s3 + $0x28] sm:$0xff] %vm167, %v164
  // Predicated region
  $region14: #{mm_model_forward.10} parent=0 // pred_check
    _
  $region15: #{mm_model_forward.10} parent=0 // pred_check_branch
    %175 = sbr.rel (0) target = $region17
  $region16: #{mm_model_forward.10} parent=0 // pred_region
    _
  $region17: #{mm_model_forward.10} parent=0 // pred_fallthru
    _
  // Predicated region
  $region18: #{mm_model_forward.10} parent=0 // pred_check
    _
  $region19: #{mm_model_forward.10} parent=0 // pred_check_branch
    %177 = sbr.rel (0) target = $region21
  $region20: #{mm_model_forward.10} parent=0 // pred_region
    _
  $region21: #{mm_model_forward.10} parent=0 // pred_fallthru
    _

// kernel: mm_model_forward.9
$region0: #{mm_model_forward.9}
  #allocation0 [shape = 'u32[]', space=smem, size = 0x4, offset = 0x4, fixed_abs, tag = 'smem constant byte address 0x4 - core index']
  #allocation1 [shape = 'u32[144,128]{1,0:T(1,128)}', space=vmem, size = 0x12000, scoped, tag = 'internal scratch']
  %s0 = inlined_call_operand.vmem [shape: bf16[16,1536], index: 0, kind: input, shape index: {}]
  %s1 = inlined_call_operand.vmem [shape: bf16[1536,32], index: 1, kind: input, shape index: {}]
  %s2 = inlined_call_operand.vmem [shape: f32[1,32], index: 2, kind: input, shape index: {}]
  %s3 = inlined_call_operand.vmem [shape: f32[16,32], index: 3, kind: output, shape index: {}]
  %s4 = sld [smem:[#allocation0]]
  $region22: #{mm_model_forward.9} parent=0
    _
  %s6 = ssub.s32 1, %s4
  %s7 = scalar_select 0, %s6, %s4
  // Predicated region
  $region2: #{mm_model_forward.9} parent=0 // pred_check
    _
  $region3: #{mm_model_forward.9} parent=0 // pred_check_branch
    %9 = sbr.rel (0) target = $region5
  $region4: #{mm_model_forward.9} parent=0 // pred_region
    _
  $region5: #{mm_model_forward.9} parent=0 // pred_fallthru
    _
  // Predicated region
  $region6: #{mm_model_forward.9} parent=0 // pred_check
    _
  $region7: #{mm_model_forward.9} parent=0 // pred_check_branch
    %11 = sbr.rel (0) target = $region9
  $region8: #{mm_model_forward.9} parent=0 // pred_region
    _
  $region9: #{mm_model_forward.9} parent=0 // pred_fallthru
    _
  // Predicated region
  $region10: #{mm_model_forward.9} parent=0 // pred_check
    _
  $region11: #{mm_model_forward.9} parent=0 // pred_check_branch
    %13 = sbr.rel (0) target = $region13
  $region12: #{mm_model_forward.9} parent=0 // pred_region
    _
  $region13: #{mm_model_forward.9} parent=0 // pred_fallthru
    _
  %v15 = vld [vmem:[%s0] sm:$0xff]
  %v16 = vld [vmem:[%s0 + $0x8] sm:$0xff]
  %v17 = vld [vmem:[%s0 + $0x10] sm:$0xff]
  %v18 = vld [vmem:[%s0 + $0x18] sm:$0xff]
  %v19 = vld [vmem:[%s0 + $0x20] sm:$0xff]
  %v20 = vld [vmem:[%s0 + $0x28] sm:$0xff]
  %v21 = vld [vmem:[%s0 + $0x30] sm:$0xff]
  %v22 = vld [vmem:[%s0 + $0x38] sm:$0xff]
  %v23 = vld [vmem:[%s0 + $0x40] sm:$0xff]
  %v24 = vld [vmem:[%s0 + $0x48] sm:$0xff]
  %v25 = vld [vmem:[%s0 + $0x50] sm:$0xff]
  %v26 = vld [vmem:[%s0 + $0x58] sm:$0xff]
  %v27 = vld [vmem:[%s1] sm:$0xf]
  %v28 = vld [vmem:[%s1 + $0x4] sm:$0xf]
  %v29 = vld [vmem:[%s1 + $0x8] sm:$0xf]
  %v30 = vld [vmem:[%s1 + $0xc] sm:$0xf]
  %v31 = vld [vmem:[%s1 + $0x10] sm:$0xf]
  %v32 = vld [vmem:[%s1 + $0x14] sm:$0xf]
  %v33 = vld [vmem:[%s1 + $0x18] sm:$0xf]
  %v34 = vld [vmem:[%s1 + $0x1c] sm:$0xf]
  %v35 = vld [vmem:[%s1 + $0x20] sm:$0xf]
  %v36 = vld [vmem:[%s1 + $0x24] sm:$0xf]
  %v37 = vld [vmem:[%s1 + $0x28] sm:$0xf]
  %v38 = vld [vmem:[%s1 + $0x2c] sm:$0xf]
  %v39 = vld [vmem:[%s1 + $0x30] sm:$0xf]
  %v40 = vld [vmem:[%s1 + $0x34] sm:$0xf]
  %v41 = vld [vmem:[%s1 + $0x38] sm:$0xf]
  %v42 = vld [vmem:[%s1 + $0x3c] sm:$0xf]
  %v43 = vld [vmem:[%s1 + $0x40] sm:$0xf]
  %v44 = vld [vmem:[%s1 + $0x44] sm:$0xf]
  %v45 = vld [vmem:[%s1 + $0x48] sm:$0xf]
  %v46 = vld [vmem:[%s1 + $0x4c] sm:$0xf]
  %v47 = vld [vmem:[%s1 + $0x50] sm:$0xf]
  %v48 = vld [vmem:[%s1 + $0x54] sm:$0xf]
  %v49 = vld [vmem:[%s1 + $0x58] sm:$0xf]
  %v50 = vld [vmem:[%s1 + $0x5c] sm:$0xf]
  %v51 = vld [vmem:[%s1 + $0x60] sm:$0xf]
  %v52 = vld [vmem:[%s1 + $0x64] sm:$0xf]
  %v53 = vld [vmem:[%s1 + $0x68] sm:$0xf]
  %v54 = vld [vmem:[%s1 + $0x6c] sm:$0xf]
  %v55 = vld [vmem:[%s1 + $0x70] sm:$0xf]
  %v56 = vld [vmem:[%s1 + $0x74] sm:$0xf]
  %v57 = vld [vmem:[%s1 + $0x78] sm:$0xf]
  %v58 = vld [vmem:[%s1 + $0x7c] sm:$0xf]
  %v59 = vld [vmem:[%s1 + $0x80] sm:$0xf]
  %v60 = vld [vmem:[%s1 + $0x84] sm:$0xf]
  %v61 = vld [vmem:[%s1 + $0x88] sm:$0xf]
  %v62 = vld [vmem:[%s1 + $0x8c] sm:$0xf]
  %v63 = vld [vmem:[%s1 + $0x90] sm:$0xf]
  %v64 = vld [vmem:[%s1 + $0x94] sm:$0xf]
  %v65 = vld [vmem:[%s1 + $0x98] sm:$0xf]
  %v66 = vld [vmem:[%s1 + $0x9c] sm:$0xf]
  %v67 = vld [vmem:[%s1 + $0xa0] sm:$0xf]
  %v68 = vld [vmem:[%s1 + $0xa4] sm:$0xf]
  %v69 = vld [vmem:[%s1 + $0xa8] sm:$0xf]
  %v70 = vld [vmem:[%s1 + $0xac] sm:$0xf]
  %v71 = vld [vmem:[%s1 + $0xb0] sm:$0xf]
  %v72 = vld [vmem:[%s1 + $0xb4] sm:$0xf]
  %v73 = vld [vmem:[%s1 + $0xb8] sm:$0xf]
  %v74 = vld [vmem:[%s1 + $0xbc] sm:$0xf]
  %v75 = vld [vmem:[%s1 + $0xc0] sm:$0xf]
  %v76 = vld [vmem:[%s1 + $0xc4] sm:$0xf]
  %v77 = vld [vmem:[%s1 + $0xc8] sm:$0xf]
  %v78 = vld [vmem:[%s1 + $0xcc] sm:$0xf]
  %v79 = vld [vmem:[%s1 + $0xd0] sm:$0xf]
  %v80 = vld [vmem:[%s1 + $0xd4] sm:$0xf]
  %v81 = vld [vmem:[%s1 + $0xd8] sm:$0xf]
  %v82 = vld [vmem:[%s1 + $0xdc] sm:$0xf]
  %v83 = vld [vmem:[%s1 + $0xe0] sm:$0xf]
  %v84 = vld [vmem:[%s1 + $0xe4] sm:$0xf]
  %v85 = vld [vmem:[%s1 + $0xe8] sm:$0xf]
  %v86 = vld [vmem:[%s1 + $0xec] sm:$0xf]
  %v87 = vld [vmem:[%s1 + $0xf0] sm:$0xf]
  %v88 = vld [vmem:[%s1 + $0xf4] sm:$0xf]
  %v89 = vld [vmem:[%s1 + $0xf8] sm:$0xf]
  %v90 = vld [vmem:[%s1 + $0xfc] sm:$0xf]
  %v91 = vld [vmem:[%s1 + $0x100] sm:$0xf]
  %v92 = vld [vmem:[%s1 + $0x104] sm:$0xf]
  %v93 = vld [vmem:[%s1 + $0x108] sm:$0xf]
  %v94 = vld [vmem:[%s1 + $0x10c] sm:$0xf]
  %v95 = vld [vmem:[%s1 + $0x110] sm:$0xf]
  %v96 = vld [vmem:[%s1 + $0x114] sm:$0xf]
  %v97 = vld [vmem:[%s1 + $0x118] sm:$0xf]
  %v98 = vld [vmem:[%s1 + $0x11c] sm:$0xf]
  %v99 = vld [vmem:[%s1 + $0x120] sm:$0xf]
  %v100 = vld [vmem:[%s1 + $0x124] sm:$0xf]
  %v101 = vld [vmem:[%s1 + $0x128] sm:$0xf]
  %v102 = vld [vmem:[%s1 + $0x12c] sm:$0xf]
  %v103 = vld [vmem:[%s1 + $0x130] sm:$0xf]
  %v104 = vld [vmem:[%s1 + $0x134] sm:$0xf]
  %v105 = vld [vmem:[%s1 + $0x138] sm:$0xf]
  %v106 = vld [vmem:[%s1 + $0x13c] sm:$0xf]
  %v107 = vld [vmem:[%s1 + $0x140] sm:$0xf]
  %v108 = vld [vmem:[%s1 + $0x144] sm:$0xf]
  %v109 = vld [vmem:[%s1 + $0x148] sm:$0xf]
  %v110 = vld [vmem:[%s1 + $0x14c] sm:$0xf]
  %v111 = vld [vmem:[%s1 + $0x150] sm:$0xf]
  %v112 = vld [vmem:[%s1 + $0x154] sm:$0xf]
  %v113 = vld [vmem:[%s1 + $0x158] sm:$0xf]
  %v114 = vld [vmem:[%s1 + $0x15c] sm:$0xf]
  %v115 = vld [vmem:[%s1 + $0x160] sm:$0xf]
  %v116 = vld [vmem:[%s1 + $0x164] sm:$0xf]
  %v117 = vld [vmem:[%s1 + $0x168] sm:$0xf]
  %v118 = vld [vmem:[%s1 + $0x16c] sm:$0xf]
  %v119 = vld [vmem:[%s1 + $0x170] sm:$0xf]
  %v120 = vld [vmem:[%s1 + $0x174] sm:$0xf]
  %v121 = vld [vmem:[%s1 + $0x178] sm:$0xf]
  %v122 = vld [vmem:[%s1 + $0x17c] sm:$0xf]
  %v123 = vld [vmem:[%s1 + $0x180] sm:$0xf]
  %v124 = vld [vmem:[%s1 + $0x184] sm:$0xf]
  %v125 = vld [vmem:[%s1 + $0x188] sm:$0xf]
  %v126 = vld [vmem:[%s1 + $0x18c] sm:$0xf]
  %v127 = vld [vmem:[%s1 + $0x190] sm:$0xf]
  %v128 = vld [vmem:[%s1 + $0x194] sm:$0xf]
  %v129 = vld [vmem:[%s1 + $0x198] sm:$0xf]
  %v130 = vld [vmem:[%s1 + $0x19c] sm:$0xf]
  %v131 = vld [vmem:[%s1 + $0x1a0] sm:$0xf]
  %v132 = vld [vmem:[%s1 + $0x1a4] sm:$0xf]
  %v133 = vld [vmem:[%s1 + $0x1a8] sm:$0xf]
  %v134 = vld [vmem:[%s1 + $0x1ac] sm:$0xf]
  %v135 = vld [vmem:[%s1 + $0x1b0] sm:$0xf]
  %v136 = vld [vmem:[%s1 + $0x1b4] sm:$0xf]
  %v137 = vld [vmem:[%s1 + $0x1b8] sm:$0xf]
  %v138 = vld [vmem:[%s1 + $0x1bc] sm:$0xf]
  %v139 = vld [vmem:[%s1 + $0x1c0] sm:$0xf]
  %v140 = vld [vmem:[%s1 + $0x1c4] sm:$0xf]
  %v141 = vld [vmem:[%s1 + $0x1c8] sm:$0xf]
  %v142 = vld [vmem:[%s1 + $0x1cc] sm:$0xf]
  %v143 = vld [vmem:[%s1 + $0x1d0] sm:$0xf]
  %v144 = vld [vmem:[%s1 + $0x1d4] sm:$0xf]
  %v145 = vld [vmem:[%s1 + $0x1d8] sm:$0xf]
  %v146 = vld [vmem:[%s1 + $0x1dc] sm:$0xf]
  %v147 = vld [vmem:[%s1 + $0x1e0] sm:$0xf]
  %v148 = vld [vmem:[%s1 + $0x1e4] sm:$0xf]
  %v149 = vld [vmem:[%s1 + $0x1e8] sm:$0xf]
  %v150 = vld [vmem:[%s1 + $0x1ec] sm:$0xf]
  %v151 = vld [vmem:[%s1 + $0x1f0] sm:$0xf]
  %v152 = vld [vmem:[%s1 + $0x1f4] sm:$0xf]
  %v153 = vld [vmem:[%s1 + $0x1f8] sm:$0xf]
  %v154 = vld [vmem:[%s1 + $0x1fc] sm:$0xf]
  %v155 = vld [vmem:[%s1 + $0x200] sm:$0xf]
  %v156 = vld [vmem:[%s1 + $0x204] sm:$0xf]
  %v157 = vld [vmem:[%s1 + $0x208] sm:$0xf]
  %v158 = vld [vmem:[%s1 + $0x20c] sm:$0xf]
  %v159 = vld [vmem:[%s1 + $0x210] sm:$0xf]
  %v160 = vld [vmem:[%s1 + $0x214] sm:$0xf]
  %v161 = vld [vmem:[%s1 + $0x218] sm:$0xf]
  %v162 = vld [vmem:[%s1 + $0x21c] sm:$0xf]
  %v163 = vld [vmem:[%s1 + $0x220] sm:$0xf]
  %v164 = vld [vmem:[%s1 + $0x224] sm:$0xf]
  %v165 = vld [vmem:[%s1 + $0x228] sm:$0xf]
  %v166 = vld [vmem:[%s1 + $0x22c] sm:$0xf]
  %v167 = vld [vmem:[%s1 + $0x230] sm:$0xf]
  %v168 = vld [vmem:[%s1 + $0x234] sm:$0xf]
  %v169 = vld [vmem:[%s1 + $0x238] sm:$0xf]
  %v170 = vld [vmem:[%s1 + $0x23c] sm:$0xf]
  %v171 = vld [vmem:[%s1 + $0x240] sm:$0xf]
  %v172 = vld [vmem:[%s1 + $0x244] sm:$0xf]
  %v173 = vld [vmem:[%s1 + $0x248] sm:$0xf]
  %v174 = vld [vmem:[%s1 + $0x24c] sm:$0xf]
  %v175 = vld [vmem:[%s1 + $0x250] sm:$0xf]
  %v176 = vld [vmem:[%s1 + $0x254] sm:$0xf]
  %v177 = vld [vmem:[%s1 + $0x258] sm:$0xf]
  %v178 = vld [vmem:[%s1 + $0x25c] sm:$0xf]
  %v179 = vld [vmem:[%s1 + $0x260] sm:$0xf]
  %v180 = vld [vmem:[%s1 + $0x264] sm:$0xf]
  %v181 = vld [vmem:[%s1 + $0x268] sm:$0xf]
  %v182 = vld [vmem:[%s1 + $0x26c] sm:$0xf]
  %v183 = vld [vmem:[%s1 + $0x270] sm:$0xf]
  %v184 = vld [vmem:[%s1 + $0x274] sm:$0xf]
  %v185 = vld [vmem:[%s1 + $0x278] sm:$0xf]
  %v186 = vld [vmem:[%s1 + $0x27c] sm:$0xf]
  %v187 = vld [vmem:[%s1 + $0x280] sm:$0xf]
  %v188 = vld [vmem:[%s1 + $0x284] sm:$0xf]
  %v189 = vld [vmem:[%s1 + $0x288] sm:$0xf]
  %v190 = vld [vmem:[%s1 + $0x28c] sm:$0xf]
  %v191 = vld [vmem:[%s1 + $0x290] sm:$0xf]
  %v192 = vld [vmem:[%s1 + $0x294] sm:$0xf]
  %v193 = vld [vmem:[%s1 + $0x298] sm:$0xf]
  %v194 = vld [vmem:[%s1 + $0x29c] sm:$0xf]
  %v195 = vld [vmem:[%s1 + $0x2a0] sm:$0xf]
  %v196 = vld [vmem:[%s1 + $0x2a4] sm:$0xf]
  %v197 = vld [vmem:[%s1 + $0x2a8] sm:$0xf]
  %v198 = vld [vmem:[%s1 + $0x2ac] sm:$0xf]
  %v199 = vld [vmem:[%s1 + $0x2b0] sm:$0xf]
  %v200 = vld [vmem:[%s1 + $0x2b4] sm:$0xf]
  %v201 = vld [vmem:[%s1 + $0x2b8] sm:$0xf]
  %v202 = vld [vmem:[%s1 + $0x2bc] sm:$0xf]
  %v203 = vld [vmem:[%s1 + $0x2c0] sm:$0xf]
  %v204 = vld [vmem:[%s1 + $0x2c4] sm:$0xf]
  %v205 = vld [vmem:[%s1 + $0x2c8] sm:$0xf]
  %v206 = vld [vmem:[%s1 + $0x2cc] sm:$0xf]
  %v207 = vld [vmem:[%s1 + $0x2d0] sm:$0xf]
  %v208 = vld [vmem:[%s1 + $0x2d4] sm:$0xf]
  %v209 = vld [vmem:[%s1 + $0x2d8] sm:$0xf]
  %v210 = vld [vmem:[%s1 + $0x2dc] sm:$0xf]
  %v211 = vld [vmem:[%s1 + $0x2e0] sm:$0xf]
  %v212 = vld [vmem:[%s1 + $0x2e4] sm:$0xf]
  %v213 = vld [vmem:[%s1 + $0x2e8] sm:$0xf]
  %v214 = vld [vmem:[%s1 + $0x2ec] sm:$0xf]
  %v215 = vld [vmem:[%s1 + $0x2f0] sm:$0xf]
  %v216 = vld [vmem:[%s1 + $0x2f4] sm:$0xf]
  %v217 = vld [vmem:[%s1 + $0x2f8] sm:$0xf]
  %v218 = vld [vmem:[%s1 + $0x2fc] sm:$0xf]
  %v219 = vld [vmem:[%s2] sm:$0x1]
  %v221 = vlaneseq
  %v222 = vshrl.u32 %v221, 7
  %v223 = vsub.s32 0, %v222
  %v224 = vrot.slane %v219, %v223
  %v238 = vunpack.c.l.b16 %v15
  %v239 = vunpack.c.h.b16 %v15
  %v240 = vunpack.c.l.b16 %v16
  %v241 = vunpack.c.h.b16 %v16
  %v242 = vunpack.c.l.b16 %v17
  %v243 = vunpack.c.h.b16 %v17
  %v244 = vunpack.c.l.b16 %v18
  %v245 = vunpack.c.h.b16 %v18
  %v246 = vunpack.c.l.b16 %v19
  %v247 = vunpack.c.h.b16 %v19
  %v248 = vunpack.c.l.b16 %v20
  %v249 = vunpack.c.h.b16 %v20
  %v250 = vunpack.c.l.b16 %v21
  %v251 = vunpack.c.h.b16 %v21
  %v252 = vunpack.c.l.b16 %v22
  %v253 = vunpack.c.h.b16 %v22
  %v254 = vunpack.c.l.b16 %v23
  %v255 = vunpack.c.h.b16 %v23
  %v256 = vunpack.c.l.b16 %v24
  %v257 = vunpack.c.h.b16 %v24
  %v258 = vunpack.c.l.b16 %v25
  %v259 = vunpack.c.h.b16 %v25
  %v260 = vunpack.c.l.b16 %v26
  %v261 = vunpack.c.h.b16 %v26
  %v262 = vpack.c.b16 %v250, %v238
  %v263 = vpack.c.b16 %v251, %v239
  %v264 = vpack.c.b16 %v252, %v240
  %v265 = vpack.c.b16 %v253, %v241
  %v266 = vpack.c.b16 %v254, %v242
  %v267 = vpack.c.b16 %v255, %v243
  %v268 = vpack.c.b16 %v256, %v244
  %v269 = vpack.c.b16 %v257, %v245
  %v270 = vpack.c.b16 %v258, %v246
  %v271 = vpack.c.b16 %v259, %v247
  %v272 = vpack.c.b16 %v260, %v248
  %v273 = vpack.c.b16 %v261, %v249
  %v478 = vunpack.c.l.b16 %v27
  %v479 = vunpack.c.l.b16 %v28
  %v480 = vunpack.c.l.b16 %v29
  %v481 = vunpack.c.l.b16 %v30
  %v482 = vunpack.c.l.b16 %v31
  %v483 = vunpack.c.l.b16 %v32
  %v484 = vunpack.c.l.b16 %v33
  %v485 = vunpack.c.l.b16 %v34
  %v486 = vunpack.c.l.b16 %v35
  %v487 = vunpack.c.l.b16 %v36
  %v488 = vunpack.c.l.b16 %v37
  %v489 = vunpack.c.l.b16 %v38
  %v490 = vunpack.c.l.b16 %v39
  %v491 = vunpack.c.l.b16 %v40
  %v492 = vunpack.c.l.b16 %v41
  %v493 = vunpack.c.l.b16 %v42
  %v494 = vunpack.c.l.b16 %v43
  %v495 = vunpack.c.l.b16 %v44
  %v496 = vunpack.c.l.b16 %v45
  %v497 = vunpack.c.l.b16 %v46
  %v498 = vunpack.c.l.b16 %v47
  %v499 = vunpack.c.l.b16 %v48
  %v500 = vunpack.c.l.b16 %v49
  %v501 = vunpack.c.l.b16 %v50
  %v502 = vunpack.c.l.b16 %v51
  %v503 = vunpack.c.l.b16 %v52
  %v504 = vunpack.c.l.b16 %v53
  %v505 = vunpack.c.l.b16 %v54
  %v506 = vunpack.c.l.b16 %v55
  %v507 = vunpack.c.l.b16 %v56
  %v508 = vunpack.c.l.b16 %v57
  %v509 = vunpack.c.l.b16 %v58
  %v510 = vunpack.c.l.b16 %v59
  %v511 = vunpack.c.l.b16 %v60
  %v512 = vunpack.c.l.b16 %v61
  %v513 = vunpack.c.l.b16 %v62
  %v514 = vunpack.c.l.b16 %v63
  %v515 = vunpack.c.l.b16 %v64
  %v516 = vunpack.c.l.b16 %v65
  %v517 = vunpack.c.l.b16 %v66
  %v518 = vunpack.c.l.b16 %v67
  %v519 = vunpack.c.l.b16 %v68
  %v520 = vunpack.c.l.b16 %v69
  %v521 = vunpack.c.l.b16 %v70
  %v522 = vunpack.c.l.b16 %v71
  %v523 = vunpack.c.l.b16 %v72
  %v524 = vunpack.c.l.b16 %v73
  %v525 = vunpack.c.l.b16 %v74
  %v526 = vunpack.c.l.b16 %v75
  %v527 = vunpack.c.l.b16 %v76
  %v528 = vunpack.c.l.b16 %v77
  %v529 = vunpack.c.l.b16 %v78
  %v530 = vunpack.c.l.b16 %v79
  %v531 = vunpack.c.l.b16 %v80
  %v532 = vunpack.c.l.b16 %v81
  %v533 = vunpack.c.l.b16 %v82
  %v534 = vunpack.c.l.b16 %v83
  %v535 = vunpack.c.l.b16 %v84
  %v536 = vunpack.c.l.b16 %v85
  %v537 = vunpack.c.l.b16 %v86
  %v538 = vunpack.c.l.b16 %v87
  %v539 = vunpack.c.l.b16 %v88
  %v540 = vunpack.c.l.b16 %v89
  %v541 = vunpack.c.l.b16 %v90
  %v542 = vunpack.c.l.b16 %v91
  %v543 = vunpack.c.l.b16 %v92
  %v544 = vunpack.c.l.b16 %v93
  %v545 = vunpack.c.l.b16 %v94
  %v546 = vunpack.c.l.b16 %v95
  %v547 = vunpack.c.l.b16 %v96
  %v548 = vunpack.c.l.b16 %v97
  %v549 = vunpack.c.l.b16 %v98
  %v550 = vunpack.c.l.b16 %v99
  %v551 = vunpack.c.l.b16 %v100
  %v552 = vunpack.c.l.b16 %v101
  %v553 = vunpack.c.l.b16 %v102
  %v554 = vunpack.c.l.b16 %v103
  %v555 = vunpack.c.l.b16 %v104
  %v556 = vunpack.c.l.b16 %v105
  %v557 = vunpack.c.l.b16 %v106
  %v558 = vunpack.c.l.b16 %v107
  %v559 = vunpack.c.l.b16 %v108
  %v560 = vunpack.c.l.b16 %v109
  %v561 = vunpack.c.l.b16 %v110
  %v562 = vunpack.c.l.b16 %v111
  %v563 = vunpack.c.l.b16 %v112
  %v564 = vunpack.c.l.b16 %v113
  %v565 = vunpack.c.l.b16 %v114
  %v566 = vunpack.c.l.b16 %v115
  %v567 = vunpack.c.l.b16 %v116
  %v568 = vunpack.c.l.b16 %v117
  %v569 = vunpack.c.l.b16 %v118
  %v570 = vunpack.c.l.b16 %v119
  %v571 = vunpack.c.l.b16 %v120
  %v572 = vunpack.c.l.b16 %v121
  %v573 = vunpack.c.l.b16 %v122
  %v574 = vunpack.c.l.b16 %v123
  %v575 = vunpack.c.l.b16 %v124
  %v576 = vunpack.c.l.b16 %v125
  %v577 = vunpack.c.l.b16 %v126
  %v578 = vunpack.c.l.b16 %v127
  %v579 = vunpack.c.l.b16 %v128
  %v580 = vunpack.c.l.b16 %v129
  %v581 = vunpack.c.l.b16 %v130
  %v582 = vunpack.c.l.b16 %v131
  %v583 = vunpack.c.l.b16 %v132
  %v584 = vunpack.c.l.b16 %v133
  %v585 = vunpack.c.l.b16 %v134
  %v586 = vunpack.c.l.b16 %v135
  %v587 = vunpack.c.l.b16 %v136
  %v588 = vunpack.c.l.b16 %v137
  %v589 = vunpack.c.l.b16 %v138
  %v590 = vunpack.c.l.b16 %v139
  %v591 = vunpack.c.l.b16 %v140
  %v592 = vunpack.c.l.b16 %v141
  %v593 = vunpack.c.l.b16 %v142
  %v594 = vunpack.c.l.b16 %v143
  %v595 = vunpack.c.l.b16 %v144
  %v596 = vunpack.c.l.b16 %v145
  %v597 = vunpack.c.l.b16 %v146
  %v598 = vunpack.c.l.b16 %v147
  %v599 = vunpack.c.l.b16 %v148
  %v600 = vunpack.c.l.b16 %v149
  %v601 = vunpack.c.l.b16 %v150
  %v602 = vunpack.c.l.b16 %v151
  %v603 = vunpack.c.l.b16 %v152
  %v604 = vunpack.c.l.b16 %v153
  %v605 = vunpack.c.l.b16 %v154
  %v606 = vunpack.c.l.b16 %v155
  %v607 = vunpack.c.l.b16 %v156
  %v608 = vunpack.c.l.b16 %v157
  %v609 = vunpack.c.l.b16 %v158
  %v610 = vunpack.c.l.b16 %v159
  %v611 = vunpack.c.l.b16 %v160
  %v612 = vunpack.c.l.b16 %v161
  %v613 = vunpack.c.l.b16 %v162
  %v614 = vunpack.c.l.b16 %v163
  %v615 = vunpack.c.l.b16 %v164
  %v616 = vunpack.c.l.b16 %v165
  %v617 = vunpack.c.l.b16 %v166
  %v618 = vunpack.c.l.b16 %v167
  %v619 = vunpack.c.l.b16 %v168
  %v620 = vunpack.c.l.b16 %v169
  %v621 = vunpack.c.l.b16 %v170
  %v622 = vunpack.c.l.b16 %v171
  %v623 = vunpack.c.l.b16 %v172
  %v624 = vunpack.c.l.b16 %v173
  %v625 = vunpack.c.l.b16 %v174
  %v626 = vunpack.c.l.b16 %v175
  %v627 = vunpack.c.l.b16 %v176
  %v628 = vunpack.c.l.b16 %v177
  %v629 = vunpack.c.l.b16 %v178
  %v630 = vunpack.c.l.b16 %v179
  %v631 = vunpack.c.l.b16 %v180
  %v632 = vunpack.c.l.b16 %v181
  %v633 = vunpack.c.l.b16 %v182
  %v634 = vunpack.c.l.b16 %v183
  %v635 = vunpack.c.l.b16 %v184
  %v636 = vunpack.c.l.b16 %v185
  %v637 = vunpack.c.l.b16 %v186
  %v638 = vunpack.c.l.b16 %v187
  %v639 = vunpack.c.l.b16 %v188
  %v640 = vunpack.c.l.b16 %v189
  %v641 = vunpack.c.l.b16 %v190
  %v642 = vunpack.c.l.b16 %v191
  %v643 = vunpack.c.l.b16 %v192
  %v644 = vunpack.c.l.b16 %v193
  %v645 = vunpack.c.l.b16 %v194
  %v646 = vunpack.c.l.b16 %v195
  %v647 = vunpack.c.l.b16 %v196
  %v648 = vunpack.c.l.b16 %v197
  %v649 = vunpack.c.l.b16 %v198
  %v650 = vunpack.c.l.b16 %v199
  %v651 = vunpack.c.l.b16 %v200
  %v652 = vunpack.c.l.b16 %v201
  %v653 = vunpack.c.l.b16 %v202
  %v654 = vunpack.c.l.b16 %v203
  %v655 = vunpack.c.l.b16 %v204
  %v656 = vunpack.c.l.b16 %v205
  %v657 = vunpack.c.l.b16 %v206
  %v658 = vunpack.c.l.b16 %v207
  %v659 = vunpack.c.l.b16 %v208
  %v660 = vunpack.c.l.b16 %v209
  %v661 = vunpack.c.l.b16 %v210
  %v662 = vunpack.c.l.b16 %v211
  %v663 = vunpack.c.l.b16 %v212
  %v664 = vunpack.c.l.b16 %v213
  %v665 = vunpack.c.l.b16 %v214
  %v666 = vunpack.c.l.b16 %v215
  %v667 = vunpack.c.l.b16 %v216
  %v668 = vunpack.c.l.b16 %v217
  %v669 = vunpack.c.l.b16 %v218
  %v670 = vpack.c.b16 %v479, %v478
  %v671 = vpack.c.b16 %v481, %v480
  %v672 = vpack.c.b16 %v483, %v482
  %v673 = vpack.c.b16 %v485, %v484
  %v674 = vpack.c.b16 %v487, %v486
  %v675 = vpack.c.b16 %v489, %v488
  %v676 = vpack.c.b16 %v491, %v490
  %v677 = vpack.c.b16 %v493, %v492
  %v678 = vpack.c.b16 %v495, %v494
  %v679 = vpack.c.b16 %v497, %v496
  %v680 = vpack.c.b16 %v499, %v498
  %v681 = vpack.c.b16 %v501, %v500
  %v682 = vpack.c.b16 %v503, %v502
  %v683 = vpack.c.b16 %v505, %v504
  %v684 = vpack.c.b16 %v507, %v506
  %v685 = vpack.c.b16 %v509, %v508
  %v686 = vpack.c.b16 %v511, %v510
  %v687 = vpack.c.b16 %v513, %v512
  %v688 = vpack.c.b16 %v515, %v514
  %v689 = vpack.c.b16 %v517, %v516
  %v690 = vpack.c.b16 %v519, %v518
  %v691 = vpack.c.b16 %v521, %v520
  %v692 = vpack.c.b16 %v523, %v522
  %v693 = vpack.c.b16 %v525, %v524
  %v694 = vpack.c.b16 %v527, %v526
  %v695 = vpack.c.b16 %v529, %v528
  %v696 = vpack.c.b16 %v531, %v530
  %v697 = vpack.c.b16 %v533, %v532
  %v698 = vpack.c.b16 %v535, %v534
  %v699 = vpack.c.b16 %v537, %v536
  %v700 = vpack.c.b16 %v539, %v538
  %v701 = vpack.c.b16 %v541, %v540
  %v702 = vpack.c.b16 %v543, %v542
  %v703 = vpack.c.b16 %v545, %v544
  %v704 = vpack.c.b16 %v547, %v546
  %v705 = vpack.c.b16 %v549, %v548
  %v706 = vpack.c.b16 %v551, %v550
  %v707 = vpack.c.b16 %v553, %v552
  %v708 = vpack.c.b16 %v555, %v554
  %v709 = vpack.c.b16 %v557, %v556
  %v710 = vpack.c.b16 %v559, %v558
  %v711 = vpack.c.b16 %v561, %v560
  %v712 = vpack.c.b16 %v563, %v562
  %v713 = vpack.c.b16 %v565, %v564
  %v714 = vpack.c.b16 %v567, %v566
  %v715 = vpack.c.b16 %v569, %v568
  %v716 = vpack.c.b16 %v571, %v570
  %v717 = vpack.c.b16 %v573, %v572
  %v718 = vpack.c.b16 %v575, %v574
  %v719 = vpack.c.b16 %v577, %v576
  %v720 = vpack.c.b16 %v579, %v578
  %v721 = vpack.c.b16 %v581, %v580
  %v722 = vpack.c.b16 %v583, %v582
  %v723 = vpack.c.b16 %v585, %v584
  %v724 = vpack.c.b16 %v587, %v586
  %v725 = vpack.c.b16 %v589, %v588
  %v726 = vpack.c.b16 %v591, %v590
  %v727 = vpack.c.b16 %v593, %v592
  %v728 = vpack.c.b16 %v595, %v594
  %v729 = vpack.c.b16 %v597, %v596
  %v730 = vpack.c.b16 %v599, %v598
  %v731 = vpack.c.b16 %v601, %v600
  %v732 = vpack.c.b16 %v603, %v602
  %v733 = vpack.c.b16 %v605, %v604
  %v734 = vpack.c.b16 %v607, %v606
  %v735 = vpack.c.b16 %v609, %v608
  %v736 = vpack.c.b16 %v611, %v610
  %v737 = vpack.c.b16 %v613, %v612
  %v738 = vpack.c.b16 %v615, %v614
  %v739 = vpack.c.b16 %v617, %v616
  %v740 = vpack.c.b16 %v619, %v618
  %v741 = vpack.c.b16 %v621, %v620
  %v742 = vpack.c.b16 %v623, %v622
  %v743 = vpack.c.b16 %v625, %v624
  %v744 = vpack.c.b16 %v627, %v626
  %v745 = vpack.c.b16 %v629, %v628
  %v746 = vpack.c.b16 %v631, %v630
  %v747 = vpack.c.b16 %v633, %v632
  %v748 = vpack.c.b16 %v635, %v634
  %v749 = vpack.c.b16 %v637, %v636
  %v750 = vpack.c.b16 %v639, %v638
  %v751 = vpack.c.b16 %v641, %v640
  %v752 = vpack.c.b16 %v643, %v642
  %v753 = vpack.c.b16 %v645, %v644
  %v754 = vpack.c.b16 %v647, %v646
  %v755 = vpack.c.b16 %v649, %v648
  %v756 = vpack.c.b16 %v651, %v650
  %v757 = vpack.c.b16 %v653, %v652
  %v758 = vpack.c.b16 %v655, %v654
  %v759 = vpack.c.b16 %v657, %v656
  %v760 = vpack.c.b16 %v659, %v658
  %v761 = vpack.c.b16 %v661, %v660
  %v762 = vpack.c.b16 %v663, %v662
  %v763 = vpack.c.b16 %v665, %v664
  %v764 = vpack.c.b16 %v667, %v666
  %v765 = vpack.c.b16 %v669, %v668
  %862 = vmatprep.subr.bf16.mxu0 0
  %863 = vmatpush1.bf16.msra.mxu0 %v670
  %864 = vmatprep.subr.bf16.mxu0 0
  %865 = vmatpush1.bf16.msra.mxu0 %v671
  %866 = vmatprep.subr.bf16.mxu0 0
  %867 = vmatpush1.bf16.msra.mxu0 %v672
  %868 = vmatprep.subr.bf16.mxu0 0
  %869 = vmatpush1.bf16.msra.mxu0 %v673
  %870 = vmatprep.subr.bf16.mxu0 0
  %871 = vmatpush1.bf16.msra.mxu0 %v674
  %872 = vmatprep.subr.bf16.mxu0 0
  %873 = vmatpush1.bf16.msra.mxu0 %v675
  %874 = vmatprep.subr.bf16.mxu0 0
  %875 = vmatpush1.bf16.msra.mxu0 %v676
  %876 = vmatprep.subr.bf16.mxu0 0
  %877 = vmatpush1.bf16.msra.mxu0 %v677
  %878 = vmatprep.subr.bf16.mxu0 0
  %879 = vmatpush1.bf16.msra.mxu0 %v678
  %880 = vmatprep.subr.bf16.mxu0 0
  %881 = vmatpush1.bf16.msra.mxu0 %v679
  %882 = vmatprep.subr.bf16.mxu0 0
  %883 = vmatpush1.bf16.msra.mxu0 %v680
  %884 = vmatprep.subr.bf16.mxu0 0
  %885 = vmatpush1.bf16.msra.mxu0 %v681
  %886 = vmatprep.subr.bf16.mxu0 0
  %887 = vmatpush1.bf16.msra.mxu0 %v682
  %888 = vmatprep.subr.bf16.mxu0 0
  %889 = vmatpush1.bf16.msra.mxu0 %v683
  %890 = vmatprep.subr.bf16.mxu0 0
  %891 = vmatpush1.bf16.msra.mxu0 %v684
  %892 = vmatprep.subr.bf16.mxu0 0
  %893 = vmatpush1.bf16.msra.mxu0 %v685
  %894 = vmatprep.mubr.bf16.mxu0 %v263
  %895 = vmatmul.mubr.bf16.gmra.mrb[0].mxu0 %v262
  %v896 = vpop.f32.mrb[0].mxu0
  %v897 = vadd.f32 %v224, %v896
  %v898 = vpop.f32.mrb[0].mxu0
  %v899 = vpop.f32.mrb[0].mxu0
  %v900 = vadd.f32 %v224, %v899
  %v901 = vpop.f32.mrb[0].mxu0
  %902 = vdwg.mxu0
  %903 = vmatprep.subr.bf16.mxu0 0
  %904 = vmatpush1.bf16.msra.mxu0 %v686
  %905 = vmatprep.subr.bf16.mxu0 0
  %906 = vmatpush1.bf16.msra.mxu0 %v687
  %907 = vmatprep.subr.bf16.mxu0 0
  %908 = vmatpush1.bf16.msra.mxu0 %v688
  %909 = vmatprep.subr.bf16.mxu0 0
  %910 = vmatpush1.bf16.msra.mxu0 %v689
  %911 = vmatprep.subr.bf16.mxu0 0
  %912 = vmatpush1.bf16.msra.mxu0 %v690
  %913 = vmatprep.subr.bf16.mxu0 0
  %914 = vmatpush1.bf16.msra.mxu0 %v691
  %915 = vmatprep.subr.bf16.mxu0 0
  %916 = vmatpush1.bf16.msra.mxu0 %v692
  %917 = vmatprep.subr.bf16.mxu0 0
  %918 = vmatpush1.bf16.msra.mxu0 %v693
  %919 = vmatprep.subr.bf16.mxu0 0
  %920 = vmatpush1.bf16.msra.mxu0 %v694
  %921 = vmatprep.subr.bf16.mxu0 0
  %922 = vmatpush1.bf16.msra.mxu0 %v695
  %923 = vmatprep.subr.bf16.mxu0 0
  %924 = vmatpush1.bf16.msra.mxu0 %v696
  %925 = vmatprep.subr.bf16.mxu0 0
  %926 = vmatpush1.bf16.msra.mxu0 %v697
  %927 = vmatprep.subr.bf16.mxu0 0
  %928 = vmatpush1.bf16.msra.mxu0 %v698
  %929 = vmatprep.subr.bf16.mxu0 0
  %930 = vmatpush1.bf16.msra.mxu0 %v699
  %931 = vmatprep.subr.bf16.mxu0 0
  %932 = vmatpush1.bf16.msra.mxu0 %v700
  %933 = vmatprep.subr.bf16.mxu0 0
  %934 = vmatpush1.bf16.msra.mxu0 %v701
  %935 = vmatprep.mubr.bf16.mxu0 %v265
  %936 = vmatmul.mubr.bf16.gmra.mrb[0].mxu0 %v264
  %v937 = vpop.f32.mrb[0].mxu0
  %v938 = vadd.f32 %v897, %v937
  %v939 = vpop.f32.mrb[0].mxu0
  %v940 = vpop.f32.mrb[0].mxu0
  %v941 = vadd.f32 %v900, %v940
  %v942 = vpop.f32.mrb[0].mxu0
  %943 = vdwg.mxu0
  %944 = vmatprep.subr.bf16.mxu0 0
  %945 = vmatpush1.bf16.msra.mxu0 %v702
  %946 = vmatprep.subr.bf16.mxu0 0
  %947 = vmatpush1.bf16.msra.mxu0 %v703
  %948 = vmatprep.subr.bf16.mxu0 0
  %949 = vmatpush1.bf16.msra.mxu0 %v704
  %950 = vmatprep.subr.bf16.mxu0 0
  %951 = vmatpush1.bf16.msra.mxu0 %v705
  %952 = vmatprep.subr.bf16.mxu0 0
  %953 = vmatpush1.bf16.msra.mxu0 %v706
  %954 = vmatprep.subr.bf16.mxu0 0
  %955 = vmatpush1.bf16.msra.mxu0 %v707
  %956 = vmatprep.subr.bf16.mxu0 0
  %957 = vmatpush1.bf16.msra.mxu0 %v708
  %958 = vmatprep.subr.bf16.mxu0 0
  %959 = vmatpush1.bf16.msra.mxu0 %v709
  %960 = vmatprep.subr.bf16.mxu0 0
  %961 = vmatpush1.bf16.msra.mxu0 %v710
  %962 = vmatprep.subr.bf16.mxu0 0
  %963 = vmatpush1.bf16.msra.mxu0 %v711
  %964 = vmatprep.subr.bf16.mxu0 0
  %965 = vmatpush1.bf16.msra.mxu0 %v712
  %966 = vmatprep.subr.bf16.mxu0 0
  %967 = vmatpush1.bf16.msra.mxu0 %v713
  %968 = vmatprep.subr.bf16.mxu0 0
  %969 = vmatpush1.bf16.msra.mxu0 %v714
  %970 = vmatprep.subr.bf16.mxu0 0
  %971 = vmatpush1.bf16.msra.mxu0 %v715
  %972 = vmatprep.subr.bf16.mxu0 0
  %973 = vmatpush1.bf16.msra.mxu0 %v716
  %974 = vmatprep.subr.bf16.mxu0 0
  %975 = vmatpush1.bf16.msra.mxu0 %v717
  %976 = vmatprep.mubr.bf16.mxu0 %v267
  %977 = vmatmul.mubr.bf16.gmra.mrb[0].mxu0 %v266
  %v978 = vpop.f32.mrb[0].mxu0
  %v979 = vadd.f32 %v938, %v978
  %v980 = vpop.f32.mrb[0].mxu0
  %v981 = vpop.f32.mrb[0].mxu0
  %v982 = vadd.f32 %v941, %v981
  %v983 = vpop.f32.mrb[0].mxu0
  %984 = vdwg.mxu0
  %985 = vmatprep.subr.bf16.mxu0 0
  %986 = vmatpush1.bf16.msra.mxu0 %v718
  %987 = vmatprep.subr.bf16.mxu0 0
  %988 = vmatpush1.bf16.msra.mxu0 %v719
  %989 = vmatprep.subr.bf16.mxu0 0
  %990 = vmatpush1.bf16.msra.mxu0 %v720
  %991 = vmatprep.subr.bf16.mxu0 0
  %992 = vmatpush1.bf16.msra.mxu0 %v721
  %993 = vmatprep.subr.bf16.mxu0 0
  %994 = vmatpush1.bf16.msra.mxu0 %v722
  %995 = vmatprep.subr.bf16.mxu0 0
  %996 = vmatpush1.bf16.msra.mxu0 %v723
  %997 = vmatprep.subr.bf16.mxu0 0
  %998 = vmatpush1.bf16.msra.mxu0 %v724
  %999 = vmatprep.subr.bf16.mxu0 0
  %1000 = vmatpush1.bf16.msra.mxu0 %v725
  %1001 = vmatprep.subr.bf16.mxu0 0
  %1002 = vmatpush1.bf16.msra.mxu0 %v726
  %1003 = vmatprep.subr.bf16.mxu0 0
  %1004 = vmatpush1.bf16.msra.mxu0 %v727
  %1005 = vmatprep.subr.bf16.mxu0 0
  %1006 = vmatpush1.bf16.msra.mxu0 %v728
  %1007 = vmatprep.subr.bf16.mxu0 0
  %1008 = vmatpush1.bf16.msra.mxu0 %v729
  %1009 = vmatprep.subr.bf16.mxu0 0
  %1010 = vmatpush1.bf16.msra.mxu0 %v730
  %1011 = vmatprep.subr.bf16.mxu0 0
  %1012 = vmatpush1.bf16.msra.mxu0 %v731
  %1013 = vmatprep.subr.bf16.mxu0 0
  %1014 = vmatpush1.bf16.msra.mxu0 %v732
  %1015 = vmatprep.subr.bf16.mxu0 0
  %1016 = vmatpush1.bf16.msra.mxu0 %v733
  %1017 = vmatprep.mubr.bf16.mxu0 %v269
  %1018 = vmatmul.mubr.bf16.gmra.mrb[0].mxu0 %v268
  %v1019 = vpop.f32.mrb[0].mxu0
  %v1020 = vadd.f32 %v979, %v1019
  %v1021 = vpop.f32.mrb[0].mxu0
  %v1022 = vpop.f32.mrb[0].mxu0
  %v1023 = vadd.f32 %v982, %v1022
  %v1024 = vpop.f32.mrb[0].mxu0
  %1025 = vdwg.mxu0
  %1026 = vmatprep.subr.bf16.mxu0 0
  %1027 = vmatpush1.bf16.msra.mxu0 %v734
  %1028 = vmatprep.subr.bf16.mxu0 0
  %1029 = vmatpush1.bf16.msra.mxu0 %v735
  %1030 = vmatprep.subr.bf16.mxu0 0
  %1031 = vmatpush1.bf16.msra.mxu0 %v736
  %1032 = vmatprep.subr.bf16.mxu0 0
  %1033 = vmatpush1.bf16.msra.mxu0 %v737
  %1034 = vmatprep.subr.bf16.mxu0 0
  %1035 = vmatpush1.bf16.msra.mxu0 %v738
  %1036 = vmatprep.subr.bf16.mxu0 0
  %1037 = vmatpush1.bf16.msra.mxu0 %v739
  %1038 = vmatprep.subr.bf16.mxu0 0
  %1039 = vmatpush1.bf16.msra.mxu0 %v740
  %1040 = vmatprep.subr.bf16.mxu0 0
  %1041 = vmatpush1.bf16.msra.mxu0 %v741
  %1042 = vmatprep.subr.bf16.mxu0 0
  %1043 = vmatpush1.bf16.msra.mxu0 %v742
  %1044 = vmatprep.subr.bf16.mxu0 0
  %1045 = vmatpush1.bf16.msra.mxu0 %v743
  %1046 = vmatprep.subr.bf16.mxu0 0
  %1047 = vmatpush1.bf16.msra.mxu0 %v744
  %1048 = vmatprep.subr.bf16.mxu0 0
  %1049 = vmatpush1.bf16.msra.mxu0 %v745
  %1050 = vmatprep.subr.bf16.mxu0 0
  %1051 = vmatpush1.bf16.msra.mxu0 %v746
  %1052 = vmatprep.subr.bf16.mxu0 0
  %1053 = vmatpush1.bf16.msra.mxu0 %v747
  %1054 = vmatprep.subr.bf16.mxu0 0
  %1055 = vmatpush1.bf16.msra.mxu0 %v748
  %1056 = vmatprep.subr.bf16.mxu0 0
  %1057 = vmatpush1.bf16.msra.mxu0 %v749
  %1058 = vmatprep.mubr.bf16.mxu0 %v271
  %1059 = vmatmul.mubr.bf16.gmra.mrb[0].mxu0 %v270
  %v1060 = vpop.f32.mrb[0].mxu0
  %v1061 = vadd.f32 %v1020, %v1060
  %v1062 = vpop.f32.mrb[0].mxu0
  %v1063 = vpop.f32.mrb[0].mxu0
  %v1064 = vadd.f32 %v1023, %v1063
  %v1065 = vpop.f32.mrb[0].mxu0
  %1066 = vdwg.mxu0
  %1067 = vmatprep.subr.bf16.mxu0 0
  %1068 = vmatpush1.bf16.msra.mxu0 %v750
  %1069 = vmatprep.subr.bf16.mxu0 0
  %1070 = vmatpush1.bf16.msra.mxu0 %v751
  %1071 = vmatprep.subr.bf16.mxu0 0
  %1072 = vmatpush1.bf16.msra.mxu0 %v752
  %1073 = vmatprep.subr.bf16.mxu0 0
  %1074 = vmatpush1.bf16.msra.mxu0 %v753
  %1075 = vmatprep.subr.bf16.mxu0 0
  %1076 = vmatpush1.bf16.msra.mxu0 %v754
  %1077 = vmatprep.subr.bf16.mxu0 0
  %1078 = vmatpush1.bf16.msra.mxu0 %v755
  %1079 = vmatprep.subr.bf16.mxu0 0
  %1080 = vmatpush1.bf16.msra.mxu0 %v756
  %1081 = vmatprep.subr.bf16.mxu0 0
  %1082 = vmatpush1.bf16.msra.mxu0 %v757
  %1083 = vmatprep.subr.bf16.mxu0 0
  %1084 = vmatpush1.bf16.msra.mxu0 %v758
  %1085 = vmatprep.subr.bf16.mxu0 0
  %1086 = vmatpush1.bf16.msra.mxu0 %v759
  %1087 = vmatprep.subr.bf16.mxu0 0
  %1088 = vmatpush1.bf16.msra.mxu0 %v760
  %1089 = vmatprep.subr.bf16.mxu0 0
  %1090 = vmatpush1.bf16.msra.mxu0 %v761
  %1091 = vmatprep.subr.bf16.mxu0 0
  %1092 = vmatpush1.bf16.msra.mxu0 %v762
  %1093 = vmatprep.subr.bf16.mxu0 0
  %1094 = vmatpush1.bf16.msra.mxu0 %v763
  %1095 = vmatprep.subr.bf16.mxu0 0
  %1096 = vmatpush1.bf16.msra.mxu0 %v764
  %1097 = vmatprep.subr.bf16.mxu0 0
  %1098 = vmatpush1.bf16.msra.mxu0 %v765
  %1099 = vmatprep.mubr.bf16.mxu0 %v273
  %1100 = vmatmul.mubr.bf16.gmra.mrb[0].mxu0 %v272
  %v1101 = vpop.f32.mrb[0].mxu0
  %v1102 = vadd.f32 %v1061, %v1101
  %v1103 = vpop.f32.mrb[0].mxu0
  %v1104 = vpop.f32.mrb[0].mxu0
  %v1105 = vadd.f32 %v1064, %v1104
  %v1106 = vpop.f32.mrb[0].mxu0
  %1107 = vdwg.mxu0
  %vm1108 = vcmask 261120
  %1109 = vst.msk [vmem:[%s3] sm:$0xff] %vm1108, %v1102
  %1110 = vst.msk [vmem:[%s3 + $0x8] sm:$0xff] %vm1108, %v1105
  // Predicated region
  $region14: #{mm_model_forward.9} parent=0 // pred_check
    _
  $region15: #{mm_model_forward.9} parent=0 // pred_check_branch
    %1112 = sbr.rel (0) target = $region17
  $region16: #{mm_model_forward.9} parent=0 // pred_region
    _
  $region17: #{mm_model_forward.9} parent=0 // pred_fallthru
    _
  // Predicated region
  $region18: #{mm_model_forward.9} parent=0 // pred_check
    _
  $region19: #{mm_model_forward.9} parent=0 // pred_check_branch
    %1114 = sbr.rel (0) target = $region21
  $region20: #{mm_model_forward.9} parent=0 // pred_region
    _
  $region21: #{mm_model_forward.9} parent=0 // pred_fallthru
    _

// kernel: mm_model_forward.7
$region0: #{mm_model_forward.7}
  #allocation0 [shape = 'u32[]', space=smem, size = 0x4, offset = 0x4, fixed_abs, tag = 'smem constant byte address 0x4 - core index']
  #allocation1 [shape = 'u32[144,128]{1,0:T(1,128)}', space=vmem, size = 0x12000, scoped, tag = 'internal scratch']
  %s0 = inlined_call_operand.vmem [shape: bf16[16,128], index: 0, kind: input, shape index: {}]
  %s1 = inlined_call_operand.vmem [shape: bf16[128,32], index: 1, kind: input, shape index: {}]
  %s2 = inlined_call_operand.vmem [shape: f32[1,32], index: 2, kind: input, shape index: {}]
  %s3 = inlined_call_operand.vmem [shape: f32[16,32], index: 3, kind: output, shape index: {}]
  %s4 = sld [smem:[#allocation0]]
  $region22: #{mm_model_forward.7} parent=0
    _
  %s6 = ssub.s32 1, %s4
  %s7 = scalar_select 0, %s6, %s4
  // Predicated region
  $region2: #{mm_model_forward.7} parent=0 // pred_check
    _
  $region3: #{mm_model_forward.7} parent=0 // pred_check_branch
    %9 = sbr.rel (0) target = $region5
  $region4: #{mm_model_forward.7} parent=0 // pred_region
    _
  $region5: #{mm_model_forward.7} parent=0 // pred_fallthru
    _
  // Predicated region
  $region6: #{mm_model_forward.7} parent=0 // pred_check
    _
  $region7: #{mm_model_forward.7} parent=0 // pred_check_branch
    %11 = sbr.rel (0) target = $region9
  $region8: #{mm_model_forward.7} parent=0 // pred_region
    _
  $region9: #{mm_model_forward.7} parent=0 // pred_fallthru
    _
  // Predicated region
  $region10: #{mm_model_forward.7} parent=0 // pred_check
    _
  $region11: #{mm_model_forward.7} parent=0 // pred_check_branch
    %13 = sbr.rel (0) target = $region13
  $region12: #{mm_model_forward.7} parent=0 // pred_region
    _
  $region13: #{mm_model_forward.7} parent=0 // pred_fallthru
    _
  %v15 = vld [vmem:[%s0] sm:$0xf]
  %v16 = vld [vmem:[%s0 + $0x4] sm:$0xf]
  %v17 = vld [vmem:[%s1] sm:$0xf]
  %v18 = vld [vmem:[%s1 + $0x4] sm:$0xf]
  %v19 = vld [vmem:[%s1 + $0x8] sm:$0xf]
  %v20 = vld [vmem:[%s1 + $0xc] sm:$0xf]
  %v21 = vld [vmem:[%s1 + $0x10] sm:$0xf]
  %v22 = vld [vmem:[%s1 + $0x14] sm:$0xf]
  %v23 = vld [vmem:[%s1 + $0x18] sm:$0xf]
  %v24 = vld [vmem:[%s1 + $0x1c] sm:$0xf]
  %v25 = vld [vmem:[%s1 + $0x20] sm:$0xf]
  %v26 = vld [vmem:[%s1 + $0x24] sm:$0xf]
  %v27 = vld [vmem:[%s1 + $0x28] sm:$0xf]
  %v28 = vld [vmem:[%s1 + $0x2c] sm:$0xf]
  %v29 = vld [vmem:[%s1 + $0x30] sm:$0xf]
  %v30 = vld [vmem:[%s1 + $0x34] sm:$0xf]
  %v31 = vld [vmem:[%s1 + $0x38] sm:$0xf]
  %v32 = vld [vmem:[%s1 + $0x3c] sm:$0xf]
  %v33 = vld [vmem:[%s2] sm:$0x1]
  %v35 = vlaneseq
  %v36 = vshrl.u32 %v35, 7
  %v37 = vsub.s32 0, %v36
  %v38 = vrot.slane %v33, %v37
  %v42 = vunpack.c.l.b16 %v15
  %v43 = vunpack.c.l.b16 %v16
  %v44 = vpack.c.b16 %v43, %v42
  %v62 = vunpack.c.l.b16 %v17
  %v63 = vunpack.c.l.b16 %v18
  %v64 = vunpack.c.l.b16 %v19
  %v65 = vunpack.c.l.b16 %v20
  %v66 = vunpack.c.l.b16 %v21
  %v67 = vunpack.c.l.b16 %v22
  %v68 = vunpack.c.l.b16 %v23
  %v69 = vunpack.c.l.b16 %v24
  %v70 = vunpack.c.l.b16 %v25
  %v71 = vunpack.c.l.b16 %v26
  %v72 = vunpack.c.l.b16 %v27
  %v73 = vunpack.c.l.b16 %v28
  %v74 = vunpack.c.l.b16 %v29
  %v75 = vunpack.c.l.b16 %v30
  %v76 = vunpack.c.l.b16 %v31
  %v77 = vunpack.c.l.b16 %v32
  %v78 = vpack.c.b16 %v63, %v62
  %v79 = vpack.c.b16 %v65, %v64
  %v80 = vpack.c.b16 %v67, %v66
  %v81 = vpack.c.b16 %v69, %v68
  %v82 = vpack.c.b16 %v71, %v70
  %v83 = vpack.c.b16 %v73, %v72
  %v84 = vpack.c.b16 %v75, %v74
  %v85 = vpack.c.b16 %v77, %v76
  %94 = vmatprep.subr.bf16.mxu0 0
  %95 = vmatpush1.bf16.msra.mxu0 %v78
  %96 = vmatprep.subr.bf16.mxu0 0
  %97 = vmatpush1.bf16.msra.mxu0 %v79
  %98 = vmatprep.subr.bf16.mxu0 0
  %99 = vmatpush1.bf16.msra.mxu0 %v80
  %100 = vmatprep.subr.bf16.mxu0 0
  %101 = vmatpush1.bf16.msra.mxu0 %v81
  %102 = vmatprep.subr.bf16.mxu0 0
  %103 = vmatpush1.bf16.msra.mxu0 %v82
  %104 = vmatprep.subr.bf16.mxu0 0
  %105 = vmatpush1.bf16.msra.mxu0 %v83
  %106 = vmatprep.subr.bf16.mxu0 0
  %107 = vmatpush1.bf16.msra.mxu0 %v84
  %108 = vmatprep.subr.bf16.mxu0 0
  %109 = vmatpush1.bf16.msra.mxu0 %v85
  %110 = vmatprep.subr.bf16.mxu0 0
  %111 = vmatpush1.bf16.msra.mxu0 0
  %112 = vmatprep.subr.bf16.mxu0 0
  %113 = vmatpush1.bf16.msra.mxu0 0
  %114 = vmatprep.subr.bf16.mxu0 0
  %115 = vmatpush1.bf16.msra.mxu0 0
  %116 = vmatprep.subr.bf16.mxu0 0
  %117 = vmatpush1.bf16.msra.mxu0 0
  %118 = vmatprep.subr.bf16.mxu0 0
  %119 = vmatpush1.bf16.msra.mxu0 0
  %120 = vmatprep.subr.bf16.mxu0 0
  %121 = vmatpush1.bf16.msra.mxu0 0
  %122 = vmatprep.subr.bf16.mxu0 0
  %123 = vmatpush1.bf16.msra.mxu0 0
  %124 = vmatprep.subr.bf16.mxu0 0
  %125 = vmatpush1.bf16.msra.mxu0 0
  %126 = vmatprep.mubr.bf16.mxu0 0
  %127 = vmatmul.mubr.bf16.gmra.mrb[0].mxu0 %v44
  %v128 = vpop.f32.mrb[0].mxu0
  %v129 = vadd.f32 %v38, %v128
  %v130 = vpop.f32.mrb[0].mxu0
  %v131 = vpop.f32.mrb[0].mxu0
  %v132 = vadd.f32 %v38, %v131
  %v133 = vpop.f32.mrb[0].mxu0
  %134 = vdwg.mxu0
  %vm135 = vcmask 261120
  %136 = vst.msk [vmem:[%s3] sm:$0xff] %vm135, %v129
  %137 = vst.msk [vmem:[%s3 + $0x8] sm:$0xff] %vm135, %v132
  // Predicated region
  $region14: #{mm_model_forward.7} parent=0 // pred_check
    _
  $region15: #{mm_model_forward.7} parent=0 // pred_check_branch
    %139 = sbr.rel (0) target = $region17
  $region16: #{mm_model_forward.7} parent=0 // pred_region
    _
  $region17: #{mm_model_forward.7} parent=0 // pred_fallthru
    _
  // Predicated region
  $region18: #{mm_model_forward.7} parent=0 // pred_check
    _
  $region19: #{mm_model_forward.7} parent=0 // pred_check_branch
    %141 = sbr.rel (0) target = $region21
  $region20: #{mm_model_forward.7} parent=0 // pred_region
    _
  $region21: #{mm_model_forward.7} parent=0 // pred_fallthru
    _

// kernel: mm_model_forward.12
$region0: #{mm_model_forward.12}
  #allocation0 [shape = 'u32[]', space=smem, size = 0x4, offset = 0x4, fixed_abs, tag = 'smem constant byte address 0x4 - core index']
  #allocation1 [shape = 'u32[144,128]{1,0:T(1,128)}', space=vmem, size = 0x12000, scoped, tag = 'internal scratch']
  %s0 = inlined_call_operand.vmem [shape: bf16[32,16], index: 0, kind: input, shape index: {}]
  %s1 = inlined_call_operand.vmem [shape: bf16[16,32], index: 1, kind: input, shape index: {}]
  %s2 = inlined_call_operand.vmem [shape: bf16[16,160], index: 2, kind: input, shape index: {}]
  %s3 = inlined_call_operand.vmem [shape: bf16[32,32], index: 3, kind: input, shape index: {}]
  %s4 = inlined_call_operand.vmem [shape: f32[32,32], index: 4, kind: input, shape index: {}]
  %s5 = inlined_call_operand.vmem [shape: f32[16,32], index: 5, kind: input, shape index: {}]
  %s6 = inlined_call_operand.vmem [shape: f32[32,160], index: 6, kind: output, shape index: {0}]
  %s7 = inlined_call_operand.vmem [shape: f32[16,160], index: 7, kind: output, shape index: {1}]
  %s8 = inlined_call_operand.vmem [shape: f32[32,32], index: 8, kind: output, shape index: {2}]
  %s9 = inlined_call_operand.vmem [shape: f32[16,32], index: 9, kind: output, shape index: {3}]
  %s10 = inlined_call_operand.vmem [shape: f32[32,32], index: 10, kind: output, shape index: {4}]
  %s11 = inlined_call_operand.vmem [shape: f32[16,32], index: 11, kind: output, shape index: {5}]
  %12 = xla_tuple %s6, %s7, %s8, %s9, %s10, %s11
  %s13 = sld [smem:[#allocation0]]
  $region74: #{mm_model_forward.12} parent=0
    _
  %s15 = ssub.s32 1, %s13
  %s16 = scalar_select 0, %s15, %s13
  // Predicated region
  $region2: #{mm_model_forward.12} parent=0 // pred_check
    _
  $region3: #{mm_model_forward.12} parent=0 // pred_check_branch
    %18 = sbr.rel (0) target = $region5
  $region4: #{mm_model_forward.12} parent=0 // pred_region
    _
  $region5: #{mm_model_forward.12} parent=0 // pred_fallthru
    _
  // Predicated region
  $region6: #{mm_model_forward.12} parent=0 // pred_check
    _
  $region7: #{mm_model_forward.12} parent=0 // pred_check_branch
    %20 = sbr.rel (0) target = $region9
  $region8: #{mm_model_forward.12} parent=0 // pred_region
    _
  $region9: #{mm_model_forward.12} parent=0 // pred_fallthru
    _
  // Predicated region
  $region10: #{mm_model_forward.12} parent=0 // pred_check
    _
  $region11: #{mm_model_forward.12} parent=0 // pred_check_branch
    %22 = sbr.rel (0) target = $region13
  $region12: #{mm_model_forward.12} parent=0 // pred_region
    _
  $region13: #{mm_model_forward.12} parent=0 // pred_fallthru
    _
  // Predicated region
  $region14: #{mm_model_forward.12} parent=0 // pred_check
    _
  $region15: #{mm_model_forward.12} parent=0 // pred_check_branch
    %24 = sbr.rel (0) target = $region17
  $region16: #{mm_model_forward.12} parent=0 // pred_region
    _
  $region17: #{mm_model_forward.12} parent=0 // pred_fallthru
    _
  // Predicated region
  $region18: #{mm_model_forward.12} parent=0 // pred_check
    _
  $region19: #{mm_model_forward.12} parent=0 // pred_check_branch
    %26 = sbr.rel (0) target = $region21
  $region20: #{mm_model_forward.12} parent=0 // pred_region
    _
  $region21: #{mm_model_forward.12} parent=0 // pred_fallthru
    _
  // Predicated region
  $region22: #{mm_model_forward.12} parent=0 // pred_check
    _
  $region23: #{mm_model_forward.12} parent=0 // pred_check_branch
    %28 = sbr.rel (0) target = $region25
  $region24: #{mm_model_forward.12} parent=0 // pred_region
    _
  $region25: #{mm_model_forward.12} parent=0 // pred_fallthru
    _
  %v30 = vld [vmem:[%s0] sm:$0xf]
  %v31 = vld [vmem:[%s0 + $0x4] sm:$0xf]
  %v32 = vld [vmem:[%s0 + $0x8] sm:$0xf]
  %v33 = vld [vmem:[%s0 + $0xc] sm:$0xf]
  %v34 = vld [vmem:[%s1] sm:$0xf]
  %v35 = vld [vmem:[%s1 + $0x4] sm:$0xf]
  %v36 = vld [vmem:[%s2] sm:$0xff]
  %v37 = vld [vmem:[%s2 + $0x8] sm:$0xff]
  %v42 = vunpack.c.l.b16 %v30
  %v43 = vunpack.c.l.b16 %v31
  %v44 = vunpack.c.l.b16 %v32
  %v45 = vunpack.c.l.b16 %v33
  %v46 = vpack.c.b16 %v43, %v42
  %v47 = vpack.c.b16 %v45, %v44
  %v50 = vunpack.c.l.b16 %v36
  %v51 = vunpack.c.h.b16 %v36
  %v52 = vunpack.c.l.b16 %v37
  %v53 = vunpack.c.h.b16 %v37
  %v54 = vpack.c.b16 %v52, %v50
  %v55 = vpack.c.b16 %v53, %v51
  %vm58 = vcmask 130048
  %v60 = vsel %vm58, %v46, 0
  %v63 = vsel %vm58, %v47, 0
  %65 = vmatprep.subr.bf16.mxu0 %v55
  %66 = vmatpush1.bf16.msra.mxu0 %v54
  %67 = vmatprep.subr.bf16.mxu0 0
  %68 = vmatpush1.bf16.msra.mxu0 0
  %69 = vmatprep.subr.bf16.mxu0 0
  %70 = vmatpush1.bf16.msra.mxu0 0
  %71 = vmatprep.subr.bf16.mxu0 0
  %72 = vmatpush1.bf16.msra.mxu0 0
  %73 = vmatprep.subr.bf16.mxu0 0
  %74 = vmatpush1.bf16.msra.mxu0 0
  %75 = vmatprep.subr.bf16.mxu0 0
  %76 = vmatpush1.bf16.msra.mxu0 0
  %77 = vmatprep.subr.bf16.mxu0 0
  %78 = vmatpush1.bf16.msra.mxu0 0
  %79 = vmatprep.subr.bf16.mxu0 0
  %80 = vmatpush1.bf16.msra.mxu0 0
  %81 = vmatprep.subr.bf16.mxu0 0
  %82 = vmatpush1.bf16.msra.mxu0 0
  %83 = vmatprep.subr.bf16.mxu0 0
  %84 = vmatpush1.bf16.msra.mxu0 0
  %85 = vmatprep.subr.bf16.mxu0 0
  %86 = vmatpush1.bf16.msra.mxu0 0
  %87 = vmatprep.subr.bf16.mxu0 0
  %88 = vmatpush1.bf16.msra.mxu0 0
  %89 = vmatprep.subr.bf16.mxu0 0
  %90 = vmatpush1.bf16.msra.mxu0 0
  %91 = vmatprep.subr.bf16.mxu0 0
  %92 = vmatpush1.bf16.msra.mxu0 0
  %93 = vmatprep.subr.bf16.mxu0 0
  %94 = vmatpush1.bf16.msra.mxu0 0
  %95 = vmatprep.subr.bf16.mxu0 0
  %96 = vmatpush1.bf16.msra.mxu0 0
  %97 = vmatprep.mubr.bf16.mxu0 0
  %98 = vmatmul.mubr.bf16.gmra.mrb[0].mxu0 %v60
  %v99 = vpop.f32.mrb[0].mxu0
  %v100 = vadd.f32 0.0, %v99
  %v101 = vpop.f32.mrb[0].mxu0
  %v102 = vadd.f32 0.0, %v101
  %v103 = vpop.f32.mrb[0].mxu0
  %v104 = vadd.f32 0.0, %v103
  %v105 = vpop.f32.mrb[0].mxu0
  %v106 = vadd.f32 0.0, %v105
  %107 = vmatprep.mubr.bf16.mxu0 0
  %108 = vmatmul.mubr.bf16.gmra.mrb[0].mxu0 %v63
  %v109 = vpop.f32.mrb[0].mxu0
  %v110 = vadd.f32 0.0, %v109
  %v111 = vpop.f32.mrb[0].mxu0
  %v112 = vadd.f32 0.0, %v111
  %v113 = vpop.f32.mrb[0].mxu0
  %v114 = vadd.f32 0.0, %v113
  %v115 = vpop.f32.mrb[0].mxu0
  %v116 = vadd.f32 0.0, %v115
  %117 = vdwg.mxu0
  %v118 = vpack.c.bf16 %v104, %v100
  %v119 = vpack.c.bf16 %v106, %v102
  %v120 = vpack.c.bf16 %v114, %v110
  %v121 = vpack.c.bf16 %v116, %v112
  %v124 = vunpack.c.l.b16 %v34
  %v125 = vunpack.c.l.b16 %v35
  %v126 = vpack.c.b16 %v125, %v124
  %vm127 = vcmask 261120
  %v129 = vsel %vm127, %v126, 0
  %131 = vmatprep.subr.bf16.mxu0 %v119
  %132 = vmatpush1.bf16.msra.mxu0 %v118
  %133 = vmatprep.subr.bf16.mxu0 %v121
  %134 = vmatpush1.bf16.msra.mxu0 %v120
  %135 = vmatprep.subr.bf16.mxu0 0
  %136 = vmatpush1.bf16.msra.mxu0 0
  %137 = vmatprep.subr.bf16.mxu0 0
  %138 = vmatpush1.bf16.msra.mxu0 0
  %139 = vmatprep.subr.bf16.mxu0 0
  %140 = vmatpush1.bf16.msra.mxu0 0
  %141 = vmatprep.subr.bf16.mxu0 0
  %142 = vmatpush1.bf16.msra.mxu0 0
  %143 = vmatprep.subr.bf16.mxu0 0
  %144 = vmatpush1.bf16.msra.mxu0 0
  %145 = vmatprep.subr.bf16.mxu0 0
  %146 = vmatpush1.bf16.msra.mxu0 0
  %147 = vmatprep.subr.bf16.mxu0 0
  %148 = vmatpush1.bf16.msra.mxu0 0
  %149 = vmatprep.subr.bf16.mxu0 0
  %150 = vmatpush1.bf16.msra.mxu0 0
  %151 = vmatprep.subr.bf16.mxu0 0
  %152 = vmatpush1.bf16.msra.mxu0 0
  %153 = vmatprep.subr.bf16.mxu0 0
  %154 = vmatpush1.bf16.msra.mxu0 0
  %155 = vmatprep.subr.bf16.mxu0 0
  %156 = vmatpush1.bf16.msra.mxu0 0
  %157 = vmatprep.subr.bf16.mxu0 0
  %158 = vmatpush1.bf16.msra.mxu0 0
  %159 = vmatprep.subr.bf16.mxu0 0
  %160 = vmatpush1.bf16.msra.mxu0 0
  %161 = vmatprep.subr.bf16.mxu0 0
  %162 = vmatpush1.bf16.msra.mxu0 0
  %163 = vmatprep.mubr.bf16.mxu0 0
  %164 = vmatmul.mubr.bf16.gmra.mrb[0].mxu0 %v129
  %v165 = vpop.f32.mrb[0].mxu0
  %v166 = vadd.f32 0.0, %v165
  %v167 = vpop.f32.mrb[0].mxu0
  %v168 = vadd.f32 0.0, %v167
  %v169 = vpop.f32.mrb[0].mxu0
  %v170 = vadd.f32 0.0, %v169
  %v171 = vpop.f32.mrb[0].mxu0
  %v172 = vadd.f32 0.0, %v171
  %173 = vdwg.mxu0
  %174 = vst [vmem:[%s6] sm:$0xff] %v100
  %175 = vst.msk [vmem:[%s6 + $0x8] sm:$0xff] %vm127, %v102
  %176 = vst [vmem:[%s6 + $0x10] sm:$0xff] %v104
  %177 = vst.msk [vmem:[%s6 + $0x18] sm:$0xff] %vm127, %v106
  %178 = vst [vmem:[%s6 + $0x20] sm:$0xff] %v110
  %179 = vst.msk [vmem:[%s6 + $0x28] sm:$0xff] %vm127, %v112
  %180 = vst [vmem:[%s6 + $0x30] sm:$0xff] %v114
  %181 = vst.msk [vmem:[%s6 + $0x38] sm:$0xff] %vm127, %v116
  %182 = vst [vmem:[%s7] sm:$0xff] %v166
  %183 = vst.msk [vmem:[%s7 + $0x8] sm:$0xff] %vm127, %v168
  %184 = vst [vmem:[%s7 + $0x10] sm:$0xff] %v170
  %185 = vst.msk [vmem:[%s7 + $0x18] sm:$0xff] %vm127, %v172
  %v186 = vld [vmem:[%s3] sm:$0xf]
  %v187 = vld [vmem:[%s3 + $0x4] sm:$0xf]
  %v188 = vld [vmem:[%s3 + $0x8] sm:$0xf]
  %v189 = vld [vmem:[%s3 + $0xc] sm:$0xf]
  %v194 = vunpack.c.l.b16 %v186
  %v195 = vunpack.c.l.b16 %v187
  %v196 = vunpack.c.l.b16 %v188
  %v197 = vunpack.c.l.b16 %v189
  %v198 = vpack.c.b16 %v195, %v194
  %v199 = vpack.c.b16 %v197, %v196
  %202 = vmatprep.subr.bf16.mxu0 0
  %203 = vmatpush1.bf16.msra.mxu0 %v198
  %204 = vmatprep.subr.bf16.mxu0 0
  %205 = vmatpush1.bf16.msra.mxu0 %v199
  %206 = vmatprep.subr.bf16.mxu0 0
  %207 = vmatpush1.bf16.msra.mxu0 0
  %208 = vmatprep.subr.bf16.mxu0 0
  %209 = vmatpush1.bf16.msra.mxu0 0
  %210 = vmatprep.subr.bf16.mxu0 0
  %211 = vmatpush1.bf16.msra.mxu0 0
  %212 = vmatprep.subr.bf16.mxu0 0
  %213 = vmatpush1.bf16.msra.mxu0 0
  %214 = vmatprep.subr.bf16.mxu0 0
  %215 = vmatpush1.bf16.msra.mxu0 0
  %216 = vmatprep.subr.bf16.mxu0 0
  %217 = vmatpush1.bf16.msra.mxu0 0
  %218 = vmatprep.subr.bf16.mxu0 0
  %219 = vmatpush1.bf16.msra.mxu0 0
  %220 = vmatprep.subr.bf16.mxu0 0
  %221 = vmatpush1.bf16.msra.mxu0 0
  %222 = vmatprep.subr.bf16.mxu0 0
  %223 = vmatpush1.bf16.msra.mxu0 0
  %224 = vmatprep.subr.bf16.mxu0 0
  %225 = vmatpush1.bf16.msra.mxu0 0
  %226 = vmatprep.subr.bf16.mxu0 0
  %227 = vmatpush1.bf16.msra.mxu0 0
  %228 = vmatprep.subr.bf16.mxu0 0
  %229 = vmatpush1.bf16.msra.mxu0 0
  %230 = vmatprep.subr.bf16.mxu0 0
  %231 = vmatpush1.bf16.msra.mxu0 0
  %232 = vmatprep.subr.bf16.mxu0 0
  %233 = vmatpush1.bf16.msra.mxu0 0
  %234 = vmatprep.mubr.bf16.mxu0 0
  %235 = vmatmul.mubr.bf16.gmra.mrb[0].mxu0 %v129
  %v236 = vpop.f32.mrb[0].mxu0
  %v237 = vadd.f32 0.0, %v236
  %v238 = vpop.f32.mrb[0].mxu0
  %v239 = vpop.f32.mrb[0].mxu0
  %v240 = vadd.f32 0.0, %v239
  %v241 = vpop.f32.mrb[0].mxu0
  %242 = vdwg.mxu0
  %v243 = vpack.c.bf16 %v240, %v237
  %244 = vmatprep.subr.bf16.mxu0 0
  %245 = vmatpush1.bf16.msra.mxu0 %v243
  %246 = vmatprep.subr.bf16.mxu0 0
  %247 = vmatpush1.bf16.msra.mxu0 0
  %248 = vmatprep.subr.bf16.mxu0 0
  %249 = vmatpush1.bf16.msra.mxu0 0
  %250 = vmatprep.subr.bf16.mxu0 0
  %251 = vmatpush1.bf16.msra.mxu0 0
  %252 = vmatprep.subr.bf16.mxu0 0
  %253 = vmatpush1.bf16.msra.mxu0 0
  %254 = vmatprep.subr.bf16.mxu0 0
  %255 = vmatpush1.bf16.msra.mxu0 0
  %256 = vmatprep.subr.bf16.mxu0 0
  %257 = vmatpush1.bf16.msra.mxu0 0
  %258 = vmatprep.subr.bf16.mxu0 0
  %259 = vmatpush1.bf16.msra.mxu0 0
  %260 = vmatprep.subr.bf16.mxu0 0
  %261 = vmatpush1.bf16.msra.mxu0 0
  %262 = vmatprep.subr.bf16.mxu0 0
  %263 = vmatpush1.bf16.msra.mxu0 0
  %264 = vmatprep.subr.bf16.mxu0 0
  %265 = vmatpush1.bf16.msra.mxu0 0
  %266 = vmatprep.subr.bf16.mxu0 0
  %267 = vmatpush1.bf16.msra.mxu0 0
  %268 = vmatprep.subr.bf16.mxu0 0
  %269 = vmatpush1.bf16.msra.mxu0 0
  %270 = vmatprep.subr.bf16.mxu0 0
  %271 = vmatpush1.bf16.msra.mxu0 0
  %272 = vmatprep.subr.bf16.mxu0 0
  %273 = vmatpush1.bf16.msra.mxu0 0
  %274 = vmatprep.subr.bf16.mxu0 0
  %275 = vmatpush1.bf16.msra.mxu0 0
  %276 = vmatprep.mubr.bf16.mxu0 0
  %277 = vmatmul.mubr.bf16.gmra.mrb[0].mxu0 %v60
  %v278 = vpop.f32.mrb[0].mxu0
  %v279 = vadd.f32 0.0, %v278
  %v280 = vpop.f32.mrb[0].mxu0
  %v281 = vpop.f32.mrb[0].mxu0
  %v282 = vadd.f32 0.0, %v281
  %v283 = vpop.f32.mrb[0].mxu0
  %284 = vmatprep.mubr.bf16.mxu0 0
  %285 = vmatmul.mubr.bf16.gmra.mrb[0].mxu0 %v63
  %v286 = vpop.f32.mrb[0].mxu0
  %v287 = vadd.f32 0.0, %v286
  %v288 = vpop.f32.mrb[0].mxu0
  %v289 = vpop.f32.mrb[0].mxu0
  %v290 = vadd.f32 0.0, %v289
  %v291 = vpop.f32.mrb[0].mxu0
  %292 = vdwg.mxu0
  %293 = vst.msk [vmem:[%s9] sm:$0xff] %vm127, %v237
  %294 = vst.msk [vmem:[%s9 + $0x8] sm:$0xff] %vm127, %v240
  %295 = vst.msk [vmem:[%s8] sm:$0xff] %vm127, %v279
  %296 = vst.msk [vmem:[%s8 + $0x8] sm:$0xff] %vm127, %v282
  %297 = vst.msk [vmem:[%s8 + $0x10] sm:$0xff] %vm127, %v287
  %298 = vst.msk [vmem:[%s8 + $0x18] sm:$0xff] %vm127, %v290
  %v299 = vld [vmem:[%s4] sm:$0xff]
  %v300 = vld [vmem:[%s4 + $0x8] sm:$0xff]
  %v301 = vld [vmem:[%s4 + $0x10] sm:$0xff]
  %v302 = vld [vmem:[%s4 + $0x18] sm:$0xff]
  %v303 = vld [vmem:[%s5] sm:$0xff]
  %v304 = vld [vmem:[%s5 + $0x8] sm:$0xff]
  %v305 = vpack.c.bf16 %v304, %v303
  %306 = vmatprep.subr.bf16.mxu0 0
  %307 = vmatpush1.bf16.msra.mxu0 %v305
  %308 = vmatprep.subr.bf16.mxu0 0
  %309 = vmatpush1.bf16.msra.mxu0 0
  %310 = vmatprep.subr.bf16.mxu0 0
  %311 = vmatpush1.bf16.msra.mxu0 0
  %312 = vmatprep.subr.bf16.mxu0 0
  %313 = vmatpush1.bf16.msra.mxu0 0
  %314 = vmatprep.subr.bf16.mxu0 0
  %315 = vmatpush1.bf16.msra.mxu0 0
  %316 = vmatprep.subr.bf16.mxu0 0
  %317 = vmatpush1.bf16.msra.mxu0 0
  %318 = vmatprep.subr.bf16.mxu0 0
  %319 = vmatpush1.bf16.msra.mxu0 0
  %320 = vmatprep.subr.bf16.mxu0 0
  %321 = vmatpush1.bf16.msra.mxu0 0
  %322 = vmatprep.subr.bf16.mxu0 0
  %323 = vmatpush1.bf16.msra.mxu0 0
  %324 = vmatprep.subr.bf16.mxu0 0
  %325 = vmatpush1.bf16.msra.mxu0 0
  %326 = vmatprep.subr.bf16.mxu0 0
  %327 = vmatpush1.bf16.msra.mxu0 0
  %328 = vmatprep.subr.bf16.mxu0 0
  %329 = vmatpush1.bf16.msra.mxu0 0
  %330 = vmatprep.subr.bf16.mxu0 0
  %331 = vmatpush1.bf16.msra.mxu0 0
  %332 = vmatprep.subr.bf16.mxu0 0
  %333 = vmatpush1.bf16.msra.mxu0 0
  %334 = vmatprep.subr.bf16.mxu0 0
  %335 = vmatpush1.bf16.msra.mxu0 0
  %336 = vmatprep.subr.bf16.mxu0 0
  %337 = vmatpush1.bf16.msra.mxu0 0
  %338 = vmatprep.mubr.bf16.mxu0 0
  %339 = vmatmul.mubr.bf16.gmra.mrb[0].mxu0 %v60
  %v340 = vpop.f32.mrb[0].mxu0
  %v341 = vadd.f32 0.0, %v340
  %v342 = vpop.f32.mrb[0].mxu0
  %v343 = vpop.f32.mrb[0].mxu0
  %v344 = vadd.f32 0.0, %v343
  %v345 = vpop.f32.mrb[0].mxu0
  %346 = vmatprep.mubr.bf16.mxu0 0
  %347 = vmatmul.mubr.bf16.gmra.mrb[0].mxu0 %v63
  %v348 = vpop.f32.mrb[0].mxu0
  %v349 = vadd.f32 0.0, %v348
  %v350 = vpop.f32.mrb[0].mxu0
  %v351 = vpop.f32.mrb[0].mxu0
  %v352 = vadd.f32 0.0, %v351
  %v353 = vpop.f32.mrb[0].mxu0
  %354 = vdwg.mxu0
  %v355 = vpack.c.bf16 %v344, %v341
  %v356 = vpack.c.bf16 %v352, %v349
  %357 = vmatprep.subr.bf16.mxu0 0
  %358 = vmatpush1.bf16.msra.mxu0 %v355
  %359 = vmatprep.subr.bf16.mxu0 0
  %360 = vmatpush1.bf16.msra.mxu0 %v356
  %361 = vmatprep.subr.bf16.mxu0 0
  %362 = vmatpush1.bf16.msra.mxu0 0
  %363 = vmatprep.subr.bf16.mxu0 0
  %364 = vmatpush1.bf16.msra.mxu0 0
  %365 = vmatprep.subr.bf16.mxu0 0
  %366 = vmatpush1.bf16.msra.mxu0 0
  %367 = vmatprep.subr.bf16.mxu0 0
  %368 = vmatpush1.bf16.msra.mxu0 0
  %369 = vmatprep.subr.bf16.mxu0 0
  %370 = vmatpush1.bf16.msra.mxu0 0
  %371 = vmatprep.subr.bf16.mxu0 0
  %372 = vmatpush1.bf16.msra.mxu0 0
  %373 = vmatprep.subr.bf16.mxu0 0
  %374 = vmatpush1.bf16.msra.mxu0 0
  %375 = vmatprep.subr.bf16.mxu0 0
  %376 = vmatpush1.bf16.msra.mxu0 0
  %377 = vmatprep.subr.bf16.mxu0 0
  %378 = vmatpush1.bf16.msra.mxu0 0
  %379 = vmatprep.subr.bf16.mxu0 0
  %380 = vmatpush1.bf16.msra.mxu0 0
  %381 = vmatprep.subr.bf16.mxu0 0
  %382 = vmatpush1.bf16.msra.mxu0 0
  %383 = vmatprep.subr.bf16.mxu0 0
  %384 = vmatpush1.bf16.msra.mxu0 0
  %385 = vmatprep.subr.bf16.mxu0 0
  %386 = vmatpush1.bf16.msra.mxu0 0
  %387 = vmatprep.subr.bf16.mxu0 0
  %388 = vmatpush1.bf16.msra.mxu0 0
  %389 = vmatprep.mubr.bf16.mxu0 0
  %390 = vmatmul.mubr.bf16.gmra.mrb[0].mxu0 %v129
  %v391 = vpop.f32.mrb[0].mxu0
  %v392 = vadd.f32 0.0, %v391
  %v393 = vpop.f32.mrb[0].mxu0
  %v394 = vpop.f32.mrb[0].mxu0
  %v395 = vadd.f32 0.0, %v394
  %v396 = vpop.f32.mrb[0].mxu0
  %397 = vdwg.mxu0
  %v398 = vadd.f32 %v299, %v341
  %v399 = vadd.f32 %v300, %v344
  %v400 = vadd.f32 %v301, %v349
  %v401 = vadd.f32 %v302, %v352
  %v402 = vadd.f32 %v303, %v392
  %v403 = vadd.f32 %v304, %v395
  %v404 = vpack.c.bf16 %v395, %v392
  %405 = vmatprep.subr.bf16.mxu0 0
  %406 = vmatpush1.bf16.msra.mxu0 %v404
  %407 = vmatprep.subr.bf16.mxu0 0
  %408 = vmatpush1.bf16.msra.mxu0 0
  %409 = vmatprep.subr.bf16.mxu0 0
  %410 = vmatpush1.bf16.msra.mxu0 0
  %411 = vmatprep.subr.bf16.mxu0 0
  %412 = vmatpush1.bf16.msra.mxu0 0
  %413 = vmatprep.subr.bf16.mxu0 0
  %414 = vmatpush1.bf16.msra.mxu0 0
  %415 = vmatprep.subr.bf16.mxu0 0
  %416 = vmatpush1.bf16.msra.mxu0 0
  %417 = vmatprep.subr.bf16.mxu0 0
  %418 = vmatpush1.bf16.msra.mxu0 0
  %419 = vmatprep.subr.bf16.mxu0 0
  %420 = vmatpush1.bf16.msra.mxu0 0
  %421 = vmatprep.subr.bf16.mxu0 0
  %422 = vmatpush1.bf16.msra.mxu0 0
  %423 = vmatprep.subr.bf16.mxu0 0
  %424 = vmatpush1.bf16.msra.mxu0 0
  %425 = vmatprep.subr.bf16.mxu0 0
  %426 = vmatpush1.bf16.msra.mxu0 0
  %427 = vmatprep.subr.bf16.mxu0 0
  %428 = vmatpush1.bf16.msra.mxu0 0
  %429 = vmatprep.subr.bf16.mxu0 0
  %430 = vmatpush1.bf16.msra.mxu0 0
  %431 = vmatprep.subr.bf16.mxu0 0
  %432 = vmatpush1.bf16.msra.mxu0 0
  %433 = vmatprep.subr.bf16.mxu0 0
  %434 = vmatpush1.bf16.msra.mxu0 0
  %435 = vmatprep.subr.bf16.mxu0 0
  %436 = vmatpush1.bf16.msra.mxu0 0
  %437 = vmatprep.mubr.bf16.mxu0 0
  %438 = vmatmul.mubr.bf16.gmra.mrb[0].mxu0 %v60
  %v439 = vpop.f32.mrb[0].mxu0
  %v440 = vadd.f32 0.0, %v439
  %v441 = vpop.f32.mrb[0].mxu0
  %v442 = vpop.f32.mrb[0].mxu0
  %v443 = vadd.f32 0.0, %v442
  %v444 = vpop.f32.mrb[0].mxu0
  %445 = vmatprep.mubr.bf16.mxu0 0
  %446 = vmatmul.mubr.bf16.gmra.mrb[0].mxu0 %v63
  %v447 = vpop.f32.mrb[0].mxu0
  %v448 = vadd.f32 0.0, %v447
  %v449 = vpop.f32.mrb[0].mxu0
  %v450 = vpop.f32.mrb[0].mxu0
  %v451 = vadd.f32 0.0, %v450
  %v452 = vpop.f32.mrb[0].mxu0
  %453 = vdwg.mxu0
  %v454 = vsel %vm127, %v440, -inf
  %455 = vmax.xlane.f32.xlu0 %v454
  %v456 = vpop.xlane.xlu0 %455
  %v457 = vsel %vm127, %v443, -inf
  %458 = vmax.xlane.f32.xlu0 %v457
  %v459 = vpop.xlane.xlu0 %458
  %v460 = vsel %vm127, %v448, -inf
  %461 = vmax.xlane.f32.xlu0 %v460
  %v462 = vpop.xlane.xlu0 %461
  %v463 = vsel %vm127, %v451, -inf
  %464 = vmax.xlane.f32.xlu0 %v463
  %v465 = vpop.xlane.xlu0 %464
  %v466 = vsub.f32 %v440, %v456
  %v467 = vsub.f32 %v443, %v459
  %v468 = vsub.f32 %v448, %v462
  %v469 = vsub.f32 %v451, %v465
  %v470 = vmul.f32 %v466, 1.442695
  %v471 = vpow.pop %v470
  %v472 = vmul.f32 %v467, 1.442695
  %v473 = vpow.pop %v472
  %v474 = vmul.f32 %v468, 1.442695
  %v475 = vpow.pop %v474
  %v476 = vmul.f32 %v469, 1.442695
  %v477 = vpow.pop %v476
  %v478 = vsel %vm127, %v471, 0.0
  %479 = vadd.xlane.f32.xlu0 %v478
  %v480 = vpop.xlane.xlu0 %479
  %v481 = vsel %vm127, %v473, 0.0
  %482 = vadd.xlane.f32.xlu0 %v481
  %v483 = vpop.xlane.xlu0 %482
  %v484 = vsel %vm127, %v475, 0.0
  %485 = vadd.xlane.f32.xlu0 %v484
  %v486 = vpop.xlane.xlu0 %485
  %v487 = vsel %vm127, %v477, 0.0
  %488 = vadd.xlane.f32.xlu0 %v487
  %v489 = vpop.xlane.xlu0 %488
  %v490 = vrcp.pop %v480
  %v491 = vmul.f32 %v471, %v490
  %v492 = vrcp.pop %v483
  %v493 = vmul.f32 %v473, %v492
  %v494 = vrcp.pop %v486
  %v495 = vmul.f32 %v475, %v494
  %v496 = vrcp.pop %v489
  %v497 = vmul.f32 %v477, %v496
  %v498 = vpack.c.bf16 %v493, %v491
  %v499 = vpack.c.bf16 %v497, %v495
  %500 = vmatprep.subr.bf16.mxu0 0
  %501 = vmatpush1.bf16.msra.mxu0 %v498
  %502 = vmatprep.subr.bf16.mxu0 0
  %503 = vmatpush1.bf16.msra.mxu0 %v499
  %504 = vmatprep.subr.bf16.mxu0 0
  %505 = vmatpush1.bf16.msra.mxu0 0
  %506 = vmatprep.subr.bf16.mxu0 0
  %507 = vmatpush1.bf16.msra.mxu0 0
  %508 = vmatprep.subr.bf16.mxu0 0
  %509 = vmatpush1.bf16.msra.mxu0 0
  %510 = vmatprep.subr.bf16.mxu0 0
  %511 = vmatpush1.bf16.msra.mxu0 0
  %512 = vmatprep.subr.bf16.mxu0 0
  %513 = vmatpush1.bf16.msra.mxu0 0
  %514 = vmatprep.subr.bf16.mxu0 0
  %515 = vmatpush1.bf16.msra.mxu0 0
  %516 = vmatprep.subr.bf16.mxu0 0
  %517 = vmatpush1.bf16.msra.mxu0 0
  %518 = vmatprep.subr.bf16.mxu0 0
  %519 = vmatpush1.bf16.msra.mxu0 0
  %520 = vmatprep.subr.bf16.mxu0 0
  %521 = vmatpush1.bf16.msra.mxu0 0
  %522 = vmatprep.subr.bf16.mxu0 0
  %523 = vmatpush1.bf16.msra.mxu0 0
  %524 = vmatprep.subr.bf16.mxu0 0
  %525 = vmatpush1.bf16.msra.mxu0 0
  %526 = vmatprep.subr.bf16.mxu0 0
  %527 = vmatpush1.bf16.msra.mxu0 0
  %528 = vmatprep.subr.bf16.mxu0 0
  %529 = vmatpush1.bf16.msra.mxu0 0
  %530 = vmatprep.subr.bf16.mxu0 0
  %531 = vmatpush1.bf16.msra.mxu0 0
  %532 = vmatprep.mubr.bf16.mxu0 0
  %533 = vmatmul.mubr.bf16.gmra.mrb[0].mxu0 %v129
  %v534 = vpop.f32.mrb[0].mxu0
  %v535 = vadd.f32 0.0, %v534
  %v536 = vpop.f32.mrb[0].mxu0
  %v537 = vpop.f32.mrb[0].mxu0
  %v538 = vadd.f32 0.0, %v537
  %v539 = vpop.f32.mrb[0].mxu0
  %540 = vdwg.mxu0
  %v541 = vsel %vm127, %v535, -inf
  %542 = vmax.xlane.f32.xlu0 %v541
  %v543 = vpop.xlane.xlu0 %542
  %v544 = vsel %vm127, %v538, -inf
  %545 = vmax.xlane.f32.xlu0 %v544
  %v546 = vpop.xlane.xlu0 %545
  %v547 = vsub.f32 %v535, %v543
  %v548 = vsub.f32 %v538, %v546
  %v549 = vmul.f32 %v547, 1.442695
  %v550 = vpow.pop %v549
  %v551 = vmul.f32 %v548, 1.442695
  %v552 = vpow.pop %v551
  %v553 = vsel %vm127, %v550, 0.0
  %554 = vadd.xlane.f32.xlu0 %v553
  %v555 = vpop.xlane.xlu0 %554
  %v556 = vsel %vm127, %v552, 0.0
  %557 = vadd.xlane.f32.xlu0 %v556
  %v558 = vpop.xlane.xlu0 %557
  %v559 = vrcp.pop %v555
  %v560 = vmul.f32 %v550, %v559
  %v561 = vrcp.pop %v558
  %v562 = vmul.f32 %v552, %v561
  %v563 = vadd.f32 %v398, %v491
  %v564 = vadd.f32 %v399, %v493
  %v565 = vadd.f32 %v400, %v495
  %v566 = vadd.f32 %v401, %v497
  %v567 = vadd.f32 %v402, %v560
  %v568 = vadd.f32 %v403, %v562
  %v569 = vmul.f32 %v563, 0.33333334
  %v570 = vmul.f32 %v564, 0.33333334
  %v571 = vmul.f32 %v565, 0.33333334
  %v572 = vmul.f32 %v566, 0.33333334
  %573 = vst.msk [vmem:[%s10] sm:$0xff] %vm127, %v569
  %574 = vst.msk [vmem:[%s10 + $0x8] sm:$0xff] %vm127, %v570
  %575 = vst.msk [vmem:[%s10 + $0x10] sm:$0xff] %vm127, %v571
  %576 = vst.msk [vmem:[%s10 + $0x18] sm:$0xff] %vm127, %v572
  %v577 = vmul.f32 %v567, 0.33333334
  %v578 = vmul.f32 %v568, 0.33333334
  %579 = vst.msk [vmem:[%s11] sm:$0xff] %vm127, %v577
  %580 = vst.msk [vmem:[%s11 + $0x8] sm:$0xff] %vm127, %v578
  // Predicated region
  $region26: #{mm_model_forward.12} parent=0 // pred_check
    _
  $region27: #{mm_model_forward.12} parent=0 // pred_check_branch
    %582 = sbr.rel (0) target = $region29
  $region28: #{mm_model_forward.12} parent=0 // pred_region
    _
  $region29: #{mm_model_forward.12} parent=0 // pred_fallthru
    _
  // Predicated region
  $region30: #{mm_model_forward.12} parent=0 // pred_check
    _
  $region31: #{mm_model_forward.12} parent=0 // pred_check_branch
    %584 = sbr.rel (0) target = $region33
  $region32: #{mm_model_forward.12} parent=0 // pred_region
    _
  $region33: #{mm_model_forward.12} parent=0 // pred_fallthru
    _
  // Predicated region
  $region34: #{mm_model_forward.12} parent=0 // pred_check
    _
  $region35: #{mm_model_forward.12} parent=0 // pred_check_branch
    %586 = sbr.rel (0) target = $region37
  $region36: #{mm_model_forward.12} parent=0 // pred_region
    _
  $region37: #{mm_model_forward.12} parent=0 // pred_fallthru
    _
  // Predicated region
  $region38: #{mm_model_forward.12} parent=0 // pred_check
    _
  $region39: #{mm_model_forward.12} parent=0 // pred_check_branch
    %588 = sbr.rel (0) target = $region41
  $region40: #{mm_model_forward.12} parent=0 // pred_region
    _
  $region41: #{mm_model_forward.12} parent=0 // pred_fallthru
    _
  // Predicated region
  $region42: #{mm_model_forward.12} parent=0 // pred_check
    _
  $region43: #{mm_model_forward.12} parent=0 // pred_check_branch
    %590 = sbr.rel (0) target = $region45
  $region44: #{mm_model_forward.12} parent=0 // pred_region
    _
  $region45: #{mm_model_forward.12} parent=0 // pred_fallthru
    _
  // Predicated region
  $region46: #{mm_model_forward.12} parent=0 // pred_check
    _
  $region47: #{mm_model_forward.12} parent=0 // pred_check_branch
    %592 = sbr.rel (0) target = $region49
  $region48: #{mm_model_forward.12} parent=0 // pred_region
    _
  $region49: #{mm_model_forward.12} parent=0 // pred_fallthru
    _
  // Predicated region
  $region50: #{mm_model_forward.12} parent=0 // pred_check
    _
  $region51: #{mm_model_forward.12} parent=0 // pred_check_branch
    %594 = sbr.rel (0) target = $region53
  $region52: #{mm_model_forward.12} parent=0 // pred_region
    _
  $region53: #{mm_model_forward.12} parent=0 // pred_fallthru
    _
  // Predicated region
  $region54: #{mm_model_forward.12} parent=0 // pred_check
    _
  $region55: #{mm_model_forward.12} parent=0 // pred_check_branch
    %596 = sbr.rel (0) target = $region57
  $region56: #{mm_model_forward.12} parent=0 // pred_region
    _
  $region57: #{mm_model_forward.12} parent=0 // pred_fallthru
    _
  // Predicated region
  $region58: #{mm_model_forward.12} parent=0 // pred_check
    _
  $region59: #{mm_model_forward.12} parent=0 // pred_check_branch
    %598 = sbr.rel (0) target = $region61
  $region60: #{mm_model_forward.12} parent=0 // pred_region
    _
  $region61: #{mm_model_forward.12} parent=0 // pred_fallthru
    _
  // Predicated region
  $region62: #{mm_model_forward.12} parent=0 // pred_check
    _
  $region63: #{mm_model_forward.12} parent=0 // pred_check_branch
    %600 = sbr.rel (0) target = $region65
  $region64: #{mm_model_forward.12} parent=0 // pred_region
    _
  $region65: #{mm_model_forward.12} parent=0 // pred_fallthru
    _
  // Predicated region
  $region66: #{mm_model_forward.12} parent=0 // pred_check
    _
  $region67: #{mm_model_forward.12} parent=0 // pred_check_branch
    %602 = sbr.rel (0) target = $region69
  $region68: #{mm_model_forward.12} parent=0 // pred_region
    _
  $region69: #{mm_model_forward.12} parent=0 // pred_fallthru
    _
  // Predicated region
  $region70: #{mm_model_forward.12} parent=0 // pred_check
    _
  $region71: #{mm_model_forward.12} parent=0 // pred_check_branch
    %604 = sbr.rel (0) target = $region73
  $region72: #{mm_model_forward.12} parent=0 // pred_region
    _
  $region73: #{mm_model_forward.12} parent=0 // pred_fallthru
    _

// kernel: mm_model_forward.13
$region0: #{mm_model_forward.13}
  #allocation0 [shape = 'u32[]', space=smem, size = 0x4, offset = 0x4, fixed_abs, tag = 'smem constant byte address 0x4 - core index']
  #allocation1 [shape = 'u32[144,128]{1,0:T(1,128)}', space=vmem, size = 0x12000, scoped, tag = 'internal scratch']
  %s0 = inlined_call_operand.vmem [shape: f32[40,32], index: 0, kind: input, shape index: {}]
  %s1 = inlined_call_operand.vmem [shape: f32[6,40,32], index: 1, kind: input, shape index: {}]
  %s2 = inlined_call_operand.vmem [shape: f32[40,32], index: 2, kind: output, shape index: {}]
  %s3 = sld [smem:[#allocation0]]
  $region18: #{mm_model_forward.13} parent=0
    _
  %s5 = ssub.s32 1, %s3
  %s6 = scalar_select 0, %s5, %s3
  // Predicated region
  $region2: #{mm_model_forward.13} parent=0 // pred_check
    _
  $region3: #{mm_model_forward.13} parent=0 // pred_check_branch
    %8 = sbr.rel (0) target = $region5
  $region4: #{mm_model_forward.13} parent=0 // pred_region
    _
  $region5: #{mm_model_forward.13} parent=0 // pred_fallthru
    _
  // Predicated region
  $region6: #{mm_model_forward.13} parent=0 // pred_check
    _
  $region7: #{mm_model_forward.13} parent=0 // pred_check_branch
    %10 = sbr.rel (0) target = $region9
  $region8: #{mm_model_forward.13} parent=0 // pred_region
    _
  $region9: #{mm_model_forward.13} parent=0 // pred_fallthru
    _
  %v11 = vld [vmem:[%s0] sm:$0xff]
  %v12 = vld [vmem:[%s0 + $0x8] sm:$0xff]
  %v13 = vld [vmem:[%s0 + $0x10] sm:$0xff]
  %v14 = vld [vmem:[%s0 + $0x18] sm:$0xff]
  %v15 = vld [vmem:[%s0 + $0x20] sm:$0xff]
  %v16 = vld [vmem:[%s1] sm:$0xff]
  %v17 = vld [vmem:[%s1 + $0x8] sm:$0xff]
  %v18 = vld [vmem:[%s1 + $0x10] sm:$0xff]
  %v19 = vld [vmem:[%s1 + $0x18] sm:$0xff]
  %v20 = vld [vmem:[%s1 + $0x20] sm:$0xff]
  %v21 = vmul.f32 %v16, %v16
  %v22 = vmul.f32 %v17, %v17
  %v23 = vmul.f32 %v18, %v18
  %v24 = vmul.f32 %v19, %v19
  %v25 = vmul.f32 %v20, %v20
  %vm26 = vcmask 261120
  %v27 = vsel %vm26, %v21, 0.0
  %28 = vadd.xlane.f32.xlu0 %v27
  %v29 = vpop.xlane.xlu0 %28
  %v30 = vsel %vm26, %v22, 0.0
  %31 = vadd.xlane.f32.xlu0 %v30
  %v32 = vpop.xlane.xlu0 %31
  %v33 = vsel %vm26, %v23, 0.0
  %34 = vadd.xlane.f32.xlu0 %v33
  %v35 = vpop.xlane.xlu0 %34
  %v36 = vsel %vm26, %v24, 0.0
  %37 = vadd.xlane.f32.xlu0 %v36
  %v38 = vpop.xlane.xlu0 %37
  %v39 = vsel %vm26, %v25, 0.0
  %40 = vadd.xlane.f32.xlu0 %v39
  %v41 = vpop.xlane.xlu0 %40
  %v42 = vmax.f32 %v29, 1e-24
  %v43 = vmax.f32 %v32, 1e-24
  %v44 = vmax.f32 %v35, 1e-24
  %v45 = vmax.f32 %v38, 1e-24
  %v46 = vmax.f32 %v41, 1e-24
  %v47 = vrsqrt.pop %v42
  %v48 = vrsqrt.pop %v43
  %v49 = vrsqrt.pop %v44
  %v50 = vrsqrt.pop %v45
  %v51 = vrsqrt.pop %v46
  %v52 = vmul.f32 %v16, %v47
  %v53 = vmul.f32 %v17, %v48
  %v54 = vmul.f32 %v18, %v49
  %v55 = vmul.f32 %v19, %v50
  %v56 = vmul.f32 %v20, %v51
  %v57 = vmul.f32 %v52, 0.02
  %v58 = vmul.f32 %v53, 0.02
  %v59 = vmul.f32 %v54, 0.02
  %v60 = vmul.f32 %v55, 0.02
  %v61 = vmul.f32 %v56, 0.02
  %v62 = vadd.f32 %v11, %v57
  %v63 = vadd.f32 %v12, %v58
  %v64 = vadd.f32 %v13, %v59
  %v65 = vadd.f32 %v14, %v60
  %v66 = vadd.f32 %v15, %v61
  %s67 = scalar_lea.vmem %s1, 40
  %v68 = vld [vmem:[%s67] sm:$0xff]
  %v69 = vld [vmem:[%s67 + $0x8] sm:$0xff]
  %v70 = vld [vmem:[%s67 + $0x10] sm:$0xff]
  %v71 = vld [vmem:[%s67 + $0x18] sm:$0xff]
  %v72 = vld [vmem:[%s67 + $0x20] sm:$0xff]
  %v73 = vmul.f32 %v68, %v68
  %v74 = vmul.f32 %v69, %v69
  %v75 = vmul.f32 %v70, %v70
  %v76 = vmul.f32 %v71, %v71
  %v77 = vmul.f32 %v72, %v72
  %v78 = vsel %vm26, %v73, 0.0
  %79 = vadd.xlane.f32.xlu0 %v78
  %v80 = vpop.xlane.xlu0 %79
  %v81 = vsel %vm26, %v74, 0.0
  %82 = vadd.xlane.f32.xlu0 %v81
  %v83 = vpop.xlane.xlu0 %82
  %v84 = vsel %vm26, %v75, 0.0
  %85 = vadd.xlane.f32.xlu0 %v84
  %v86 = vpop.xlane.xlu0 %85
  %v87 = vsel %vm26, %v76, 0.0
  %88 = vadd.xlane.f32.xlu0 %v87
  %v89 = vpop.xlane.xlu0 %88
  %v90 = vsel %vm26, %v77, 0.0
  %91 = vadd.xlane.f32.xlu0 %v90
  %v92 = vpop.xlane.xlu0 %91
  %v93 = vmax.f32 %v80, 1e-24
  %v94 = vmax.f32 %v83, 1e-24
  %v95 = vmax.f32 %v86, 1e-24
  %v96 = vmax.f32 %v89, 1e-24
  %v97 = vmax.f32 %v92, 1e-24
  %v98 = vrsqrt.pop %v93
  %v99 = vrsqrt.pop %v94
  %v100 = vrsqrt.pop %v95
  %v101 = vrsqrt.pop %v96
  %v102 = vrsqrt.pop %v97
  %v103 = vmul.f32 %v68, %v98
  %v104 = vmul.f32 %v69, %v99
  %v105 = vmul.f32 %v70, %v100
  %v106 = vmul.f32 %v71, %v101
  %v107 = vmul.f32 %v72, %v102
  %v108 = vmul.f32 %v103, 0.02
  %v109 = vmul.f32 %v104, 0.02
  %v110 = vmul.f32 %v105, 0.02
  %v111 = vmul.f32 %v106, 0.02
  %v112 = vmul.f32 %v107, 0.02
  %v113 = vadd.f32 %v62, %v108
  %v114 = vadd.f32 %v63, %v109
  %v115 = vadd.f32 %v64, %v110
  %v116 = vadd.f32 %v65, %v111
  %v117 = vadd.f32 %v66, %v112
  %s118 = scalar_lea.vmem %s1, 80
  %v119 = vld [vmem:[%s118] sm:$0xff]
  %v120 = vld [vmem:[%s118 + $0x8] sm:$0xff]
  %v121 = vld [vmem:[%s118 + $0x10] sm:$0xff]
  %v122 = vld [vmem:[%s118 + $0x18] sm:$0xff]
  %v123 = vld [vmem:[%s118 + $0x20] sm:$0xff]
  %v124 = vmul.f32 %v119, %v119
  %v125 = vmul.f32 %v120, %v120
  %v126 = vmul.f32 %v121, %v121
  %v127 = vmul.f32 %v122, %v122
  %v128 = vmul.f32 %v123, %v123
  %v129 = vsel %vm26, %v124, 0.0
  %130 = vadd.xlane.f32.xlu0 %v129
  %v131 = vpop.xlane.xlu0 %130
  %v132 = vsel %vm26, %v125, 0.0
  %133 = vadd.xlane.f32.xlu0 %v132
  %v134 = vpop.xlane.xlu0 %133
  %v135 = vsel %vm26, %v126, 0.0
  %136 = vadd.xlane.f32.xlu0 %v135
  %v137 = vpop.xlane.xlu0 %136
  %v138 = vsel %vm26, %v127, 0.0
  %139 = vadd.xlane.f32.xlu0 %v138
  %v140 = vpop.xlane.xlu0 %139
  %v141 = vsel %vm26, %v128, 0.0
  %142 = vadd.xlane.f32.xlu0 %v141
  %v143 = vpop.xlane.xlu0 %142
  %v144 = vmax.f32 %v131, 1e-24
  %v145 = vmax.f32 %v134, 1e-24
  %v146 = vmax.f32 %v137, 1e-24
  %v147 = vmax.f32 %v140, 1e-24
  %v148 = vmax.f32 %v143, 1e-24
  %v149 = vrsqrt.pop %v144
  %v150 = vrsqrt.pop %v145
  %v151 = vrsqrt.pop %v146
  %v152 = vrsqrt.pop %v147
  %v153 = vrsqrt.pop %v148
  %v154 = vmul.f32 %v119, %v149
  %v155 = vmul.f32 %v120, %v150
  %v156 = vmul.f32 %v121, %v151
  %v157 = vmul.f32 %v122, %v152
  %v158 = vmul.f32 %v123, %v153
  %v159 = vmul.f32 %v154, 0.02
  %v160 = vmul.f32 %v155, 0.02
  %v161 = vmul.f32 %v156, 0.02
  %v162 = vmul.f32 %v157, 0.02
  %v163 = vmul.f32 %v158, 0.02
  %v164 = vadd.f32 %v113, %v159
  %v165 = vadd.f32 %v114, %v160
  %v166 = vadd.f32 %v115, %v161
  %v167 = vadd.f32 %v116, %v162
  %v168 = vadd.f32 %v117, %v163
  %s169 = scalar_lea.vmem %s1, 120
  %v170 = vld [vmem:[%s169] sm:$0xff]
  %v171 = vld [vmem:[%s169 + $0x8] sm:$0xff]
  %v172 = vld [vmem:[%s169 + $0x10] sm:$0xff]
  %v173 = vld [vmem:[%s169 + $0x18] sm:$0xff]
  %v174 = vld [vmem:[%s169 + $0x20] sm:$0xff]
  %v175 = vmul.f32 %v170, %v170
  %v176 = vmul.f32 %v171, %v171
  %v177 = vmul.f32 %v172, %v172
  %v178 = vmul.f32 %v173, %v173
  %v179 = vmul.f32 %v174, %v174
  %v180 = vsel %vm26, %v175, 0.0
  %181 = vadd.xlane.f32.xlu0 %v180
  %v182 = vpop.xlane.xlu0 %181
  %v183 = vsel %vm26, %v176, 0.0
  %184 = vadd.xlane.f32.xlu0 %v183
  %v185 = vpop.xlane.xlu0 %184
  %v186 = vsel %vm26, %v177, 0.0
  %187 = vadd.xlane.f32.xlu0 %v186
  %v188 = vpop.xlane.xlu0 %187
  %v189 = vsel %vm26, %v178, 0.0
  %190 = vadd.xlane.f32.xlu0 %v189
  %v191 = vpop.xlane.xlu0 %190
  %v192 = vsel %vm26, %v179, 0.0
  %193 = vadd.xlane.f32.xlu0 %v192
  %v194 = vpop.xlane.xlu0 %193
  %v195 = vmax.f32 %v182, 1e-24
  %v196 = vmax.f32 %v185, 1e-24
  %v197 = vmax.f32 %v188, 1e-24
  %v198 = vmax.f32 %v191, 1e-24
  %v199 = vmax.f32 %v194, 1e-24
  %v200 = vrsqrt.pop %v195
  %v201 = vrsqrt.pop %v196
  %v202 = vrsqrt.pop %v197
  %v203 = vrsqrt.pop %v198
  %v204 = vrsqrt.pop %v199
  %v205 = vmul.f32 %v170, %v200
  %v206 = vmul.f32 %v171, %v201
  %v207 = vmul.f32 %v172, %v202
  %v208 = vmul.f32 %v173, %v203
  %v209 = vmul.f32 %v174, %v204
  %v210 = vmul.f32 %v205, 0.005
  %v211 = vmul.f32 %v206, 0.005
  %v212 = vmul.f32 %v207, 0.005
  %v213 = vmul.f32 %v208, 0.005
  %v214 = vmul.f32 %v209, 0.005
  %v215 = vadd.f32 %v164, %v210
  %v216 = vadd.f32 %v165, %v211
  %v217 = vadd.f32 %v166, %v212
  %v218 = vadd.f32 %v167, %v213
  %v219 = vadd.f32 %v168, %v214
  %s220 = scalar_lea.vmem %s1, 160
  %v221 = vld [vmem:[%s220] sm:$0xff]
  %v222 = vld [vmem:[%s220 + $0x8] sm:$0xff]
  %v223 = vld [vmem:[%s220 + $0x10] sm:$0xff]
  %v224 = vld [vmem:[%s220 + $0x18] sm:$0xff]
  %v225 = vld [vmem:[%s220 + $0x20] sm:$0xff]
  %v226 = vmul.f32 %v221, %v221
  %v227 = vmul.f32 %v222, %v222
  %v228 = vmul.f32 %v223, %v223
  %v229 = vmul.f32 %v224, %v224
  %v230 = vmul.f32 %v225, %v225
  %v231 = vsel %vm26, %v226, 0.0
  %232 = vadd.xlane.f32.xlu0 %v231
  %v233 = vpop.xlane.xlu0 %232
  %v234 = vsel %vm26, %v227, 0.0
  %235 = vadd.xlane.f32.xlu0 %v234
  %v236 = vpop.xlane.xlu0 %235
  %v237 = vsel %vm26, %v228, 0.0
  %238 = vadd.xlane.f32.xlu0 %v237
  %v239 = vpop.xlane.xlu0 %238
  %v240 = vsel %vm26, %v229, 0.0
  %241 = vadd.xlane.f32.xlu0 %v240
  %v242 = vpop.xlane.xlu0 %241
  %v243 = vsel %vm26, %v230, 0.0
  %244 = vadd.xlane.f32.xlu0 %v243
  %v245 = vpop.xlane.xlu0 %244
  %v246 = vmax.f32 %v233, 1e-24
  %v247 = vmax.f32 %v236, 1e-24
  %v248 = vmax.f32 %v239, 1e-24
  %v249 = vmax.f32 %v242, 1e-24
  %v250 = vmax.f32 %v245, 1e-24
  %v251 = vrsqrt.pop %v246
  %v252 = vrsqrt.pop %v247
  %v253 = vrsqrt.pop %v248
  %v254 = vrsqrt.pop %v249
  %v255 = vrsqrt.pop %v250
  %v256 = vmul.f32 %v221, %v251
  %v257 = vmul.f32 %v222, %v252
  %v258 = vmul.f32 %v223, %v253
  %v259 = vmul.f32 %v224, %v254
  %v260 = vmul.f32 %v225, %v255
  %v261 = vmul.f32 %v256, 0.005
  %v262 = vmul.f32 %v257, 0.005
  %v263 = vmul.f32 %v258, 0.005
  %v264 = vmul.f32 %v259, 0.005
  %v265 = vmul.f32 %v260, 0.005
  %v266 = vadd.f32 %v215, %v261
  %v267 = vadd.f32 %v216, %v262
  %v268 = vadd.f32 %v217, %v263
  %v269 = vadd.f32 %v218, %v264
  %v270 = vadd.f32 %v219, %v265
  %s271 = scalar_lea.vmem %s1, 200
  %v272 = vld [vmem:[%s271] sm:$0xff]
  %v273 = vld [vmem:[%s271 + $0x8] sm:$0xff]
  %v274 = vld [vmem:[%s271 + $0x10] sm:$0xff]
  %v275 = vld [vmem:[%s271 + $0x18] sm:$0xff]
  %v276 = vld [vmem:[%s271 + $0x20] sm:$0xff]
  %v277 = vmul.f32 %v272, %v272
  %v278 = vmul.f32 %v273, %v273
  %v279 = vmul.f32 %v274, %v274
  %v280 = vmul.f32 %v275, %v275
  %v281 = vmul.f32 %v276, %v276
  %v282 = vsel %vm26, %v277, 0.0
  %283 = vadd.xlane.f32.xlu0 %v282
  %v284 = vpop.xlane.xlu0 %283
  %v285 = vsel %vm26, %v278, 0.0
  %286 = vadd.xlane.f32.xlu0 %v285
  %v287 = vpop.xlane.xlu0 %286
  %v288 = vsel %vm26, %v279, 0.0
  %289 = vadd.xlane.f32.xlu0 %v288
  %v290 = vpop.xlane.xlu0 %289
  %v291 = vsel %vm26, %v280, 0.0
  %292 = vadd.xlane.f32.xlu0 %v291
  %v293 = vpop.xlane.xlu0 %292
  %v294 = vsel %vm26, %v281, 0.0
  %295 = vadd.xlane.f32.xlu0 %v294
  %v296 = vpop.xlane.xlu0 %295
  %v297 = vmax.f32 %v284, 1e-24
  %v298 = vmax.f32 %v287, 1e-24
  %v299 = vmax.f32 %v290, 1e-24
  %v300 = vmax.f32 %v293, 1e-24
  %v301 = vmax.f32 %v296, 1e-24
  %v302 = vrsqrt.pop %v297
  %v303 = vrsqrt.pop %v298
  %v304 = vrsqrt.pop %v299
  %v305 = vrsqrt.pop %v300
  %v306 = vrsqrt.pop %v301
  %v307 = vmul.f32 %v272, %v302
  %v308 = vmul.f32 %v273, %v303
  %v309 = vmul.f32 %v274, %v304
  %v310 = vmul.f32 %v275, %v305
  %v311 = vmul.f32 %v276, %v306
  %v312 = vmul.f32 %v307, 0.005
  %v313 = vmul.f32 %v308, 0.005
  %v314 = vmul.f32 %v309, 0.005
  %v315 = vmul.f32 %v310, 0.005
  %v316 = vmul.f32 %v311, 0.005
  %v317 = vadd.f32 %v266, %v312
  %v318 = vadd.f32 %v267, %v313
  %v319 = vadd.f32 %v268, %v314
  %v320 = vadd.f32 %v269, %v315
  %v321 = vadd.f32 %v270, %v316
  %322 = vst.msk [vmem:[%s2] sm:$0xff] %vm26, %v317
  %323 = vst.msk [vmem:[%s2 + $0x8] sm:$0xff] %vm26, %v318
  %324 = vst.msk [vmem:[%s2 + $0x10] sm:$0xff] %vm26, %v319
  %325 = vst.msk [vmem:[%s2 + $0x18] sm:$0xff] %vm26, %v320
  %326 = vst.msk [vmem:[%s2 + $0x20] sm:$0xff] %vm26, %v321
  // Predicated region
  $region10: #{mm_model_forward.13} parent=0 // pred_check
    _
  $region11: #{mm_model_forward.13} parent=0 // pred_check_branch
    %328 = sbr.rel (0) target = $region13
  $region12: #{mm_model_forward.13} parent=0 // pred_region
    _
  $region13: #{mm_model_forward.13} parent=0 // pred_fallthru
    _
  // Predicated region
  $region14: #{mm_model_forward.13} parent=0 // pred_check
    _
  $region15: #{mm_model_forward.13} parent=0 // pred_check_branch
    %330 = sbr.rel (0) target = $region17
  $region16: #{mm_model_forward.13} parent=0 // pred_region
    _
  $region17: #{mm_model_forward.13} parent=0 // pred_fallthru
    _

</llo_original>
